<compile_context>
chip_gen: v7x
topology: tpu7x:2x2x1
jax: 0.10.0
libtpu: 0.0.40
codegen_flags: <defaults>
</compile_context>

<pallas_src>
import functools

import jax
import jax.numpy as jnp
from jax.experimental import pallas as pl
from jax.experimental.pallas import tpu as pltpu


def _leaky(x, slope=0.01):
    # nn.LeakyReLU default negative_slope = 0.01
    return jnp.where(x > 0, x, slope * x)


def mgcn_kernel(att_ref, xm_ref, xk_ref, ahat_ref, proj_ref, wgcn_ref,
                bgcn_ref, wout_ref, bout_ref, o_ref, acc_ref,
                *, n_dims, hidden, alpha):
    k = pl.program_id(1)
    nk = pl.num_programs(1)

    @pl.when(k == 0)
    def _init():
        acc_ref[...] = jnp.zeros_like(acc_ref)

    # Source-tile dim representations for all graph dims in ONE wide matmul:
    #   h_k[:, d*H:(d+1)*H] = LeakyReLU(x_src @ proj[d])
    h_k = _leaky(jnp.dot(xk_ref[...], proj_ref[...],
                         preferred_element_type=jnp.float32))
    # GCN linear transform for all dims at once (wgcn_ref is block-diagonal):
    xw_k = jnp.dot(h_k, wgcn_ref[...], preferred_element_type=jnp.float32)
    xw_k = xw_k.astype(jnp.bfloat16)  # bf16 MXU operand, f32 accumulation below

    # within_aggr partial sums over source tiles (A_hat streamed in bf16).
    aggr = [
        jnp.dot(ahat_ref[d], xw_k[:, d * hidden:(d + 1) * hidden],
                preferred_element_type=jnp.float32)
        for d in range(n_dims)
    ]
    acc_ref[...] += jnp.concatenate(aggr, axis=-1)

    @pl.when(k == nk - 1)
    def _finalize():
        # Destination-tile dim representations (recomputed once per m-tile).
        h_m = _leaky(jnp.dot(xm_ref[...], proj_ref[...],
                             preferred_element_type=jnp.float32))

        # across_aggr[b] = sum_a softmax_att[a, b] * dim_repr[a]
        # (att scalars live in SMEM; softmax was computed in the wrapper).
        across = []
        for b in range(n_dims):
            acc_b = att_ref[0, b] * h_m[:, 0:hidden]
            for a in range(1, n_dims):
                acc_b = acc_b + att_ref[a, b] * h_m[:, a * hidden:(a + 1) * hidden]
            across.append(acc_b)
        across_cat = jnp.concatenate(across, axis=-1)

        within_cat = acc_ref[...] + bgcn_ref[...]
        new_cat = alpha * within_cat + (1.0 - alpha) * across_cat

        # inv_proj: "concat over dims then Linear" == single wide matmul.
        out = jnp.dot(new_cat, wout_ref[...], preferred_element_type=jnp.float32)
        o_ref[...] = _leaky(out + bout_ref[...]).astype(o_ref.dtype)


def mgcn_forward(x, proj, a_hat, w_gcn, b_gcn, bilinear, w_out, b_out, *,
                 alpha=0.5, tile=128):
    """x: [N, C_in]; proj: [D, C_in, H]; a_hat: [D, N, N] (dense sym-normalized
    adjacency); w_gcn: [D, H, H]; b_gcn: [D, H]; bilinear: [H, H];
    w_out: [D, H, C_out]; b_out: [C_out]."""
    n_dims, c_in, hidden = proj.shape
    n = x.shape[0]
    c_out = w_out.shape[-1]
    nh = n_dims * hidden

    # --- node-independent attention softmax, hoisted out of the kernel -------
    att = jnp.einsum('aji,ik,bjk->ab', proj, bilinear, proj)
    att = jax.nn.softmax(att, axis=0).astype(jnp.float32)       # [D, D]

    # --- math-equivalent weight repackaging for wide MXU matmuls -------------
    proj_cat = jnp.transpose(proj, (1, 0, 2)).reshape(c_in, nh)  # [C_in, D*H]
    wgcn_bd = jnp.zeros((nh, nh), jnp.float32)
    for d in range(n_dims):
        wgcn_bd = wgcn_bd.at[d * hidden:(d + 1) * hidden,
                             d * hidden:(d + 1) * hidden].set(w_gcn[d])
    bgcn_cat = b_gcn.reshape(1, nh)

    # lane-dense output: pad C_out up to a multiple of 128
    c_out_pad = ((c_out + 127) // 128) * 128
    wout_pad = jnp.zeros((nh, c_out_pad), jnp.float32).at[:, :c_out].set(
        w_out.reshape(nh, c_out))
    bout_pad = jnp.zeros((1, c_out_pad), jnp.float32).at[:, :c_out].set(
        b_out.reshape(1, c_out))

    # --- pad nodes to a tile multiple (zero rows/cols contribute nothing) ----
    n_pad = ((n + tile - 1) // tile) * tile
    x_p = jnp.zeros((n_pad, c_in), jnp.float32).at[:n].set(x.astype(jnp.float32))
    a_p = jnp.zeros((n_dims, n_pad, n_pad), jnp.bfloat16)
    a_p = a_p.at[:, :n, :n].set(a_hat.astype(jnp.bfloat16))

    grid = (n_pad // tile, n_pad // tile)
    kernel = functools.partial(mgcn_kernel, n_dims=n_dims, hidden=hidden,
                               alpha=alpha)

    out = pl.pallas_call(
        kernel,
        out_shape=jax.ShapeDtypeStruct((n_pad, c_out_pad), jnp.float32),
        grid_spec=pltpu.PrefetchScalarGridSpec(
            num_scalar_prefetch=0,
            grid=grid,
            in_specs=[
                # attention softmax scalars -> SMEM, resident for whole call
                pl.BlockSpec(memory_space=pltpu.MemorySpace.SMEM),
                # x, destination-row tile (used only at finalize)
                pl.BlockSpec((tile, c_in), lambda m, k: (m, 0)),
                # x, source-row tile (feeds the propagation matmul)
                pl.BlockSpec((tile, c_in), lambda m, k: (k, 0)),
                # A_hat stream: the only O(N^2) operand, bf16, double-buffered
                pl.BlockSpec((n_dims, tile, tile), lambda m, k: (0, m, k)),
                # small resident weights: constant block index -> no re-fetch
                pl.BlockSpec((c_in, nh), lambda m, k: (0, 0)),
                pl.BlockSpec((nh, nh), lambda m, k: (0, 0)),
                pl.BlockSpec((1, nh), lambda m, k: (0, 0)),
                pl.BlockSpec((nh, c_out_pad), lambda m, k: (0, 0)),
                pl.BlockSpec((1, c_out_pad), lambda m, k: (0, 0)),
            ],
            out_specs=pl.BlockSpec((tile, c_out_pad), lambda m, k: (m, 0)),
            scratch_shapes=[pltpu.VMEM((tile, nh), jnp.float32)],
        ),
        compiler_params=pltpu.CompilerParams(
            # m-axis parallel (2 TCs on v7x), k-axis is the A_hat reduction
            dimension_semantics=("parallel", "arbitrary"),
            # budgeted for v7x's 64 MiB VMEM (tiles here are tiny anyway)
            vmem_limit_bytes=48 * 1024 * 1024,
        ),
    )(att, x_p, x_p, a_p, proj_cat, wgcn_bd, bgcn_cat, wout_pad, bout_pad)
    return out[:n, :c_out]


# ---------------- glue (plain JAX): dense GCN normalization & reference ------


def gcn_norm_dense(edge_index, num_nodes):
    """Dense D^{-1/2} (A + I) D^{-1/2}, matching PyG GCNConv defaults."""
    src, dst = edge_index[0], edge_index[1]
    a = jnp.zeros((num_nodes, num_nodes), jnp.float32)
    a = a.at[dst, src].add(1.0)
    a = a + jnp.eye(num_nodes, dtype=jnp.float32)
    deg = a.sum(axis=1)
    dinv = jnp.where(deg > 0, 1.0 / jnp.sqrt(deg), 0.0)
    return dinv[:, None] * a * dinv[None, :]


def mgcn_reference(x, proj, a_hat, w_gcn, b_gcn, bilinear, w_out, b_out, alpha=0.5):
    dim_repr = _leaky(jnp.einsum('nc,dch->dnh', x, proj))
    within = jnp.einsum('dnm,dmh->dnh', a_hat,
                        jnp.einsum('dnh,dhk->dnk', dim_repr, w_gcn)) + b_gcn[:, None, :]
    att = jnp.einsum('aji,ik,bjk->ab', proj, bilinear, proj)
    att = jax.nn.softmax(att, axis=0)
    across = jnp.einsum('ab,anh->bnh', att, dim_repr)
    new = alpha * within + (1.0 - alpha) * across
    out = jnp.einsum('dnh,dho->no', new, w_out) + b_out.reshape(1, -1)
    return _leaky(out)


if __name__ == "__main__":
    N, C_IN, H, C_OUT, N_DIMS = 512, 16, 32, 16, 3

    key = jax.random.PRNGKey(0)
    ks = jax.random.split(key, 6)
    # deterministic synthetic parameters (shapes follow the module's __init__;
    # kaiming-uniform replaced by scaled normals — synthetic, not a checkpoint)
    x = jax.random.normal(ks[0], (N, C_IN), jnp.float32)
    proj = jax.random.normal(ks[1], (N_DIMS, C_IN, H), jnp.float32) / jnp.sqrt(C_IN)
    bilinear = jax.random.normal(ks[2], (H, H), jnp.float32) / jnp.sqrt(H)
    w_gcn = jax.random.normal(ks[3], (N_DIMS, H, H), jnp.float32) / jnp.sqrt(H)
    b_gcn = 0.01 * jax.random.normal(ks[4], (N_DIMS, H), jnp.float32)
    w_out = jax.random.normal(ks[5], (N_DIMS, H, C_OUT), jnp.float32) / jnp.sqrt(N_DIMS * H)
    b_out = 0.01 * jnp.ones((C_OUT,), jnp.float32)

    # per-dimension edge_index: bidirectional ring with a per-dim stride offset
    def make_edges(offset):
        s = jnp.arange(N)
        d = (s + 1 + offset) % N
        return jnp.stack([jnp.concatenate([s, d]), jnp.concatenate([d, s])])

    a_hat = jnp.stack([gcn_norm_dense(make_edges(d), N) for d in range(N_DIMS)])
    # The kernel streams A_hat in bf16; use the same rounded values in the f32
    # reference so the comparison isolates kernel correctness.
    a_hat_bf = a_hat.astype(jnp.bfloat16)
    a_hat_f32 = a_hat_bf.astype(jnp.float32)

    out = mgcn_forward(x, proj, a_hat_bf, w_gcn, b_gcn, bilinear, w_out, b_out,
                       alpha=0.5, tile=128)
    out = jax.block_until_ready(out)

    ref = mgcn_reference(x, proj, a_hat_f32, w_gcn, b_gcn, bilinear, w_out, b_out,
                         alpha=0.5)
    assert out.shape == (N, C_OUT) and out.dtype == jnp.float32
    assert jnp.allclose(out, ref, atol=2e-2, rtol=2e-2), (
        "kernel mismatch vs JAX reference; max abs diff = %f"
        % float(jnp.max(jnp.abs(out - ref))))
    print("KERNEL_OK")
</pallas_src>

<mosaic_0001>
module attributes {stable_mosaic.version = 11 : i64} {
  func.func @mgcn_kernel(%arg0: i32, %arg1: i32, %arg2: memref<3x3xf32, #tpu.memory_space<smem>>, %arg3: memref<128x16xf32, #tpu.memory_space<vmem>>, %arg4: memref<128x16xf32, #tpu.memory_space<vmem>>, %arg5: memref<3x128x128xbf16, #tpu.memory_space<vmem>>, %arg6: memref<16x96xf32, #tpu.memory_space<vmem>>, %arg7: memref<96x96xf32, #tpu.memory_space<vmem>>, %arg8: memref<1x96xf32, #tpu.memory_space<vmem>>, %arg9: memref<96x128xf32, #tpu.memory_space<vmem>>, %arg10: memref<1x128xf32, #tpu.memory_space<vmem>>, %arg11: memref<128x128xf32, #tpu.memory_space<vmem>>, %arg12: memref<128x96xf32, #tpu.memory_space<vmem>>) attributes {dimension_semantics = [#tpu.dimension_semantics<parallel>, #tpu.dimension_semantics<arbitrary>], iteration_bounds = array<i64: 4, 4>, scalar_prefetch = 0 : i64, scratch_operands = 1 : i64, tpu.core_type = #tpu.core_type<tc>, window_params = [{transform_indices = @transform_0, window_bounds = array<i64: 3, 3>}, {transform_indices = @transform_1, window_bounds = array<i64: 128, 16>}, {transform_indices = @transform_2, window_bounds = array<i64: 128, 16>}, {transform_indices = @transform_3, window_bounds = array<i64: 3, 128, 128>}, {pipeline_mode = #tpu.pipeline_mode<synchronous>, transform_indices = @transform_4, window_bounds = array<i64: 16, 96>}, {pipeline_mode = #tpu.pipeline_mode<synchronous>, transform_indices = @transform_5, window_bounds = array<i64: 96, 96>}, {pipeline_mode = #tpu.pipeline_mode<synchronous>, transform_indices = @transform_6, window_bounds = array<i64: 1, 96>}, {pipeline_mode = #tpu.pipeline_mode<synchronous>, transform_indices = @transform_7, window_bounds = array<i64: 96, 128>}, {pipeline_mode = #tpu.pipeline_mode<synchronous>, transform_indices = @transform_8, window_bounds = array<i64: 1, 128>}, {transform_indices = @transform_9, window_bounds = array<i64: 128, 128>}]} {
    %c0_i32 = arith.constant 0 : i32
    %0 = arith.cmpi eq, %arg1, %c0_i32 : i32
    %1 = arith.extui %0 : i1 to i32
    %c0_i32_0 = arith.constant 0 : i32
    %2 = arith.cmpi ne, %1, %c0_i32_0 : i32
    scf.if %2 {
      %cst_24 = arith.constant 0.000000e+00 : f32
      %33 = vector.broadcast %cst_24 : f32 to vector<128x96xf32>
      %c0_25 = arith.constant 0 : index
      %c0_26 = arith.constant 0 : index
      %34 = vector.load %arg12[%c0_25, %c0_26] : memref<128x96xf32, #tpu.memory_space<vmem>>, vector<128x96xf32>
      tpu.vector_store %arg12[%c0_25, %c0_26], %33 {strides = array<i32>} : memref<128x96xf32, #tpu.memory_space<vmem>>, vector<128x96xf32>,
    } else {
    }
    %c0 = arith.constant 0 : index
    %c0_1 = arith.constant 0 : index
    %3 = vector.load %arg4[%c0, %c0_1] : memref<128x16xf32, #tpu.memory_space<vmem>>, vector<128x16xf32>
    %c0_2 = arith.constant 0 : index
    %c0_3 = arith.constant 0 : index
    %4 = vector.load %arg6[%c0_2, %c0_3] : memref<16x96xf32, #tpu.memory_space<vmem>>, vector<16x96xf32>
    %cst = arith.constant dense<0.000000e+00> : vector<128x96xf32>
    %5 = tpu.matmul %3, %4, %cst {dimension_numbers = #tpu.dot_dimension_numbers<[1], [0], [0], [1], [0, 0, 1, 1], [], []>} : vector<128x16xf32>, vector<16x96xf32>, vector<128x96xf32> -> vector<128x96xf32>
    %cst_4 = arith.constant 0.000000e+00 : f32
    %6 = vector.broadcast %cst_4 : f32 to vector<128x96xf32>
    %7 = arith.cmpf ogt, %5, %6 : vector<128x96xf32>
    %cst_5 = arith.constant 0.00999999977 : f32
    %8 = vector.broadcast %cst_5 : f32 to vector<128x96xf32>
    %9 = arith.mulf %8, %5 : vector<128x96xf32>
    %10 = arith.select %7, %5, %9 : vector<128x96xi1>, vector<128x96xf32>
    %c0_6 = arith.constant 0 : index
    %c0_7 = arith.constant 0 : index
    %11 = vector.load %arg7[%c0_6, %c0_7] : memref<96x96xf32, #tpu.memory_space<vmem>>, vector<96x96xf32>
    %cst_8 = arith.constant dense<0.000000e+00> : vector<128x96xf32>
    %12 = tpu.matmul %10, %11, %cst_8 {dimension_numbers = #tpu.dot_dimension_numbers<[1], [0], [0], [1], [0, 0, 1, 1], [], []>} : vector<128x96xf32>, vector<96x96xf32>, vector<128x96xf32> -> vector<128x96xf32>
    %13 = arith.truncf %12 : vector<128x96xf32> to vector<128x96xbf16>
    %c0_9 = arith.constant 0 : index
    %c0_10 = arith.constant 0 : index
    %c0_11 = arith.constant 0 : index
    %14 = vector.load %arg5[%c0_9, %c0_10, %c0_11] : memref<3x128x128xbf16, #tpu.memory_space<vmem>>, vector<1x128x128xbf16>
    %15 = vector.shape_cast %14 : vector<1x128x128xbf16> to vector<128x128xbf16>
    %16 = vector.extract_strided_slice %13 {offsets = [0, 0], sizes = [128, 32], strides = [1, 1]} : vector<128x96xbf16> to vector<128x32xbf16>
    %cst_12 = arith.constant dense<0.000000e+00> : vector<128x32xf32>
    %17 = tpu.matmul %15, %16, %cst_12 {dimension_numbers = #tpu.dot_dimension_numbers<[1], [0], [0], [1], [0, 0, 1, 1], [], []>} : vector<128x128xbf16>, vector<128x32xbf16>, vector<128x32xf32> -> vector<128x32xf32>
    %c1 = arith.constant 1 : index
    %c0_13 = arith.constant 0 : index
    %c0_14 = arith.constant 0 : index
    %18 = vector.load %arg5[%c1, %c0_13, %c0_14] : memref<3x128x128xbf16, #tpu.memory_space<vmem>>, vector<1x128x128xbf16>
    %19 = vector.shape_cast %18 : vector<1x128x128xbf16> to vector<128x128xbf16>
    %20 = vector.extract_strided_slice %13 {offsets = [0, 32], sizes = [128, 32], strides = [1, 1]} : vector<128x96xbf16> to vector<128x32xbf16>
    %cst_15 = arith.constant dense<0.000000e+00> : vector<128x32xf32>
    %21 = tpu.matmul %19, %20, %cst_15 {dimension_numbers = #tpu.dot_dimension_numbers<[1], [0], [0], [1], [0, 0, 1, 1], [], []>} : vector<128x128xbf16>, vector<128x32xbf16>, vector<128x32xf32> -> vector<128x32xf32>
    %c2 = arith.constant 2 : index
    %c0_16 = arith.constant 0 : index
    %c0_17 = arith.constant 0 : index
    %22 = vector.load %arg5[%c2, %c0_16, %c0_17] : memref<3x128x128xbf16, #tpu.memory_space<vmem>>, vector<1x128x128xbf16>
    %23 = vector.shape_cast %22 : vector<1x128x128xbf16> to vector<128x128xbf16>
    %24 = vector.extract_strided_slice %13 {offsets = [0, 64], sizes = [128, 32], strides = [1, 1]} : vector<128x96xbf16> to vector<128x32xbf16>
    %cst_18 = arith.constant dense<0.000000e+00> : vector<128x32xf32>
    %25 = tpu.matmul %23, %24, %cst_18 {dimension_numbers = #tpu.dot_dimension_numbers<[1], [0], [0], [1], [0, 0, 1, 1], [], []>} : vector<128x128xbf16>, vector<128x32xbf16>, vector<128x32xf32> -> vector<128x32xf32>
    %c0_19 = arith.constant 0 : index
    %c0_20 = arith.constant 0 : index
    %26 = vector.load %arg12[%c0_19, %c0_20] : memref<128x96xf32, #tpu.memory_space<vmem>>, vector<128x96xf32>
    %27 = tpu.concatenate %17, %21, %25 in 1 : vector<128x32xf32>, vector<128x32xf32>, vector<128x32xf32> -> vector<128x96xf32>
    %28 = arith.addf %26, %27 : vector<128x96xf32>
    %c0_21 = arith.constant 0 : index
    %c0_22 = arith.constant 0 : index
    %29 = vector.load %arg12[%c0_21, %c0_22] : memref<128x96xf32, #tpu.memory_space<vmem>>, vector<128x96xf32>
    tpu.vector_store %arg12[%c0_21, %c0_22], %28 {strides = array<i32>} : memref<128x96xf32, #tpu.memory_space<vmem>>, vector<128x96xf32>,
    %c3_i32 = arith.constant 3 : i32
    %30 = arith.cmpi eq, %arg1, %c3_i32 : i32
    %31 = arith.extui %30 : i1 to i32
    %c0_i32_23 = arith.constant 0 : i32
    %32 = arith.cmpi ne, %31, %c0_i32_23 : i32
    scf.if %32 {
      %c0_24 = arith.constant 0 : index
      %c0_25 = arith.constant 0 : index
      %33 = vector.load %arg3[%c0_24, %c0_25] : memref<128x16xf32, #tpu.memory_space<vmem>>, vector<128x16xf32>
      %c0_26 = arith.constant 0 : index
      %c0_27 = arith.constant 0 : index
      %34 = vector.load %arg6[%c0_26, %c0_27] : memref<16x96xf32, #tpu.memory_space<vmem>>, vector<16x96xf32>
      %cst_28 = arith.constant dense<0.000000e+00> : vector<128x96xf32>
      %35 = tpu.matmul %33, %34, %cst_28 {dimension_numbers = #tpu.dot_dimension_numbers<[1], [0], [0], [1], [0, 0, 1, 1], [], []>} : vector<128x16xf32>, vector<16x96xf32>, vector<128x96xf32> -> vector<128x96xf32>
      %cst_29 = arith.constant 0.000000e+00 : f32
      %36 = vector.broadcast %cst_29 : f32 to vector<128x96xf32>
      %37 = arith.cmpf ogt, %35, %36 : vector<128x96xf32>
      %cst_30 = arith.constant 0.00999999977 : f32
      %38 = vector.broadcast %cst_30 : f32 to vector<128x96xf32>
      %39 = arith.mulf %38, %35 : vector<128x96xf32>
      %40 = arith.select %37, %35, %39 : vector<128x96xi1>, vector<128x96xf32>
      %c0_31 = arith.constant 0 : index
      %c0_32 = arith.constant 0 : index
      %41 = memref.load %arg2[%c0_31, %c0_32] : memref<3x3xf32, #tpu.memory_space<smem>>
      %42 = vector.extract_strided_slice %40 {offsets = [0, 0], sizes = [128, 32], strides = [1, 1]} : vector<128x96xf32> to vector<128x32xf32>
      %43 = vector.broadcast %41 : f32 to vector<128x32xf32>
      %44 = arith.mulf %43, %42 : vector<128x32xf32>
      %c1_33 = arith.constant 1 : index
      %c0_34 = arith.constant 0 : index
      %45 = memref.load %arg2[%c1_33, %c0_34] : memref<3x3xf32, #tpu.memory_space<smem>>
      %46 = vector.extract_strided_slice %40 {offsets = [0, 32], sizes = [128, 32], strides = [1, 1]} : vector<128x96xf32> to vector<128x32xf32>
      %47 = vector.broadcast %45 : f32 to vector<128x32xf32>
      %48 = arith.mulf %47, %46 : vector<128x32xf32>
      %49 = arith.addf %44, %48 : vector<128x32xf32>
      %c2_35 = arith.constant 2 : index
      %c0_36 = arith.constant 0 : index
      %50 = memref.load %arg2[%c2_35, %c0_36] : memref<3x3xf32, #tpu.memory_space<smem>>
      %51 = vector.extract_strided_slice %40 {offsets = [0, 64], sizes = [128, 32], strides = [1, 1]} : vector<128x96xf32> to vector<128x32xf32>
      %52 = vector.broadcast %50 : f32 to vector<128x32xf32>
      %53 = arith.mulf %52, %51 : vector<128x32xf32>
      %54 = arith.addf %49, %53 : vector<128x32xf32>
      %c0_37 = arith.constant 0 : index
      %c1_38 = arith.constant 1 : index
      %55 = memref.load %arg2[%c0_37, %c1_38] : memref<3x3xf32, #tpu.memory_space<smem>>
      %56 = vector.extract_strided_slice %40 {offsets = [0, 0], sizes = [128, 32], strides = [1, 1]} : vector<128x96xf32> to vector<128x32xf32>
      %57 = vector.broadcast %55 : f32 to vector<128x32xf32>
      %58 = arith.mulf %57, %56 : vector<128x32xf32>
      %c1_39 = arith.constant 1 : index
      %c1_40 = arith.constant 1 : index
      %59 = memref.load %arg2[%c1_39, %c1_40] : memref<3x3xf32, #tpu.memory_space<smem>>
      %60 = vector.extract_strided_slice %40 {offsets = [0, 32], sizes = [128, 32], strides = [1, 1]} : vector<128x96xf32> to vector<128x32xf32>
      %61 = vector.broadcast %59 : f32 to vector<128x32xf32>
      %62 = arith.mulf %61, %60 : vector<128x32xf32>
      %63 = arith.addf %58, %62 : vector<128x32xf32>
      %c2_41 = arith.constant 2 : index
      %c1_42 = arith.constant 1 : index
      %64 = memref.load %arg2[%c2_41, %c1_42] : memref<3x3xf32, #tpu.memory_space<smem>>
      %65 = vector.extract_strided_slice %40 {offsets = [0, 64], sizes = [128, 32], strides = [1, 1]} : vector<128x96xf32> to vector<128x32xf32>
      %66 = vector.broadcast %64 : f32 to vector<128x32xf32>
      %67 = arith.mulf %66, %65 : vector<128x32xf32>
      %68 = arith.addf %63, %67 : vector<128x32xf32>
      %c0_43 = arith.constant 0 : index
      %c2_44 = arith.constant 2 : index
      %69 = memref.load %arg2[%c0_43, %c2_44] : memref<3x3xf32, #tpu.memory_space<smem>>
      %70 = vector.extract_strided_slice %40 {offsets = [0, 0], sizes = [128, 32], strides = [1, 1]} : vector<128x96xf32> to vector<128x32xf32>
      %71 = vector.broadcast %69 : f32 to vector<128x32xf32>
      %72 = arith.mulf %71, %70 : vector<128x32xf32>
      %c1_45 = arith.constant 1 : index
      %c2_46 = arith.constant 2 : index
      %73 = memref.load %arg2[%c1_45, %c2_46] : memref<3x3xf32, #tpu.memory_space<smem>>
      %74 = vector.extract_strided_slice %40 {offsets = [0, 32], sizes = [128, 32], strides = [1, 1]} : vector<128x96xf32> to vector<128x32xf32>
      %75 = vector.broadcast %73 : f32 to vector<128x32xf32>
      %76 = arith.mulf %75, %74 : vector<128x32xf32>
      %77 = arith.addf %72, %76 : vector<128x32xf32>
      %c2_47 = arith.constant 2 : index
      %c2_48 = arith.constant 2 : index
      %78 = memref.load %arg2[%c2_47, %c2_48] : memref<3x3xf32, #tpu.memory_space<smem>>
      %79 = vector.extract_strided_slice %40 {offsets = [0, 64], sizes = [128, 32], strides = [1, 1]} : vector<128x96xf32> to vector<128x32xf32>
      %80 = vector.broadcast %78 : f32 to vector<128x32xf32>
      %81 = arith.mulf %80, %79 : vector<128x32xf32>
      %82 = arith.addf %77, %81 : vector<128x32xf32>
      %83 = tpu.concatenate %54, %68, %82 in 1 : vector<128x32xf32>, vector<128x32xf32>, vector<128x32xf32> -> vector<128x96xf32>
      %c0_49 = arith.constant 0 : index
      %c0_50 = arith.constant 0 : index
      %84 = vector.load %arg12[%c0_49, %c0_50] : memref<128x96xf32, #tpu.memory_space<vmem>>, vector<128x96xf32>
      %c0_51 = arith.constant 0 : index
      %c0_52 = arith.constant 0 : index
      %85 = vector.load %arg8[%c0_51, %c0_52] : memref<1x96xf32, #tpu.memory_space<vmem>>, vector<1x96xf32>
      %86 = vector.broadcast %85 : vector<1x96xf32> to vector<128x96xf32>
      %87 = arith.addf %84, %86 : vector<128x96xf32>
      %cst_53 = arith.constant 5.000000e-01 : f32
      %88 = vector.broadcast %cst_53 : f32 to vector<128x96xf32>
      %89 = arith.mulf %88, %87 : vector<128x96xf32>
      %cst_54 = arith.constant 5.000000e-01 : f32
      %90 = vector.broadcast %cst_54 : f32 to vector<128x96xf32>
      %91 = arith.mulf %90, %83 : vector<128x96xf32>
      %92 = arith.addf %89, %91 : vector<128x96xf32>
      %c0_55 = arith.constant 0 : index
      %c0_56 = arith.constant 0 : index
      %93 = vector.load %arg9[%c0_55, %c0_56] : memref<96x128xf32, #tpu.memory_space<vmem>>, vector<96x128xf32>
      %cst_57 = arith.constant dense<0.000000e+00> : vector<128x128xf32>
      %94 = tpu.matmul %92, %93, %cst_57 {dimension_numbers = #tpu.dot_dimension_numbers<[1], [0], [0], [1], [0, 0, 1, 1], [], []>} : vector<128x96xf32>, vector<96x128xf32>, vector<128x128xf32> -> vector<128x128xf32>
      %c0_58 = arith.constant 0 : index
      %c0_59 = arith.constant 0 : index
      %95 = vector.load %arg10[%c0_58, %c0_59] : memref<1x128xf32, #tpu.memory_space<vmem>>, vector<1x128xf32>
      %96 = vector.broadcast %95 : vector<1x128xf32> to vector<128x128xf32>
      %97 = arith.addf %94, %96 : vector<128x128xf32>
      %cst_60 = arith.constant 0.000000e+00 : f32
      %98 = vector.broadcast %cst_60 : f32 to vector<128x128xf32>
      %99 = arith.cmpf ogt, %97, %98 : vector<128x128xf32>
      %cst_61 = arith.constant 0.00999999977 : f32
      %100 = vector.broadcast %cst_61 : f32 to vector<128x128xf32>
      %101 = arith.mulf %100, %97 : vector<128x128xf32>
      %102 = arith.select %99, %97, %101 : vector<128x128xi1>, vector<128x128xf32>
      %c0_62 = arith.constant 0 : index
      %c0_63 = arith.constant 0 : index
      %103 = vector.load %arg11[%c0_62, %c0_63] : memref<128x128xf32, #tpu.memory_space<vmem>>, vector<128x128xf32>
      tpu.vector_store %arg11[%c0_62, %c0_63], %102 {strides = array<i32>} : memref<128x128xf32, #tpu.memory_space<vmem>>, vector<128x128xf32>,
    } else {
    }
    return
  }
  func.func @transform_0(%arg0: i32, %arg1: i32) -> (i32, i32) {
    %c0_i32 = arith.constant 0 : i32
    %c0_i32_0 = arith.constant 0 : i32
    %c0_i32_1 = arith.constant 0 : i32
    return %c0_i32, %c0_i32_0 : i32, i32
  }
  func.func @transform_1(%arg0: i32, %arg1: i32) -> (i32, i32) {
    %c0_i32 = arith.constant 0 : i32
    %c0_i32_0 = arith.constant 0 : i32
    return %arg0, %c0_i32 : i32, i32
  }
  func.func @transform_2(%arg0: i32, %arg1: i32) -> (i32, i32) {
    %c0_i32 = arith.constant 0 : i32
    %c0_i32_0 = arith.constant 0 : i32
    return %arg1, %c0_i32 : i32, i32
  }
  func.func @transform_3(%arg0: i32, %arg1: i32) -> (i32, i32, i32) {
    %c0_i32 = arith.constant 0 : i32
    %c0_i32_0 = arith.constant 0 : i32
    return %c0_i32, %arg0, %arg1 : i32, i32, i32
  }
  func.func @transform_4(%arg0: i32, %arg1: i32) -> (i32, i32) {
    %c0_i32 = arith.constant 0 : i32
    %c0_i32_0 = arith.constant 0 : i32
    %c0_i32_1 = arith.constant 0 : i32
    return %c0_i32, %c0_i32_0 : i32, i32
  }
  func.func @transform_5(%arg0: i32, %arg1: i32) -> (i32, i32) {
    %c0_i32 = arith.constant 0 : i32
    %c0_i32_0 = arith.constant 0 : i32
    %c0_i32_1 = arith.constant 0 : i32
    return %c0_i32, %c0_i32_0 : i32, i32
  }
  func.func @transform_6(%arg0: i32, %arg1: i32) -> (i32, i32) {
    %c0_i32 = arith.constant 0 : i32
    %c0_i32_0 = arith.constant 0 : i32
    %c0_i32_1 = arith.constant 0 : i32
    return %c0_i32, %c0_i32_0 : i32, i32
  }
  func.func @transform_7(%arg0: i32, %arg1: i32) -> (i32, i32) {
    %c0_i32 = arith.constant 0 : i32
    %c0_i32_0 = arith.constant 0 : i32
    %c0_i32_1 = arith.constant 0 : i32
    return %c0_i32, %c0_i32_0 : i32, i32
  }
  func.func @transform_8(%arg0: i32, %arg1: i32) -> (i32, i32) {
    %c0_i32 = arith.constant 0 : i32
    %c0_i32_0 = arith.constant 0 : i32
    %c0_i32_1 = arith.constant 0 : i32
    return %c0_i32, %c0_i32_0 : i32, i32
  }
  func.func @transform_9(%arg0: i32, %arg1: i32) -> (i32, i32) {
    %c0_i32 = arith.constant 0 : i32
    %c0_i32_0 = arith.constant 0 : i32
    return %arg0, %c0_i32 : i32, i32
  }
}

</mosaic_0001>

<llo_original>
// kernel: tpu_custom_call.1
$region0: #{tpu_custom_call.1}
  #allocation0 [shape = 'u32[]', space=smem, size = 0x4, offset = 0x4, fixed_abs, tag = 'smem constant byte address 0x4 - core index']
  #allocation1 [shape = 'u32[144,128]{1,0:T(1,128)}', space=vmem, size = 0x12000, scoped, tag = 'internal scratch']
  #allocation2 [shape = 'f32[128,96]{1,0:T(8,128)}', space=vmem, size = 0x10000, scoped, tag = 'scratch operand']
  #allocation17 [shape = 's32[]', space=sflag, size = 0x4, offset = 0, fixed_abs, tag = 'sflag constant byte address 0x0 - dummy sync flag']
  %s0 = inlined_call_operand.hbm [shape: f32[3,3], index: 0, kind: input, shape index: {}]
  %s1 = inlined_call_operand.vmem [shape: f32[512,16], index: 1, kind: input, shape index: {}]
  %s2 = inlined_call_operand.vmem [shape: f32[512,16], index: 2, kind: input, shape index: {}]
  %s3 = inlined_call_operand.hbm [shape: bf16[3,512,512], index: 3, kind: input, shape index: {}]
  %s4 = inlined_call_operand.hbm [shape: f32[16,96], index: 4, kind: input, shape index: {}]
  %s5 = inlined_call_operand.hbm [shape: f32[96,96], index: 5, kind: input, shape index: {}]
  %s6 = inlined_call_operand.hbm [shape: f32[1,96], index: 6, kind: input, shape index: {}]
  %s7 = inlined_call_operand.hbm [shape: f32[96,128], index: 7, kind: input, shape index: {}]
  %s8 = inlined_call_operand.hbm [shape: f32[1,128], index: 8, kind: input, shape index: {}]
  %s9 = inlined_call_operand.hbm [shape: f32[512,128], index: 9, kind: output, shape index: {}]
  %s10 = sld [smem:[#allocation0]]
  $region105: #{tpu_custom_call.1} parent=0
    _
  %s12 = ssub.s32 1, %s10
  %s13 = scalar_select 0, %s12, %s10
  $region1: #{tpu_custom_call.1} parent=0
    #allocation3 [shape = 'u8[2048]{0}', space=smem, size = 0x800, scoped, tag = 'input window, operand 0, single buffered']
    #allocation4 [shape = 's32[2]{0}', space=sflag, size = 0x8, scoped, tag = 'scoped memory for tpu_custom_call.1']
    #allocation5 [shape = 's32[2]{0}', space=sflag, size = 0x8, scoped, tag = 'scoped memory for tpu_custom_call.1']
    #allocation6 [shape = 's32[2]{0}', space=sflag, size = 0x8, scoped, tag = 'scoped memory for tpu_custom_call.1']
    #allocation7 [shape = 'u8[196608]{0}', space=vmem, size = 0x30000, scoped, tag = 'input window, operand 3']
    #allocation8 [shape = 'u8[8192]{0}', space=vmem, size = 0x2000, scoped, tag = 'input window, operand 4, single buffered']
    #allocation9 [shape = 's32[1]{0}', space=sflag, size = 0x4, scoped, tag = 'scoped memory for tpu_custom_call.1']
    #allocation10 [shape = 'u8[49152]{0}', space=vmem, size = 0xc000, scoped, tag = 'input window, operand 5, single buffered']
    #allocation11 [shape = 'u8[512]{0}', space=vmem, size = 0x400, scoped, tag = 'input window, operand 6, single buffered']
    #allocation12 [shape = 's32[1]{0}', space=sflag, size = 0x4, scoped, tag = 'scoped memory for tpu_custom_call.1']
    #allocation13 [shape = 'u8[49152]{0}', space=vmem, size = 0xc000, scoped, tag = 'input window, operand 7, single buffered']
    #allocation14 [shape = 'u8[512]{0}', space=vmem, size = 0x400, scoped, tag = 'input window, operand 8, single buffered']
    #allocation15 [shape = 's32[1]{0}', space=sflag, size = 0x4, scoped, tag = 'scoped memory for tpu_custom_call.1']
    #allocation16 [shape = 'u8[131072]{0}', space=vmem, size = 0x20000, scoped, tag = 'output window, operand 0']
    %14 = vsyncpa [#allocation6], 0
    %15 = vsyncpa [#allocation4], 0
    %s16 = scalar_lea.sflag [#allocation4], 1
    %17 = vsyncpa %s16, 0
    %18 = vsyncpa [#allocation9], 0
    %19 = vsyncpa [#allocation12], 0
    %20 = vsyncpa [#allocation15], 0
    %21 = vsyncpa [#allocation5], 0
    %s22 = scalar_lea.sflag [#allocation5], 1
    %23 = vsyncpa %s22, 0
    loop: start=0, step=1, limit=18
    $region2: #{tpu_custom_call.1} parent=1 // loop_pre_header
      _
    $region3: #{tpu_custom_call.1} parent=1 // loop_header
      %s25 = sphi 0, %s29
      %p26 = scmp.ge.s32.totalorder %s25, 18
      %s32 = sphi 0, %s44
      %s33 = sphi 0, %s40
      %s34 = sphi 0, %s32
      %s35 = sphi 0, %s33
      %s36 = sphi 0, %s34
      %s37 = sphi 0, %s35
      %s45 = sphi 0, %s45
      %s47 = sphi 0, %s45
      %s48 = sphi 0, %s47
      %s62 = sphi 0, %s48
      %s68 = sphi 0, %s70
      %s71 = sphi 0, %s68
      %s72 = sphi 0, %s71
      %s88 = sphi 0, %s72
      %s94 = sphi 0, %s96
      %s97 = sphi 0, %s94
      %s98 = sphi 0, %s97
      %s114 = sphi 0, %s98
      %s122 = sphi 0, %s124
      %s125 = sphi 0, %s122
      %s126 = sphi 0, %s125
      %s142 = sphi 0, %s126
      %s146 = sphi 0, %s146
      %s148 = sphi 0, %s146
      %s149 = sphi 0, %s148
      %s163 = sphi 0, %s149
      %s167 = sphi 0, %s167
      %s169 = sphi 0, %s167
      %s170 = sphi 0, %s169
      %s184 = sphi 0, %s170
      %s188 = sphi 0, %s188
      %s190 = sphi 0, %s188
      %s191 = sphi 0, %s190
      %s205 = sphi 0, %s191
      %s209 = sphi 0, %s209
      %s211 = sphi 0, %s209
      %s212 = sphi 0, %s211
      %s226 = sphi 0, %s212
      %s230 = sphi 0, %s230
      %s232 = sphi 0, %s230
      %s233 = sphi 0, %s232
      %s247 = sphi 0, %s233
      %s253 = sphi 0, %s255
      %s256 = sphi 0, %s253
      %s257 = sphi 0, %s256
      %s273 = sphi 0, %s257
    $region4: #{tpu_custom_call.1} parent=1 // loop_header_branch
      %28 = sbr.rel (%p26) target = $region8
    $region5: #{tpu_custom_call.1} parent=1 // loop_body
      %s30 = ssub.s32 %s25, 1
      %s31 = ssub.s32 %s25, 2
      %s38 = sadd.s32 1, %s33
      %p39 = scmp.ge.s32.totalorder %s38, 4
      %s40 = scalar_select %p39, 0, %s38
      %s41 = sadd.s32 1, %s32
      %s42 = scalar_select %p39, %s41, %s32
      %p43 = scmp.ge.s32.totalorder %s42, 4
      %s44 = scalar_select %p43, 0, %s42
      %s46 = sadd.s32 %s45, 1
      %p49 = scmp.eq.s32.totalorder %s25, 15
      %p50 = scmp.ne.s32.totalorder %s45, %s47
      %p51 = scmp.eq.s32.totalorder %s25, 0
      %p52 = por %p50, %p51
      %p53 = scmp.ne.s32.totalorder %s45, %s47
      %p54 = scmp.eq.s32.totalorder %s30, 15
      %p55 = por %p53, %p54
      %p56 = scmp.ne.s32.totalorder %s47, %s48
      %p57 = scmp.eq.s32.totalorder %s30, 0
      %p58 = por %p56, %p57
      %p59 = scmp.ne.s32.totalorder %s47, %s48
      %p60 = scmp.eq.s32.totalorder %s31, 15
      %p61 = por %p59, %p60
      %p63 = scmp.ne.s32.totalorder %s48, %s62
      %p64 = scmp.eq.s32.totalorder %s31, 0
      %p65 = por %p63, %p64
      %s66 = ssub.s32 %s32, %s44
      %p67 = scmp.eq.s32.totalorder %s66, 0
      %s69 = sadd.s32 %s68, 1
      %s70 = scalar_select %p67, %s68, %s69
      %p73 = pneg %p67
      %p74 = scmp.eq.s32.totalorder %s25, 15
      %p75 = por %p73, %p74
      %p76 = scmp.ne.s32.totalorder %s68, %s71
      %p77 = scmp.eq.s32.totalorder %s25, 0
      %p78 = por %p76, %p77
      %p79 = scmp.ne.s32.totalorder %s68, %s71
      %p80 = scmp.eq.s32.totalorder %s30, 15
      %p81 = por %p79, %p80
      %p82 = scmp.ne.s32.totalorder %s71, %s72
      %p83 = scmp.eq.s32.totalorder %s30, 0
      %p84 = por %p82, %p83
      %p85 = scmp.ne.s32.totalorder %s71, %s72
      %p86 = scmp.eq.s32.totalorder %s31, 15
      %p87 = por %p85, %p86
      %p89 = scmp.ne.s32.totalorder %s72, %s88
      %p90 = scmp.eq.s32.totalorder %s31, 0
      %p91 = por %p89, %p90
      %s92 = ssub.s32 %s33, %s40
      %p93 = scmp.eq.s32.totalorder %s92, 0
      %s95 = sadd.s32 %s94, 1
      %s96 = scalar_select %p93, %s94, %s95
      %p99 = pneg %p93
      %p100 = scmp.eq.s32.totalorder %s25, 15
      %p101 = por %p99, %p100
      %p102 = scmp.ne.s32.totalorder %s94, %s97
      %p103 = scmp.eq.s32.totalorder %s25, 0
      %p104 = por %p102, %p103
      %p105 = scmp.ne.s32.totalorder %s94, %s97
      %p106 = scmp.eq.s32.totalorder %s30, 15
      %p107 = por %p105, %p106
      %p108 = scmp.ne.s32.totalorder %s97, %s98
      %p109 = scmp.eq.s32.totalorder %s30, 0
      %p110 = por %p108, %p109
      %p111 = scmp.ne.s32.totalorder %s97, %s98
      %p112 = scmp.eq.s32.totalorder %s31, 15
      %p113 = por %p111, %p112
      %p115 = scmp.ne.s32.totalorder %s98, %s114
      %p116 = scmp.eq.s32.totalorder %s31, 0
      %p117 = por %p115, %p116
      %s118 = ssub.s32 %s32, %s44
      %s119 = ssub.s32 %s33, %s40
      %s120 = sor.u32 %s118, %s119
      %p121 = scmp.eq.s32.totalorder %s120, 0
      %s123 = sadd.s32 %s122, 1
      %s124 = scalar_select %p121, %s122, %s123
      %p127 = pneg %p121
      %p128 = scmp.eq.s32.totalorder %s25, 15
      %p129 = por %p127, %p128
      %p130 = scmp.ne.s32.totalorder %s122, %s125
      %p131 = scmp.eq.s32.totalorder %s25, 0
      %p132 = por %p130, %p131
      %p133 = scmp.ne.s32.totalorder %s122, %s125
      %p134 = scmp.eq.s32.totalorder %s30, 15
      %p135 = por %p133, %p134
      %p136 = scmp.ne.s32.totalorder %s125, %s126
      %p137 = scmp.eq.s32.totalorder %s30, 0
      %p138 = por %p136, %p137
      %p139 = scmp.ne.s32.totalorder %s125, %s126
      %p140 = scmp.eq.s32.totalorder %s31, 15
      %p141 = por %p139, %p140
      %p143 = scmp.ne.s32.totalorder %s126, %s142
      %p144 = scmp.eq.s32.totalorder %s31, 0
      %p145 = por %p143, %p144
      %s147 = sadd.s32 %s146, 1
      %p150 = scmp.eq.s32.totalorder %s25, 15
      %p151 = scmp.ne.s32.totalorder %s146, %s148
      %p152 = scmp.eq.s32.totalorder %s25, 0
      %p153 = por %p151, %p152
      %p154 = scmp.ne.s32.totalorder %s146, %s148
      %p155 = scmp.eq.s32.totalorder %s30, 15
      %p156 = por %p154, %p155
      %p157 = scmp.ne.s32.totalorder %s148, %s149
      %p158 = scmp.eq.s32.totalorder %s30, 0
      %p159 = por %p157, %p158
      %p160 = scmp.ne.s32.totalorder %s148, %s149
      %p161 = scmp.eq.s32.totalorder %s31, 15
      %p162 = por %p160, %p161
      %p164 = scmp.ne.s32.totalorder %s149, %s163
      %p165 = scmp.eq.s32.totalorder %s31, 0
      %p166 = por %p164, %p165
      %s168 = sadd.s32 %s167, 1
      %p171 = scmp.eq.s32.totalorder %s25, 15
      %p172 = scmp.ne.s32.totalorder %s167, %s169
      %p173 = scmp.eq.s32.totalorder %s25, 0
      %p174 = por %p172, %p173
      %p175 = scmp.ne.s32.totalorder %s167, %s169
      %p176 = scmp.eq.s32.totalorder %s30, 15
      %p177 = por %p175, %p176
      %p178 = scmp.ne.s32.totalorder %s169, %s170
      %p179 = scmp.eq.s32.totalorder %s30, 0
      %p180 = por %p178, %p179
      %p181 = scmp.ne.s32.totalorder %s169, %s170
      %p182 = scmp.eq.s32.totalorder %s31, 15
      %p183 = por %p181, %p182
      %p185 = scmp.ne.s32.totalorder %s170, %s184
      %p186 = scmp.eq.s32.totalorder %s31, 0
      %p187 = por %p185, %p186
      %s189 = sadd.s32 %s188, 1
      %p192 = scmp.eq.s32.totalorder %s25, 15
      %p193 = scmp.ne.s32.totalorder %s188, %s190
      %p194 = scmp.eq.s32.totalorder %s25, 0
      %p195 = por %p193, %p194
      %p196 = scmp.ne.s32.totalorder %s188, %s190
      %p197 = scmp.eq.s32.totalorder %s30, 15
      %p198 = por %p196, %p197
      %p199 = scmp.ne.s32.totalorder %s190, %s191
      %p200 = scmp.eq.s32.totalorder %s30, 0
      %p201 = por %p199, %p200
      %p202 = scmp.ne.s32.totalorder %s190, %s191
      %p203 = scmp.eq.s32.totalorder %s31, 15
      %p204 = por %p202, %p203
      %p206 = scmp.ne.s32.totalorder %s191, %s205
      %p207 = scmp.eq.s32.totalorder %s31, 0
      %p208 = por %p206, %p207
      %s210 = sadd.s32 %s209, 1
      %p213 = scmp.eq.s32.totalorder %s25, 15
      %p214 = scmp.ne.s32.totalorder %s209, %s211
      %p215 = scmp.eq.s32.totalorder %s25, 0
      %p216 = por %p214, %p215
      %p217 = scmp.ne.s32.totalorder %s209, %s211
      %p218 = scmp.eq.s32.totalorder %s30, 15
      %p219 = por %p217, %p218
      %p220 = scmp.ne.s32.totalorder %s211, %s212
      %p221 = scmp.eq.s32.totalorder %s30, 0
      %p222 = por %p220, %p221
      %p223 = scmp.ne.s32.totalorder %s211, %s212
      %p224 = scmp.eq.s32.totalorder %s31, 15
      %p225 = por %p223, %p224
      %p227 = scmp.ne.s32.totalorder %s212, %s226
      %p228 = scmp.eq.s32.totalorder %s31, 0
      %p229 = por %p227, %p228
      %s231 = sadd.s32 %s230, 1
      %p234 = scmp.eq.s32.totalorder %s25, 15
      %p235 = scmp.ne.s32.totalorder %s230, %s232
      %p236 = scmp.eq.s32.totalorder %s25, 0
      %p237 = por %p235, %p236
      %p238 = scmp.ne.s32.totalorder %s230, %s232
      %p239 = scmp.eq.s32.totalorder %s30, 15
      %p240 = por %p238, %p239
      %p241 = scmp.ne.s32.totalorder %s232, %s233
      %p242 = scmp.eq.s32.totalorder %s30, 0
      %p243 = por %p241, %p242
      %p244 = scmp.ne.s32.totalorder %s232, %s233
      %p245 = scmp.eq.s32.totalorder %s31, 15
      %p246 = por %p244, %p245
      %p248 = scmp.ne.s32.totalorder %s233, %s247
      %p249 = scmp.eq.s32.totalorder %s31, 0
      %p250 = por %p248, %p249
      %s251 = ssub.s32 %s32, %s44
      %p252 = scmp.eq.s32.totalorder %s251, 0
      %s254 = sadd.s32 %s253, 1
      %s255 = scalar_select %p252, %s253, %s254
      %p258 = pneg %p252
      %p259 = scmp.eq.s32.totalorder %s25, 15
      %p260 = por %p258, %p259
      %p261 = scmp.ne.s32.totalorder %s253, %s256
      %p262 = scmp.eq.s32.totalorder %s25, 0
      %p263 = por %p261, %p262
      %p264 = scmp.ne.s32.totalorder %s253, %s256
      %p265 = scmp.eq.s32.totalorder %s30, 15
      %p266 = por %p264, %p265
      %p267 = scmp.ne.s32.totalorder %s256, %s257
      %p268 = scmp.eq.s32.totalorder %s30, 0
      %p269 = por %p267, %p268
      %p270 = scmp.ne.s32.totalorder %s256, %s257
      %p271 = scmp.eq.s32.totalorder %s31, 15
      %p272 = por %p270, %p271
      %p274 = scmp.ne.s32.totalorder %s257, %s273
      %p275 = scmp.eq.s32.totalorder %s31, 0
      %p276 = por %p274, %p275
      %p277 = scmp.le.s32.totalorder 1, %s25
      %p278 = scmp.lt.s32.totalorder %s25, 17
      %p279 = pnand %p277, %p278
      %p280 = pneg %p279
      // Predicated region
      $region9: #{tpu_custom_call.1} parent=5 // pred_check
        _
      $region10: #{tpu_custom_call.1} parent=5 // pred_check_branch
        %282 = sbr.rel (%p279) target = $region12
      $region11: #{tpu_custom_call.1} parent=5 // pred_region
        %s283 = ssub.s32 %s25, 1
        // Predicated region
        $region13: #{tpu_custom_call.1} parent=11 // pred_check
          %p284 = pneg %p58
        $region14: #{tpu_custom_call.1} parent=11 // pred_check_branch
          %286 = sbr.rel (%p284) target = $region16
        $region15: #{tpu_custom_call.1} parent=11 // pred_region
          %s288 = ssub.s32 64, 64
          %289 = vsyncadd [#allocation6], %s288
          %292 = dma.hbm_to_smem %s0, 64, [#allocation3], [#allocation6]
        $region16: #{tpu_custom_call.1} parent=11 // pred_fallthru
          _
        // Predicated region
        $region17: #{tpu_custom_call.1} parent=11 // pred_check
          %p293 = pneg %p159
        $region18: #{tpu_custom_call.1} parent=11 // pred_check_branch
          %295 = sbr.rel (%p293) target = $region20
        $region19: #{tpu_custom_call.1} parent=11 // pred_region
          %s297 = ssub.s32 256, 256
          %298 = vsyncadd [#allocation9], %s297
          %s299 = sshll.u32 [#allocation8], 4
          %s300 = int_to_ptr.vmem [resolvable:$true] %s299
          %305 = dma.hbm_to_vmem [thread:$0]  %s4, 256, %s300, [#allocation9], 128, 128, 8
        $region20: #{tpu_custom_call.1} parent=11 // pred_fallthru
          _
        // Predicated region
        $region21: #{tpu_custom_call.1} parent=11 // pred_check
          %p306 = pneg %p180
        $region22: #{tpu_custom_call.1} parent=11 // pred_check_branch
          %308 = sbr.rel (%p306) target = $region24
        $region23: #{tpu_custom_call.1} parent=11 // pred_region
          %s310 = ssub.s32 1536, 1536
          %311 = vsyncadd [#allocation9], %s310
          %s312 = sshll.u32 [#allocation10], 4
          %s313 = int_to_ptr.vmem [resolvable:$true] %s312
          %318 = dma.hbm_to_vmem [thread:$0]  %s5, 1536, %s313, [#allocation9], 128, 128, 8
        $region24: #{tpu_custom_call.1} parent=11 // pred_fallthru
          _
        // Predicated region
        $region25: #{tpu_custom_call.1} parent=11 // pred_check
          %p319 = pneg %p201
        $region26: #{tpu_custom_call.1} parent=11 // pred_check_branch
          %321 = sbr.rel (%p319) target = $region28
        $region27: #{tpu_custom_call.1} parent=11 // pred_region
          %s323 = ssub.s32 16, 16
          %324 = vsyncadd [#allocation12], %s323
          %s326 = sshll.u32 [#allocation11], 4
          %s327 = int_to_ptr.vmem [resolvable:$true] %s326
          %329 = dma.hbm_to_vmem [thread:$0]  %s6, 16, %s327, [#allocation12]
        $region28: #{tpu_custom_call.1} parent=11 // pred_fallthru
          _
        // Predicated region
        $region29: #{tpu_custom_call.1} parent=11 // pred_check
          %p330 = pneg %p222
        $region30: #{tpu_custom_call.1} parent=11 // pred_check_branch
          %332 = sbr.rel (%p330) target = $region32
        $region31: #{tpu_custom_call.1} parent=11 // pred_region
          %s334 = ssub.s32 1536, 1536
          %335 = vsyncadd [#allocation12], %s334
          %s336 = sshll.u32 [#allocation13], 4
          %s337 = int_to_ptr.vmem [resolvable:$true] %s336
          %342 = dma.hbm_to_vmem [thread:$0]  %s7, 1536, %s337, [#allocation12], 128, 128, 8
        $region32: #{tpu_custom_call.1} parent=11 // pred_fallthru
          _
        // Predicated region
        $region33: #{tpu_custom_call.1} parent=11 // pred_check
          %p343 = pneg %p243
        $region34: #{tpu_custom_call.1} parent=11 // pred_check_branch
          %345 = sbr.rel (%p343) target = $region36
        $region35: #{tpu_custom_call.1} parent=11 // pred_region
          %s347 = ssub.s32 16, 16
          %348 = vsyncadd [#allocation15], %s347
          %s350 = sshll.u32 [#allocation14], 4
          %s351 = int_to_ptr.vmem [resolvable:$true] %s350
          %353 = dma.hbm_to_vmem [thread:$0]  %s8, 16, %s351, [#allocation15]
        $region36: #{tpu_custom_call.1} parent=11 // pred_fallthru
          _
      $region12: #{tpu_custom_call.1} parent=5 // pred_fallthru
        _
      %p354 = scmp.lt.s32.totalorder %s25, 16
      // Predicated region
      $region37: #{tpu_custom_call.1} parent=5 // pred_check
        %p355 = pneg %p354
      $region38: #{tpu_custom_call.1} parent=5 // pred_check_branch
        %357 = sbr.rel (%p355) target = $region40
      $region39: #{tpu_custom_call.1} parent=5 // pred_region
        // Predicated region
        $region41: #{tpu_custom_call.1} parent=39 // pred_check
          %p358 = pneg %p78
        $region42: #{tpu_custom_call.1} parent=39 // pred_check_branch
          %360 = sbr.rel (%p358) target = $region44
        $region43: #{tpu_custom_call.1} parent=39 // pred_region
          %s361 = smul.u32 16, %s32
          %p362 = scmp.lt.s32.totalorder %s361, 63
          %s363 = scalar_select %p362, %s361, 63
          %s364 = smul.addr %s363, 8
          %s365 = scalar_lea.vmem %s1, %s364
          %s366 = smul.u32 16, %s32
        $region44: #{tpu_custom_call.1} parent=39 // pred_fallthru
          _
        // Predicated region
        $region45: #{tpu_custom_call.1} parent=39 // pred_check
          %p367 = pneg %p104
        $region46: #{tpu_custom_call.1} parent=39 // pred_check_branch
          %369 = sbr.rel (%p367) target = $region48
        $region47: #{tpu_custom_call.1} parent=39 // pred_region
          %s370 = smul.u32 16, %s33
          %p371 = scmp.lt.s32.totalorder %s370, 63
          %s372 = scalar_select %p371, %s370, 63
          %s373 = smul.addr %s372, 8
          %s374 = scalar_lea.vmem %s2, %s373
          %s375 = smul.u32 16, %s33
        $region48: #{tpu_custom_call.1} parent=39 // pred_fallthru
          _
        // Predicated region
        $region49: #{tpu_custom_call.1} parent=39 // pred_check
          %p376 = pneg %p132
        $region50: #{tpu_custom_call.1} parent=39 // pred_check_branch
          %378 = sbr.rel (%p376) target = $region52
        $region51: #{tpu_custom_call.1} parent=39 // pred_region
          #allocation18 [shape = 'u32[6]{0}', space=smem, size = 0x18, scoped, tag = 'DMA stride descriptor']
          %s379 = sand.u32 %s122, 1
          %s380 = scalar_lea.sflag [#allocation4], %s379
          %s381 = sand.u32 %s122, 1
          %s382 = smul.addr %s381, 192
          %s383 = scalar_lea.vmem [#allocation7], %s382
          %s384 = smul.u32 16, %s32
          %s386 = ssub.s32 3072, 3072
          %387 = vsyncadd %s380, %s386
          %s388 = smul.addr %s384, 4
          %s389 = sadd.s32 %s33, %s388
          %s390 = smul.addr %s389, 64
          %s391 = scalar_lea.hbm %s3, %s390
          %s393 = sshll.u32 1, 14
          %s394 = sxor.u32 4294967295, %s393
          %s396 = sld [smem:[#allocation0]]
          %s397 = sadd.s32 2, %s396
          %s399 = sshll.u32 7, 26
          %s400 = sxor.u32 4294967295, %s399
          %s401 = sand.u32 0, %s400
          %s402 = sshll.u32 %s397, 26
          %s403 = sor.u32 %s401, %s402
          %s404 = sshll.u32 %s383, 4
          %s405 = int_to_ptr.vmem [resolvable:$true] %s404
          %411 = sst [smem:[#allocation18]] 16384
          %s412 = scalar_lea.smem [#allocation18], 1
          %413 = sst [smem:[%s412]] 1024
          %s414 = scalar_lea.smem [#allocation18], 2
          %415 = sst [smem:[%s414]] 16
          %s416 = scalar_lea.smem [#allocation18], 3
          %417 = sst [smem:[%s416]] 256
          %s418 = scalar_lea.smem [#allocation18], 4
          %419 = sst [smem:[%s418]] 64
          %s420 = scalar_lea.smem [#allocation18], 5
          %421 = sst [smem:[%s420]] 4
          %423 = dma.general %s391, 3072, %s405, %s380, [#allocation17], [#allocation18], %s403, 0
        $region52: #{tpu_custom_call.1} parent=39 // pred_fallthru
          _
      $region40: #{tpu_custom_call.1} parent=5 // pred_fallthru
        _
      %p424 = scmp.le.s32.totalorder 1, %s25
      %p425 = scmp.lt.s32.totalorder %s25, 17
      %p426 = pnand %p424, %p425
      %p427 = pneg %p426
      // Predicated region
      $region53: #{tpu_custom_call.1} parent=5 // pred_check
        _
      $region54: #{tpu_custom_call.1} parent=5 // pred_check_branch
        %429 = sbr.rel (%p426) target = $region56
      $region55: #{tpu_custom_call.1} parent=5 // pred_region
        %s430 = ssub.s32 %s25, 1
        // Predicated region
        $region57: #{tpu_custom_call.1} parent=55 // pred_check
          %p431 = pneg %p58
        $region58: #{tpu_custom_call.1} parent=55 // pred_check_branch
          %433 = sbr.rel (%p431) target = $region60
        $region59: #{tpu_custom_call.1} parent=55 // pred_region
          %434 = dma.done [#allocation6], 64
        $region60: #{tpu_custom_call.1} parent=55 // pred_fallthru
          _
        %s435 = sand.u32 %s125, 1
        %s436 = scalar_lea.sflag [#allocation4], %s435
        %s437 = sand.u32 %s125, 1
        %s438 = smul.addr %s437, 192
        %s439 = scalar_lea.vmem [#allocation7], %s438
        // Predicated region
        $region61: #{tpu_custom_call.1} parent=55 // pred_check
          %p440 = pneg %p138
        $region62: #{tpu_custom_call.1} parent=55 // pred_check_branch
          %442 = sbr.rel (%p440) target = $region64
        $region63: #{tpu_custom_call.1} parent=55 // pred_region
          %443 = dma.done %s436, 3072
        $region64: #{tpu_custom_call.1} parent=55 // pred_fallthru
          _
        // Predicated region
        $region65: #{tpu_custom_call.1} parent=55 // pred_check
          %p444 = pneg %p159
        $region66: #{tpu_custom_call.1} parent=55 // pred_check_branch
          %446 = sbr.rel (%p444) target = $region68
        $region67: #{tpu_custom_call.1} parent=55 // pred_region
          %447 = dma.done [#allocation9], 256
        $region68: #{tpu_custom_call.1} parent=55 // pred_fallthru
          _
        // Predicated region
        $region69: #{tpu_custom_call.1} parent=55 // pred_check
          %p448 = pneg %p180
        $region70: #{tpu_custom_call.1} parent=55 // pred_check_branch
          %450 = sbr.rel (%p448) target = $region72
        $region71: #{tpu_custom_call.1} parent=55 // pred_region
          %451 = dma.done [#allocation9], 1536
        $region72: #{tpu_custom_call.1} parent=55 // pred_fallthru
          _
        // Predicated region
        $region73: #{tpu_custom_call.1} parent=55 // pred_check
          %p452 = pneg %p201
        $region74: #{tpu_custom_call.1} parent=55 // pred_check_branch
          %454 = sbr.rel (%p452) target = $region76
        $region75: #{tpu_custom_call.1} parent=55 // pred_region
          %455 = dma.done [#allocation12], 16
        $region76: #{tpu_custom_call.1} parent=55 // pred_fallthru
          _
        // Predicated region
        $region77: #{tpu_custom_call.1} parent=55 // pred_check
          %p456 = pneg %p222
        $region78: #{tpu_custom_call.1} parent=55 // pred_check_branch
          %458 = sbr.rel (%p456) target = $region80
        $region79: #{tpu_custom_call.1} parent=55 // pred_region
          %459 = dma.done [#allocation12], 1536
        $region80: #{tpu_custom_call.1} parent=55 // pred_fallthru
          _
        // Predicated region
        $region81: #{tpu_custom_call.1} parent=55 // pred_check
          %p460 = pneg %p243
        $region82: #{tpu_custom_call.1} parent=55 // pred_check_branch
          %462 = sbr.rel (%p460) target = $region84
        $region83: #{tpu_custom_call.1} parent=55 // pred_region
          %463 = dma.done [#allocation15], 16
        $region84: #{tpu_custom_call.1} parent=55 // pred_fallthru
          _
        %464 = sfence
        %p465 = pneg %p58
        %p466 = pneg %p55
        %s467 = smul.u32 16, %s34
        %p468 = scmp.lt.s32.totalorder %s467, 63
        %s469 = scalar_select %p468, %s467, 63
        %s470 = smul.addr %s469, 8
        %s471 = scalar_lea.vmem %s1, %s470
        %p472 = pneg %p84
        %p473 = pneg %p81
        %s474 = smul.u32 16, %s35
        %p475 = scmp.lt.s32.totalorder %s474, 63
        %s476 = scalar_select %p475, %s474, 63
        %s477 = smul.addr %s476, 8
        %s478 = scalar_lea.vmem %s2, %s477
        %p479 = pneg %p110
        %p480 = pneg %p107
        %s481 = sand.u32 %s125, 1
        %s482 = scalar_lea.sflag [#allocation4], %s481
        %s483 = sand.u32 %s125, 1
        %s484 = smul.addr %s483, 192
        %s485 = scalar_lea.vmem [#allocation7], %s484
        %p486 = pneg %p138
        %p487 = pneg %p135
        %p488 = pneg %p159
        %p489 = pneg %p156
        %p490 = pneg %p180
        %p491 = pneg %p177
        %p492 = pneg %p201
        %p493 = pneg %p198
        %p494 = pneg %p222
        %p495 = pneg %p219
        %p496 = pneg %p243
        %p497 = pneg %p240
        %p498 = pneg %p269
        %p499 = pneg %p266
        %s500 = sand.u32 %s256, 1
        %s501 = scalar_lea.sflag [#allocation5], %s500
        %s502 = sand.u32 %s256, 1
        %s503 = smul.addr %s502, 128
        %s504 = scalar_lea.vmem [#allocation16], %s503
        %s505 = smul.u32 16, %s34
        %p506 = scmp.lt.s32.totalorder %s505, 63
        %s507 = scalar_select %p506, %s505, 63
        %s508 = smul.addr %s507, 8
        %s509 = scalar_lea.vmem %s1, %s508
        %s510 = smul.u32 16, %s34
        %s511 = smul.u32 16, %s35
        %p512 = scmp.lt.s32.totalorder %s511, 63
        %s513 = scalar_select %p512, %s511, 63
        %s514 = smul.addr %s513, 8
        %s515 = scalar_lea.vmem %s2, %s514
        %s516 = smul.u32 16, %s35
        %s517 = smul.u32 16, %s34
        %s518 = smul.u32 16, %s34
        %p520 = scmp.eq.s32.totalorder %s35, 0
        // Predicated region
        $region85: #{tpu_custom_call.1} parent=55 // pred_check
          %p521 = pneg %p520
        $region86: #{tpu_custom_call.1} parent=55 // pred_check_branch
          %523 = sbr.rel (%p521) target = $region88
        $region87: #{tpu_custom_call.1} parent=55 // pred_region
          %vm524 = vcmask 785408
          %525 = vst.msk [vmem:[#allocation2] sm:$0xff] %vm524, 0.0
          %526 = vst.msk [vmem:[#allocation2 + $0x8] sm:$0xff] %vm524, 0.0
          %527 = vst.msk [vmem:[#allocation2 + $0x10] sm:$0xff] %vm524, 0.0
          %528 = vst.msk [vmem:[#allocation2 + $0x18] sm:$0xff] %vm524, 0.0
          %529 = vst.msk [vmem:[#allocation2 + $0x20] sm:$0xff] %vm524, 0.0
          %530 = vst.msk [vmem:[#allocation2 + $0x28] sm:$0xff] %vm524, 0.0
          %531 = vst.msk [vmem:[#allocation2 + $0x30] sm:$0xff] %vm524, 0.0
          %532 = vst.msk [vmem:[#allocation2 + $0x38] sm:$0xff] %vm524, 0.0
          %533 = vst.msk [vmem:[#allocation2 + $0x40] sm:$0xff] %vm524, 0.0
          %534 = vst.msk [vmem:[#allocation2 + $0x48] sm:$0xff] %vm524, 0.0
          %535 = vst.msk [vmem:[#allocation2 + $0x50] sm:$0xff] %vm524, 0.0
          %536 = vst.msk [vmem:[#allocation2 + $0x58] sm:$0xff] %vm524, 0.0
          %537 = vst.msk [vmem:[#allocation2 + $0x60] sm:$0xff] %vm524, 0.0
          %538 = vst.msk [vmem:[#allocation2 + $0x68] sm:$0xff] %vm524, 0.0
          %539 = vst.msk [vmem:[#allocation2 + $0x70] sm:$0xff] %vm524, 0.0
          %540 = vst.msk [vmem:[#allocation2 + $0x78] sm:$0xff] %vm524, 0.0
        $region88: #{tpu_custom_call.1} parent=55 // pred_fallthru
          _
        %v541 = vld [vmem:[%s515] sm:$0xff]
        %v542 = vld [vmem:[%s515 + $0x8] sm:$0xff]
        %v543 = vld [vmem:[%s515 + $0x10] sm:$0xff]
        %v544 = vld [vmem:[%s515 + $0x18] sm:$0xff]
        %v545 = vld [vmem:[%s515 + $0x20] sm:$0xff]
        %v546 = vld [vmem:[%s515 + $0x28] sm:$0xff]
        %v547 = vld [vmem:[%s515 + $0x30] sm:$0xff]
        %v548 = vld [vmem:[%s515 + $0x38] sm:$0xff]
        %v549 = vld [vmem:[%s515 + $0x40] sm:$0xff]
        %v550 = vld [vmem:[%s515 + $0x48] sm:$0xff]
        %v551 = vld [vmem:[%s515 + $0x50] sm:$0xff]
        %v552 = vld [vmem:[%s515 + $0x58] sm:$0xff]
        %v553 = vld [vmem:[%s515 + $0x60] sm:$0xff]
        %v554 = vld [vmem:[%s515 + $0x68] sm:$0xff]
        %v555 = vld [vmem:[%s515 + $0x70] sm:$0xff]
        %v556 = vld [vmem:[%s515 + $0x78] sm:$0xff]
        %v557 = vld [vmem:[#allocation8] sm:$0xff]
        %v558 = vld [vmem:[#allocation8 + $0x8] sm:$0xff]
        %vm559 = vcmask 130048
        %v561 = vsel %vm559, %v541, 0
        %v564 = vsel %vm559, %v542, 0
        %v567 = vsel %vm559, %v543, 0
        %v570 = vsel %vm559, %v544, 0
        %v573 = vsel %vm559, %v545, 0
        %v576 = vsel %vm559, %v546, 0
        %v579 = vsel %vm559, %v547, 0
        %v582 = vsel %vm559, %v548, 0
        %v585 = vsel %vm559, %v549, 0
        %v588 = vsel %vm559, %v550, 0
        %v591 = vsel %vm559, %v551, 0
        %v594 = vsel %vm559, %v552, 0
        %v597 = vsel %vm559, %v553, 0
        %v600 = vsel %vm559, %v554, 0
        %v603 = vsel %vm559, %v555, 0
        %v606 = vsel %vm559, %v556, 0
        %608 = vmatprep.subr.mxu0 0.0
        %609 = vmatpush1.msra.mxu0 %v557
        %610 = vmatprep.subr.mxu0 0.0
        %611 = vmatpush1.msra.mxu0 %v558
        %612 = vmatprep.subr.mxu0 0.0
        %613 = vmatpush1.msra.mxu0 0.0
        %614 = vmatprep.subr.mxu0 0.0
        %615 = vmatpush1.msra.mxu0 0.0
        %616 = vmatprep.subr.mxu0 0.0
        %617 = vmatpush1.msra.mxu0 0.0
        %618 = vmatprep.subr.mxu0 0.0
        %619 = vmatpush1.msra.mxu0 0.0
        %620 = vmatprep.subr.mxu0 0.0
        %621 = vmatpush1.msra.mxu0 0.0
        %622 = vmatprep.subr.mxu0 0.0
        %623 = vmatpush1.msra.mxu0 0.0
        %624 = vmatprep.subr.mxu0 0.0
        %625 = vmatpush1.msra.mxu0 0.0
        %626 = vmatprep.subr.mxu0 0.0
        %627 = vmatpush1.msra.mxu0 0.0
        %628 = vmatprep.subr.mxu0 0.0
        %629 = vmatpush1.msra.mxu0 0.0
        %630 = vmatprep.subr.mxu0 0.0
        %631 = vmatpush1.msra.mxu0 0.0
        %632 = vmatprep.subr.mxu0 0.0
        %633 = vmatpush1.msra.mxu0 0.0
        %634 = vmatprep.subr.mxu0 0.0
        %635 = vmatpush1.msra.mxu0 0.0
        %636 = vmatprep.subr.mxu0 0.0
        %637 = vmatpush1.msra.mxu0 0.0
        %638 = vmatprep.subr.mxu0 0.0
        %639 = vmatpush1.msra.mxu0 0.0
        %640 = vmatprep.subr.mxu0 0.0
        %641 = vmatpush1.msra.mxu0 0.0
        %642 = vmatprep.subr.mxu0 0.0
        %643 = vmatpush1.msra.mxu0 0.0
        %644 = vmatprep.subr.mxu0 0.0
        %645 = vmatpush1.msra.mxu0 0.0
        %646 = vmatprep.subr.mxu0 0.0
        %647 = vmatpush1.msra.mxu0 0.0
        %648 = vmatprep.subr.mxu0 0.0
        %649 = vmatpush1.msra.mxu0 0.0
        %650 = vmatprep.subr.mxu0 0.0
        %651 = vmatpush1.msra.mxu0 0.0
        %652 = vmatprep.subr.mxu0 0.0
        %653 = vmatpush1.msra.mxu0 0.0
        %654 = vmatprep.subr.mxu0 0.0
        %655 = vmatpush1.msra.mxu0 0.0
        %656 = vmatprep.subr.mxu0 0.0
        %657 = vmatpush1.msra.mxu0 0.0
        %658 = vmatprep.subr.mxu0 0.0
        %659 = vmatpush1.msra.mxu0 0.0
        %660 = vmatprep.subr.mxu0 0.0
        %661 = vmatpush1.msra.mxu0 0.0
        %662 = vmatprep.subr.mxu0 0.0
        %663 = vmatpush1.msra.mxu0 0.0
        %664 = vmatprep.subr.mxu0 0.0
        %665 = vmatpush1.msra.mxu0 0.0
        %666 = vmatprep.subr.mxu0 0.0
        %667 = vmatpush1.msra.mxu0 0.0
        %668 = vmatprep.subr.mxu0 0.0
        %669 = vmatpush1.msra.mxu0 0.0
        %670 = vmatprep.subr.mxu0 0.0
        %671 = vmatpush1.msra.mxu0 0.0
        %672 = vmatprep.mubr.f32.mxu0 0.0
        %673 = vmatmul.mubr.f32.gmra.mrb[0].mxu0 %v561
        %v674 = vpop.f32.mrb[0].mxu0
        %v675 = vadd.f32 0.0, %v674
        %v676 = vpop.f32.mrb[0].mxu0
        %677 = vmatprep.mubr.f32.mxu0 0.0
        %678 = vmatmul.mubr.f32.gmra.mrb[0].mxu0 %v564
        %v679 = vpop.f32.mrb[0].mxu0
        %v680 = vadd.f32 0.0, %v679
        %v681 = vpop.f32.mrb[0].mxu0
        %682 = vmatprep.mubr.f32.mxu0 0.0
        %683 = vmatmul.mubr.f32.gmra.mrb[0].mxu0 %v567
        %v684 = vpop.f32.mrb[0].mxu0
        %v685 = vadd.f32 0.0, %v684
        %v686 = vpop.f32.mrb[0].mxu0
        %687 = vmatprep.mubr.f32.mxu0 0.0
        %688 = vmatmul.mubr.f32.gmra.mrb[0].mxu0 %v570
        %v689 = vpop.f32.mrb[0].mxu0
        %v690 = vadd.f32 0.0, %v689
        %v691 = vpop.f32.mrb[0].mxu0
        %692 = vmatprep.mubr.f32.mxu0 0.0
        %693 = vmatmul.mubr.f32.gmra.mrb[0].mxu0 %v573
        %v694 = vpop.f32.mrb[0].mxu0
        %v695 = vadd.f32 0.0, %v694
        %v696 = vpop.f32.mrb[0].mxu0
        %697 = vmatprep.mubr.f32.mxu0 0.0
        %698 = vmatmul.mubr.f32.gmra.mrb[0].mxu0 %v576
        %v699 = vpop.f32.mrb[0].mxu0
        %v700 = vadd.f32 0.0, %v699
        %v701 = vpop.f32.mrb[0].mxu0
        %702 = vmatprep.mubr.f32.mxu0 0.0
        %703 = vmatmul.mubr.f32.gmra.mrb[0].mxu0 %v579
        %v704 = vpop.f32.mrb[0].mxu0
        %v705 = vadd.f32 0.0, %v704
        %v706 = vpop.f32.mrb[0].mxu0
        %707 = vmatprep.mubr.f32.mxu0 0.0
        %708 = vmatmul.mubr.f32.gmra.mrb[0].mxu0 %v582
        %v709 = vpop.f32.mrb[0].mxu0
        %v710 = vadd.f32 0.0, %v709
        %v711 = vpop.f32.mrb[0].mxu0
        %712 = vmatprep.mubr.f32.mxu0 0.0
        %713 = vmatmul.mubr.f32.gmra.mrb[0].mxu0 %v585
        %v714 = vpop.f32.mrb[0].mxu0
        %v715 = vadd.f32 0.0, %v714
        %v716 = vpop.f32.mrb[0].mxu0
        %717 = vmatprep.mubr.f32.mxu0 0.0
        %718 = vmatmul.mubr.f32.gmra.mrb[0].mxu0 %v588
        %v719 = vpop.f32.mrb[0].mxu0
        %v720 = vadd.f32 0.0, %v719
        %v721 = vpop.f32.mrb[0].mxu0
        %722 = vmatprep.mubr.f32.mxu0 0.0
        %723 = vmatmul.mubr.f32.gmra.mrb[0].mxu0 %v591
        %v724 = vpop.f32.mrb[0].mxu0
        %v725 = vadd.f32 0.0, %v724
        %v726 = vpop.f32.mrb[0].mxu0
        %727 = vmatprep.mubr.f32.mxu0 0.0
        %728 = vmatmul.mubr.f32.gmra.mrb[0].mxu0 %v594
        %v729 = vpop.f32.mrb[0].mxu0
        %v730 = vadd.f32 0.0, %v729
        %v731 = vpop.f32.mrb[0].mxu0
        %732 = vmatprep.mubr.f32.mxu0 0.0
        %733 = vmatmul.mubr.f32.gmra.mrb[0].mxu0 %v597
        %v734 = vpop.f32.mrb[0].mxu0
        %v735 = vadd.f32 0.0, %v734
        %v736 = vpop.f32.mrb[0].mxu0
        %737 = vmatprep.mubr.f32.mxu0 0.0
        %738 = vmatmul.mubr.f32.gmra.mrb[0].mxu0 %v600
        %v739 = vpop.f32.mrb[0].mxu0
        %v740 = vadd.f32 0.0, %v739
        %v741 = vpop.f32.mrb[0].mxu0
        %742 = vmatprep.mubr.f32.mxu0 0.0
        %743 = vmatmul.mubr.f32.gmra.mrb[0].mxu0 %v603
        %v744 = vpop.f32.mrb[0].mxu0
        %v745 = vadd.f32 0.0, %v744
        %v746 = vpop.f32.mrb[0].mxu0
        %747 = vmatprep.mubr.f32.mxu0 0.0
        %748 = vmatmul.mubr.f32.gmra.mrb[0].mxu0 %v606
        %v749 = vpop.f32.mrb[0].mxu0
        %v750 = vadd.f32 0.0, %v749
        %v751 = vpop.f32.mrb[0].mxu0
        %752 = vdwg.mxu0
        %vm753 = vcmp.gt.f32.partialorder %v675, 0.0
        %vm754 = vcmp.gt.f32.partialorder %v680, 0.0
        %vm755 = vcmp.gt.f32.partialorder %v685, 0.0
        %vm756 = vcmp.gt.f32.partialorder %v690, 0.0
        %vm757 = vcmp.gt.f32.partialorder %v695, 0.0
        %vm758 = vcmp.gt.f32.partialorder %v700, 0.0
        %vm759 = vcmp.gt.f32.partialorder %v705, 0.0
        %vm760 = vcmp.gt.f32.partialorder %v710, 0.0
        %vm761 = vcmp.gt.f32.partialorder %v715, 0.0
        %vm762 = vcmp.gt.f32.partialorder %v720, 0.0
        %vm763 = vcmp.gt.f32.partialorder %v725, 0.0
        %vm764 = vcmp.gt.f32.partialorder %v730, 0.0
        %vm765 = vcmp.gt.f32.partialorder %v735, 0.0
        %vm766 = vcmp.gt.f32.partialorder %v740, 0.0
        %vm767 = vcmp.gt.f32.partialorder %v745, 0.0
        %vm768 = vcmp.gt.f32.partialorder %v750, 0.0
        %v769 = vmul.f32 %v675, 0.01
        %v770 = vmul.f32 %v680, 0.01
        %v771 = vmul.f32 %v685, 0.01
        %v772 = vmul.f32 %v690, 0.01
        %v773 = vmul.f32 %v695, 0.01
        %v774 = vmul.f32 %v700, 0.01
        %v775 = vmul.f32 %v705, 0.01
        %v776 = vmul.f32 %v710, 0.01
        %v777 = vmul.f32 %v715, 0.01
        %v778 = vmul.f32 %v720, 0.01
        %v779 = vmul.f32 %v725, 0.01
        %v780 = vmul.f32 %v730, 0.01
        %v781 = vmul.f32 %v735, 0.01
        %v782 = vmul.f32 %v740, 0.01
        %v783 = vmul.f32 %v745, 0.01
        %v784 = vmul.f32 %v750, 0.01
        %v785 = vsel %vm753, %v675, %v769
        %v786 = vsel %vm754, %v680, %v770
        %v787 = vsel %vm755, %v685, %v771
        %v788 = vsel %vm756, %v690, %v772
        %v789 = vsel %vm757, %v695, %v773
        %v790 = vsel %vm758, %v700, %v774
        %v791 = vsel %vm759, %v705, %v775
        %v792 = vsel %vm760, %v710, %v776
        %v793 = vsel %vm761, %v715, %v777
        %v794 = vsel %vm762, %v720, %v778
        %v795 = vsel %vm763, %v725, %v779
        %v796 = vsel %vm764, %v730, %v780
        %v797 = vsel %vm765, %v735, %v781
        %v798 = vsel %vm766, %v740, %v782
        %v799 = vsel %vm767, %v745, %v783
        %v800 = vsel %vm768, %v750, %v784
        %v801 = vld [vmem:[#allocation10] sm:$0xff]
        %v802 = vld [vmem:[#allocation10 + $0x8] sm:$0xff]
        %v803 = vld [vmem:[#allocation10 + $0x10] sm:$0xff]
        %v804 = vld [vmem:[#allocation10 + $0x18] sm:$0xff]
        %v805 = vld [vmem:[#allocation10 + $0x20] sm:$0xff]
        %v806 = vld [vmem:[#allocation10 + $0x28] sm:$0xff]
        %v807 = vld [vmem:[#allocation10 + $0x30] sm:$0xff]
        %v808 = vld [vmem:[#allocation10 + $0x38] sm:$0xff]
        %v809 = vld [vmem:[#allocation10 + $0x40] sm:$0xff]
        %v810 = vld [vmem:[#allocation10 + $0x48] sm:$0xff]
        %v811 = vld [vmem:[#allocation10 + $0x50] sm:$0xff]
        %v812 = vld [vmem:[#allocation10 + $0x58] sm:$0xff]
        %vm813 = vcmask 785408
        %v815 = vsel %vm813, %v785, 0
        %v818 = vsel %vm813, %v786, 0
        %v821 = vsel %vm813, %v787, 0
        %v824 = vsel %vm813, %v788, 0
        %v827 = vsel %vm813, %v789, 0
        %v830 = vsel %vm813, %v790, 0
        %v833 = vsel %vm813, %v791, 0
        %v836 = vsel %vm813, %v792, 0
        %v839 = vsel %vm813, %v793, 0
        %v842 = vsel %vm813, %v794, 0
        %v845 = vsel %vm813, %v795, 0
        %v848 = vsel %vm813, %v796, 0
        %v851 = vsel %vm813, %v797, 0
        %v854 = vsel %vm813, %v798, 0
        %v857 = vsel %vm813, %v799, 0
        %v860 = vsel %vm813, %v800, 0
        %862 = vmatprep.subr.mxu0 0.0
        %863 = vmatpush1.msra.mxu0 %v801
        %864 = vmatprep.subr.mxu0 0.0
        %865 = vmatpush1.msra.mxu0 %v802
        %866 = vmatprep.subr.mxu0 0.0
        %867 = vmatpush1.msra.mxu0 %v803
        %868 = vmatprep.subr.mxu0 0.0
        %869 = vmatpush1.msra.mxu0 %v804
        %870 = vmatprep.subr.mxu0 0.0
        %871 = vmatpush1.msra.mxu0 %v805
        %872 = vmatprep.subr.mxu0 0.0
        %873 = vmatpush1.msra.mxu0 %v806
        %874 = vmatprep.subr.mxu0 0.0
        %875 = vmatpush1.msra.mxu0 %v807
        %876 = vmatprep.subr.mxu0 0.0
        %877 = vmatpush1.msra.mxu0 %v808
        %878 = vmatprep.subr.mxu0 0.0
        %879 = vmatpush1.msra.mxu0 %v809
        %880 = vmatprep.subr.mxu0 0.0
        %881 = vmatpush1.msra.mxu0 %v810
        %882 = vmatprep.subr.mxu0 0.0
        %883 = vmatpush1.msra.mxu0 %v811
        %884 = vmatprep.subr.mxu0 0.0
        %885 = vmatpush1.msra.mxu0 %v812
        %886 = vmatprep.subr.mxu0 0.0
        %887 = vmatpush1.msra.mxu0 0.0
        %888 = vmatprep.subr.mxu0 0.0
        %889 = vmatpush1.msra.mxu0 0.0
        %890 = vmatprep.subr.mxu0 0.0
        %891 = vmatpush1.msra.mxu0 0.0
        %892 = vmatprep.subr.mxu0 0.0
        %893 = vmatpush1.msra.mxu0 0.0
        %894 = vmatprep.subr.mxu0 0.0
        %895 = vmatpush1.msra.mxu0 0.0
        %896 = vmatprep.subr.mxu0 0.0
        %897 = vmatpush1.msra.mxu0 0.0
        %898 = vmatprep.subr.mxu0 0.0
        %899 = vmatpush1.msra.mxu0 0.0
        %900 = vmatprep.subr.mxu0 0.0
        %901 = vmatpush1.msra.mxu0 0.0
        %902 = vmatprep.subr.mxu0 0.0
        %903 = vmatpush1.msra.mxu0 0.0
        %904 = vmatprep.subr.mxu0 0.0
        %905 = vmatpush1.msra.mxu0 0.0
        %906 = vmatprep.subr.mxu0 0.0
        %907 = vmatpush1.msra.mxu0 0.0
        %908 = vmatprep.subr.mxu0 0.0
        %909 = vmatpush1.msra.mxu0 0.0
        %910 = vmatprep.subr.mxu0 0.0
        %911 = vmatpush1.msra.mxu0 0.0
        %912 = vmatprep.subr.mxu0 0.0
        %913 = vmatpush1.msra.mxu0 0.0
        %914 = vmatprep.subr.mxu0 0.0
        %915 = vmatpush1.msra.mxu0 0.0
        %916 = vmatprep.subr.mxu0 0.0
        %917 = vmatpush1.msra.mxu0 0.0
        %918 = vmatprep.subr.mxu0 0.0
        %919 = vmatpush1.msra.mxu0 0.0
        %920 = vmatprep.subr.mxu0 0.0
        %921 = vmatpush1.msra.mxu0 0.0
        %922 = vmatprep.subr.mxu0 0.0
        %923 = vmatpush1.msra.mxu0 0.0
        %924 = vmatprep.subr.mxu0 0.0
        %925 = vmatpush1.msra.mxu0 0.0
        %926 = vmatprep.mubr.f32.mxu0 0.0
        %927 = vmatmul.mubr.f32.gmra.mrb[0].mxu0 %v815
        %v928 = vpop.f32.mrb[0].mxu0
        %v929 = vadd.f32 0.0, %v928
        %v930 = vpop.f32.mrb[0].mxu0
        %931 = vmatprep.mubr.f32.mxu0 0.0
        %932 = vmatmul.mubr.f32.gmra.mrb[0].mxu0 %v818
        %v933 = vpop.f32.mrb[0].mxu0
        %v934 = vadd.f32 0.0, %v933
        %v935 = vpop.f32.mrb[0].mxu0
        %936 = vmatprep.mubr.f32.mxu0 0.0
        %937 = vmatmul.mubr.f32.gmra.mrb[0].mxu0 %v821
        %v938 = vpop.f32.mrb[0].mxu0
        %v939 = vadd.f32 0.0, %v938
        %v940 = vpop.f32.mrb[0].mxu0
        %941 = vmatprep.mubr.f32.mxu0 0.0
        %942 = vmatmul.mubr.f32.gmra.mrb[0].mxu0 %v824
        %v943 = vpop.f32.mrb[0].mxu0
        %v944 = vadd.f32 0.0, %v943
        %v945 = vpop.f32.mrb[0].mxu0
        %946 = vmatprep.mubr.f32.mxu0 0.0
        %947 = vmatmul.mubr.f32.gmra.mrb[0].mxu0 %v827
        %v948 = vpop.f32.mrb[0].mxu0
        %v949 = vadd.f32 0.0, %v948
        %v950 = vpop.f32.mrb[0].mxu0
        %951 = vmatprep.mubr.f32.mxu0 0.0
        %952 = vmatmul.mubr.f32.gmra.mrb[0].mxu0 %v830
        %v953 = vpop.f32.mrb[0].mxu0
        %v954 = vadd.f32 0.0, %v953
        %v955 = vpop.f32.mrb[0].mxu0
        %956 = vmatprep.mubr.f32.mxu0 0.0
        %957 = vmatmul.mubr.f32.gmra.mrb[0].mxu0 %v833
        %v958 = vpop.f32.mrb[0].mxu0
        %v959 = vadd.f32 0.0, %v958
        %v960 = vpop.f32.mrb[0].mxu0
        %961 = vmatprep.mubr.f32.mxu0 0.0
        %962 = vmatmul.mubr.f32.gmra.mrb[0].mxu0 %v836
        %v963 = vpop.f32.mrb[0].mxu0
        %v964 = vadd.f32 0.0, %v963
        %v965 = vpop.f32.mrb[0].mxu0
        %966 = vmatprep.mubr.f32.mxu0 0.0
        %967 = vmatmul.mubr.f32.gmra.mrb[0].mxu0 %v839
        %v968 = vpop.f32.mrb[0].mxu0
        %v969 = vadd.f32 0.0, %v968
        %v970 = vpop.f32.mrb[0].mxu0
        %971 = vmatprep.mubr.f32.mxu0 0.0
        %972 = vmatmul.mubr.f32.gmra.mrb[0].mxu0 %v842
        %v973 = vpop.f32.mrb[0].mxu0
        %v974 = vadd.f32 0.0, %v973
        %v975 = vpop.f32.mrb[0].mxu0
        %976 = vmatprep.mubr.f32.mxu0 0.0
        %977 = vmatmul.mubr.f32.gmra.mrb[0].mxu0 %v845
        %v978 = vpop.f32.mrb[0].mxu0
        %v979 = vadd.f32 0.0, %v978
        %v980 = vpop.f32.mrb[0].mxu0
        %981 = vmatprep.mubr.f32.mxu0 0.0
        %982 = vmatmul.mubr.f32.gmra.mrb[0].mxu0 %v848
        %v983 = vpop.f32.mrb[0].mxu0
        %v984 = vadd.f32 0.0, %v983
        %v985 = vpop.f32.mrb[0].mxu0
        %986 = vmatprep.mubr.f32.mxu0 0.0
        %987 = vmatmul.mubr.f32.gmra.mrb[0].mxu0 %v851
        %v988 = vpop.f32.mrb[0].mxu0
        %v989 = vadd.f32 0.0, %v988
        %v990 = vpop.f32.mrb[0].mxu0
        %991 = vmatprep.mubr.f32.mxu0 0.0
        %992 = vmatmul.mubr.f32.gmra.mrb[0].mxu0 %v854
        %v993 = vpop.f32.mrb[0].mxu0
        %v994 = vadd.f32 0.0, %v993
        %v995 = vpop.f32.mrb[0].mxu0
        %996 = vmatprep.mubr.f32.mxu0 0.0
        %997 = vmatmul.mubr.f32.gmra.mrb[0].mxu0 %v857
        %v998 = vpop.f32.mrb[0].mxu0
        %v999 = vadd.f32 0.0, %v998
        %v1000 = vpop.f32.mrb[0].mxu0
        %1001 = vmatprep.mubr.f32.mxu0 0.0
        %1002 = vmatmul.mubr.f32.gmra.mrb[0].mxu0 %v860
        %v1003 = vpop.f32.mrb[0].mxu0
        %v1004 = vadd.f32 0.0, %v1003
        %v1005 = vpop.f32.mrb[0].mxu0
        %1006 = vdwg.mxu0
        %v1007 = vpack.c.bf16 %v934, %v929
        %v1008 = vpack.c.bf16 %v944, %v939
        %v1009 = vpack.c.bf16 %v954, %v949
        %v1010 = vpack.c.bf16 %v964, %v959
        %v1011 = vpack.c.bf16 %v974, %v969
        %v1012 = vpack.c.bf16 %v984, %v979
        %v1013 = vpack.c.bf16 %v994, %v989
        %v1014 = vpack.c.bf16 %v1004, %v999
        %v1015 = vld [vmem:[%s439] sm:$0xf]
        %v1016 = vld [vmem:[%s439 + $0x4] sm:$0xf]
        %v1017 = vld [vmem:[%s439 + $0x8] sm:$0xf]
        %v1018 = vld [vmem:[%s439 + $0xc] sm:$0xf]
        %v1019 = vld [vmem:[%s439 + $0x10] sm:$0xf]
        %v1020 = vld [vmem:[%s439 + $0x14] sm:$0xf]
        %v1021 = vld [vmem:[%s439 + $0x18] sm:$0xf]
        %v1022 = vld [vmem:[%s439 + $0x1c] sm:$0xf]
        %v1023 = vld [vmem:[%s439 + $0x20] sm:$0xf]
        %v1024 = vld [vmem:[%s439 + $0x24] sm:$0xf]
        %v1025 = vld [vmem:[%s439 + $0x28] sm:$0xf]
        %v1026 = vld [vmem:[%s439 + $0x2c] sm:$0xf]
        %v1027 = vld [vmem:[%s439 + $0x30] sm:$0xf]
        %v1028 = vld [vmem:[%s439 + $0x34] sm:$0xf]
        %v1029 = vld [vmem:[%s439 + $0x38] sm:$0xf]
        %v1030 = vld [vmem:[%s439 + $0x3c] sm:$0xf]
        %v1047 = vunpack.c.l.b16 %v1015
        %v1048 = vunpack.c.l.b16 %v1016
        %v1049 = vunpack.c.l.b16 %v1017
        %v1050 = vunpack.c.l.b16 %v1018
        %v1051 = vunpack.c.l.b16 %v1019
        %v1052 = vunpack.c.l.b16 %v1020
        %v1053 = vunpack.c.l.b16 %v1021
        %v1054 = vunpack.c.l.b16 %v1022
        %v1055 = vunpack.c.l.b16 %v1023
        %v1056 = vunpack.c.l.b16 %v1024
        %v1057 = vunpack.c.l.b16 %v1025
        %v1058 = vunpack.c.l.b16 %v1026
        %v1059 = vunpack.c.l.b16 %v1027
        %v1060 = vunpack.c.l.b16 %v1028
        %v1061 = vunpack.c.l.b16 %v1029
        %v1062 = vunpack.c.l.b16 %v1030
        %v1063 = vpack.c.b16 %v1048, %v1047
        %v1064 = vpack.c.b16 %v1050, %v1049
        %v1065 = vpack.c.b16 %v1052, %v1051
        %v1066 = vpack.c.b16 %v1054, %v1053
        %v1067 = vpack.c.b16 %v1056, %v1055
        %v1068 = vpack.c.b16 %v1058, %v1057
        %v1069 = vpack.c.b16 %v1060, %v1059
        %v1070 = vpack.c.b16 %v1062, %v1061
        %1079 = vmatprep.subr.bf16.mxu0 0
        %1080 = vmatpush1.bf16.msra.mxu0 %v1007
        %1081 = vmatprep.subr.bf16.mxu0 0
        %1082 = vmatpush1.bf16.msra.mxu0 %v1008
        %1083 = vmatprep.subr.bf16.mxu0 0
        %1084 = vmatpush1.bf16.msra.mxu0 %v1009
        %1085 = vmatprep.subr.bf16.mxu0 0
        %1086 = vmatpush1.bf16.msra.mxu0 %v1010
        %1087 = vmatprep.subr.bf16.mxu0 0
        %1088 = vmatpush1.bf16.msra.mxu0 %v1011
        %1089 = vmatprep.subr.bf16.mxu0 0
        %1090 = vmatpush1.bf16.msra.mxu0 %v1012
        %1091 = vmatprep.subr.bf16.mxu0 0
        %1092 = vmatpush1.bf16.msra.mxu0 %v1013
        %1093 = vmatprep.subr.bf16.mxu0 0
        %1094 = vmatpush1.bf16.msra.mxu0 %v1014
        %1095 = vmatprep.subr.bf16.mxu0 0
        %1096 = vmatpush1.bf16.msra.mxu0 0
        %1097 = vmatprep.subr.bf16.mxu0 0
        %1098 = vmatpush1.bf16.msra.mxu0 0
        %1099 = vmatprep.subr.bf16.mxu0 0
        %1100 = vmatpush1.bf16.msra.mxu0 0
        %1101 = vmatprep.subr.bf16.mxu0 0
        %1102 = vmatpush1.bf16.msra.mxu0 0
        %1103 = vmatprep.subr.bf16.mxu0 0
        %1104 = vmatpush1.bf16.msra.mxu0 0
        %1105 = vmatprep.subr.bf16.mxu0 0
        %1106 = vmatpush1.bf16.msra.mxu0 0
        %1107 = vmatprep.subr.bf16.mxu0 0
        %1108 = vmatpush1.bf16.msra.mxu0 0
        %1109 = vmatprep.subr.bf16.mxu0 0
        %1110 = vmatpush1.bf16.msra.mxu0 0
        %1111 = vmatprep.mubr.bf16.mxu0 0
        %1112 = vmatmul.mubr.bf16.gmra.mrb[0].mxu0 %v1063
        %v1113 = vpop.f32.mrb[0].mxu0
        %v1114 = vadd.f32 0.0, %v1113
        %v1115 = vpop.f32.mrb[0].mxu0
        %v1116 = vpop.f32.mrb[0].mxu0
        %v1117 = vadd.f32 0.0, %v1116
        %v1118 = vpop.f32.mrb[0].mxu0
        %1119 = vmatprep.mubr.bf16.mxu0 0
        %1120 = vmatmul.mubr.bf16.gmra.mrb[0].mxu0 %v1064
        %v1121 = vpop.f32.mrb[0].mxu0
        %v1122 = vadd.f32 0.0, %v1121
        %v1123 = vpop.f32.mrb[0].mxu0
        %v1124 = vpop.f32.mrb[0].mxu0
        %v1125 = vadd.f32 0.0, %v1124
        %v1126 = vpop.f32.mrb[0].mxu0
        %1127 = vmatprep.mubr.bf16.mxu0 0
        %1128 = vmatmul.mubr.bf16.gmra.mrb[0].mxu0 %v1065
        %v1129 = vpop.f32.mrb[0].mxu0
        %v1130 = vadd.f32 0.0, %v1129
        %v1131 = vpop.f32.mrb[0].mxu0
        %v1132 = vpop.f32.mrb[0].mxu0
        %v1133 = vadd.f32 0.0, %v1132
        %v1134 = vpop.f32.mrb[0].mxu0
        %1135 = vmatprep.mubr.bf16.mxu0 0
        %1136 = vmatmul.mubr.bf16.gmra.mrb[0].mxu0 %v1066
        %v1137 = vpop.f32.mrb[0].mxu0
        %v1138 = vadd.f32 0.0, %v1137
        %v1139 = vpop.f32.mrb[0].mxu0
        %v1140 = vpop.f32.mrb[0].mxu0
        %v1141 = vadd.f32 0.0, %v1140
        %v1142 = vpop.f32.mrb[0].mxu0
        %1143 = vmatprep.mubr.bf16.mxu0 0
        %1144 = vmatmul.mubr.bf16.gmra.mrb[0].mxu0 %v1067
        %v1145 = vpop.f32.mrb[0].mxu0
        %v1146 = vadd.f32 0.0, %v1145
        %v1147 = vpop.f32.mrb[0].mxu0
        %v1148 = vpop.f32.mrb[0].mxu0
        %v1149 = vadd.f32 0.0, %v1148
        %v1150 = vpop.f32.mrb[0].mxu0
        %1151 = vmatprep.mubr.bf16.mxu0 0
        %1152 = vmatmul.mubr.bf16.gmra.mrb[0].mxu0 %v1068
        %v1153 = vpop.f32.mrb[0].mxu0
        %v1154 = vadd.f32 0.0, %v1153
        %v1155 = vpop.f32.mrb[0].mxu0
        %v1156 = vpop.f32.mrb[0].mxu0
        %v1157 = vadd.f32 0.0, %v1156
        %v1158 = vpop.f32.mrb[0].mxu0
        %1159 = vmatprep.mubr.bf16.mxu0 0
        %1160 = vmatmul.mubr.bf16.gmra.mrb[0].mxu0 %v1069
        %v1161 = vpop.f32.mrb[0].mxu0
        %v1162 = vadd.f32 0.0, %v1161
        %v1163 = vpop.f32.mrb[0].mxu0
        %v1164 = vpop.f32.mrb[0].mxu0
        %v1165 = vadd.f32 0.0, %v1164
        %v1166 = vpop.f32.mrb[0].mxu0
        %1167 = vmatprep.mubr.bf16.mxu0 0
        %1168 = vmatmul.mubr.bf16.gmra.mrb[0].mxu0 %v1070
        %v1169 = vpop.f32.mrb[0].mxu0
        %v1170 = vadd.f32 0.0, %v1169
        %v1171 = vpop.f32.mrb[0].mxu0
        %v1172 = vpop.f32.mrb[0].mxu0
        %v1173 = vadd.f32 0.0, %v1172
        %v1174 = vpop.f32.mrb[0].mxu0
        %1175 = vdwg.mxu0
        %s1176 = scalar_lea.vmem %s439, 64 [#allocation7]
        %v1177 = vld [vmem:[%s1176] sm:$0xf]
        %v1178 = vld [vmem:[%s1176 + $0x4] sm:$0xf]
        %v1179 = vld [vmem:[%s1176 + $0x8] sm:$0xf]
        %v1180 = vld [vmem:[%s1176 + $0xc] sm:$0xf]
        %v1181 = vld [vmem:[%s1176 + $0x10] sm:$0xf]
        %v1182 = vld [vmem:[%s1176 + $0x14] sm:$0xf]
        %v1183 = vld [vmem:[%s1176 + $0x18] sm:$0xf]
        %v1184 = vld [vmem:[%s1176 + $0x1c] sm:$0xf]
        %v1185 = vld [vmem:[%s1176 + $0x20] sm:$0xf]
        %v1186 = vld [vmem:[%s1176 + $0x24] sm:$0xf]
        %v1187 = vld [vmem:[%s1176 + $0x28] sm:$0xf]
        %v1188 = vld [vmem:[%s1176 + $0x2c] sm:$0xf]
        %v1189 = vld [vmem:[%s1176 + $0x30] sm:$0xf]
        %v1190 = vld [vmem:[%s1176 + $0x34] sm:$0xf]
        %v1191 = vld [vmem:[%s1176 + $0x38] sm:$0xf]
        %v1192 = vld [vmem:[%s1176 + $0x3c] sm:$0xf]
        %v1209 = vunpack.c.l.b16 %v1177
        %v1210 = vunpack.c.l.b16 %v1178
        %v1211 = vunpack.c.l.b16 %v1179
        %v1212 = vunpack.c.l.b16 %v1180
        %v1213 = vunpack.c.l.b16 %v1181
        %v1214 = vunpack.c.l.b16 %v1182
        %v1215 = vunpack.c.l.b16 %v1183
        %v1216 = vunpack.c.l.b16 %v1184
        %v1217 = vunpack.c.l.b16 %v1185
        %v1218 = vunpack.c.l.b16 %v1186
        %v1219 = vunpack.c.l.b16 %v1187
        %v1220 = vunpack.c.l.b16 %v1188
        %v1221 = vunpack.c.l.b16 %v1189
        %v1222 = vunpack.c.l.b16 %v1190
        %v1223 = vunpack.c.l.b16 %v1191
        %v1224 = vunpack.c.l.b16 %v1192
        %v1225 = vpack.c.b16 %v1210, %v1209
        %v1226 = vpack.c.b16 %v1212, %v1211
        %v1227 = vpack.c.b16 %v1214, %v1213
        %v1228 = vpack.c.b16 %v1216, %v1215
        %v1229 = vpack.c.b16 %v1218, %v1217
        %v1230 = vpack.c.b16 %v1220, %v1219
        %v1231 = vpack.c.b16 %v1222, %v1221
        %v1232 = vpack.c.b16 %v1224, %v1223
        %1249 = vrot.lane.b32.xlu0 %v1007, 96
        %v1250 = vpop.permute.xlu0 %1249
        %1251 = vrot.lane.b32.xlu0 %v1008, 96
        %v1252 = vpop.permute.xlu0 %1251
        %1253 = vrot.lane.b32.xlu0 %v1009, 96
        %v1254 = vpop.permute.xlu0 %1253
        %1255 = vrot.lane.b32.xlu0 %v1010, 96
        %v1256 = vpop.permute.xlu0 %1255
        %1257 = vrot.lane.b32.xlu0 %v1011, 96
        %v1258 = vpop.permute.xlu0 %1257
        %1259 = vrot.lane.b32.xlu0 %v1012, 96
        %v1260 = vpop.permute.xlu0 %1259
        %1261 = vrot.lane.b32.xlu0 %v1013, 96
        %v1262 = vpop.permute.xlu0 %1261
        %1263 = vrot.lane.b32.xlu0 %v1014, 96
        %v1264 = vpop.permute.xlu0 %1263
        %1273 = vmatprep.subr.bf16.mxu0 0
        %1274 = vmatpush1.bf16.msra.mxu0 %v1250
        %1275 = vmatprep.subr.bf16.mxu0 0
        %1276 = vmatpush1.bf16.msra.mxu0 %v1252
        %1277 = vmatprep.subr.bf16.mxu0 0
        %1278 = vmatpush1.bf16.msra.mxu0 %v1254
        %1279 = vmatprep.subr.bf16.mxu0 0
        %1280 = vmatpush1.bf16.msra.mxu0 %v1256
        %1281 = vmatprep.subr.bf16.mxu0 0
        %1282 = vmatpush1.bf16.msra.mxu0 %v1258
        %1283 = vmatprep.subr.bf16.mxu0 0
        %1284 = vmatpush1.bf16.msra.mxu0 %v1260
        %1285 = vmatprep.subr.bf16.mxu0 0
        %1286 = vmatpush1.bf16.msra.mxu0 %v1262
        %1287 = vmatprep.subr.bf16.mxu0 0
        %1288 = vmatpush1.bf16.msra.mxu0 %v1264
        %1289 = vmatprep.subr.bf16.mxu0 0
        %1290 = vmatpush1.bf16.msra.mxu0 0
        %1291 = vmatprep.subr.bf16.mxu0 0
        %1292 = vmatpush1.bf16.msra.mxu0 0
        %1293 = vmatprep.subr.bf16.mxu0 0
        %1294 = vmatpush1.bf16.msra.mxu0 0
        %1295 = vmatprep.subr.bf16.mxu0 0
        %1296 = vmatpush1.bf16.msra.mxu0 0
        %1297 = vmatprep.subr.bf16.mxu0 0
        %1298 = vmatpush1.bf16.msra.mxu0 0
        %1299 = vmatprep.subr.bf16.mxu0 0
        %1300 = vmatpush1.bf16.msra.mxu0 0
        %1301 = vmatprep.subr.bf16.mxu0 0
        %1302 = vmatpush1.bf16.msra.mxu0 0
        %1303 = vmatprep.subr.bf16.mxu0 0
        %1304 = vmatpush1.bf16.msra.mxu0 0
        %1305 = vmatprep.mubr.bf16.mxu0 0
        %1306 = vmatmul.mubr.bf16.gmra.mrb[0].mxu0 %v1225
        %v1307 = vpop.f32.mrb[0].mxu0
        %v1308 = vadd.f32 0.0, %v1307
        %v1309 = vpop.f32.mrb[0].mxu0
        %v1310 = vpop.f32.mrb[0].mxu0
        %v1311 = vadd.f32 0.0, %v1310
        %v1312 = vpop.f32.mrb[0].mxu0
        %1313 = vmatprep.mubr.bf16.mxu0 0
        %1314 = vmatmul.mubr.bf16.gmra.mrb[0].mxu0 %v1226
        %v1315 = vpop.f32.mrb[0].mxu0
        %v1316 = vadd.f32 0.0, %v1315
        %v1317 = vpop.f32.mrb[0].mxu0
        %v1318 = vpop.f32.mrb[0].mxu0
        %v1319 = vadd.f32 0.0, %v1318
        %v1320 = vpop.f32.mrb[0].mxu0
        %1321 = vmatprep.mubr.bf16.mxu0 0
        %1322 = vmatmul.mubr.bf16.gmra.mrb[0].mxu0 %v1227
        %v1323 = vpop.f32.mrb[0].mxu0
        %v1324 = vadd.f32 0.0, %v1323
        %v1325 = vpop.f32.mrb[0].mxu0
        %v1326 = vpop.f32.mrb[0].mxu0
        %v1327 = vadd.f32 0.0, %v1326
        %v1328 = vpop.f32.mrb[0].mxu0
        %1329 = vmatprep.mubr.bf16.mxu0 0
        %1330 = vmatmul.mubr.bf16.gmra.mrb[0].mxu0 %v1228
        %v1331 = vpop.f32.mrb[0].mxu0
        %v1332 = vadd.f32 0.0, %v1331
        %v1333 = vpop.f32.mrb[0].mxu0
        %v1334 = vpop.f32.mrb[0].mxu0
        %v1335 = vadd.f32 0.0, %v1334
        %v1336 = vpop.f32.mrb[0].mxu0
        %1337 = vmatprep.mubr.bf16.mxu0 0
        %1338 = vmatmul.mubr.bf16.gmra.mrb[0].mxu0 %v1229
        %v1339 = vpop.f32.mrb[0].mxu0
        %v1340 = vadd.f32 0.0, %v1339
        %v1341 = vpop.f32.mrb[0].mxu0
        %v1342 = vpop.f32.mrb[0].mxu0
        %v1343 = vadd.f32 0.0, %v1342
        %v1344 = vpop.f32.mrb[0].mxu0
        %1345 = vmatprep.mubr.bf16.mxu0 0
        %1346 = vmatmul.mubr.bf16.gmra.mrb[0].mxu0 %v1230
        %v1347 = vpop.f32.mrb[0].mxu0
        %v1348 = vadd.f32 0.0, %v1347
        %v1349 = vpop.f32.mrb[0].mxu0
        %v1350 = vpop.f32.mrb[0].mxu0
        %v1351 = vadd.f32 0.0, %v1350
        %v1352 = vpop.f32.mrb[0].mxu0
        %1353 = vmatprep.mubr.bf16.mxu0 0
        %1354 = vmatmul.mubr.bf16.gmra.mrb[0].mxu0 %v1231
        %v1355 = vpop.f32.mrb[0].mxu0
        %v1356 = vadd.f32 0.0, %v1355
        %v1357 = vpop.f32.mrb[0].mxu0
        %v1358 = vpop.f32.mrb[0].mxu0
        %v1359 = vadd.f32 0.0, %v1358
        %v1360 = vpop.f32.mrb[0].mxu0
        %1361 = vmatprep.mubr.bf16.mxu0 0
        %1362 = vmatmul.mubr.bf16.gmra.mrb[0].mxu0 %v1232
        %v1363 = vpop.f32.mrb[0].mxu0
        %v1364 = vadd.f32 0.0, %v1363
        %v1365 = vpop.f32.mrb[0].mxu0
        %v1366 = vpop.f32.mrb[0].mxu0
        %v1367 = vadd.f32 0.0, %v1366
        %v1368 = vpop.f32.mrb[0].mxu0
        %1369 = vdwg.mxu0
        %s1370 = scalar_lea.vmem %s439, 128 [#allocation7]
        %v1371 = vld [vmem:[%s1370] sm:$0xf]
        %v1372 = vld [vmem:[%s1370 + $0x4] sm:$0xf]
        %v1373 = vld [vmem:[%s1370 + $0x8] sm:$0xf]
        %v1374 = vld [vmem:[%s1370 + $0xc] sm:$0xf]
        %v1375 = vld [vmem:[%s1370 + $0x10] sm:$0xf]
        %v1376 = vld [vmem:[%s1370 + $0x14] sm:$0xf]
        %v1377 = vld [vmem:[%s1370 + $0x18] sm:$0xf]
        %v1378 = vld [vmem:[%s1370 + $0x1c] sm:$0xf]
        %v1379 = vld [vmem:[%s1370 + $0x20] sm:$0xf]
        %v1380 = vld [vmem:[%s1370 + $0x24] sm:$0xf]
        %v1381 = vld [vmem:[%s1370 + $0x28] sm:$0xf]
        %v1382 = vld [vmem:[%s1370 + $0x2c] sm:$0xf]
        %v1383 = vld [vmem:[%s1370 + $0x30] sm:$0xf]
        %v1384 = vld [vmem:[%s1370 + $0x34] sm:$0xf]
        %v1385 = vld [vmem:[%s1370 + $0x38] sm:$0xf]
        %v1386 = vld [vmem:[%s1370 + $0x3c] sm:$0xf]
        %v1403 = vunpack.c.l.b16 %v1371
        %v1404 = vunpack.c.l.b16 %v1372
        %v1405 = vunpack.c.l.b16 %v1373
        %v1406 = vunpack.c.l.b16 %v1374
        %v1407 = vunpack.c.l.b16 %v1375
        %v1408 = vunpack.c.l.b16 %v1376
        %v1409 = vunpack.c.l.b16 %v1377
        %v1410 = vunpack.c.l.b16 %v1378
        %v1411 = vunpack.c.l.b16 %v1379
        %v1412 = vunpack.c.l.b16 %v1380
        %v1413 = vunpack.c.l.b16 %v1381
        %v1414 = vunpack.c.l.b16 %v1382
        %v1415 = vunpack.c.l.b16 %v1383
        %v1416 = vunpack.c.l.b16 %v1384
        %v1417 = vunpack.c.l.b16 %v1385
        %v1418 = vunpack.c.l.b16 %v1386
        %v1419 = vpack.c.b16 %v1404, %v1403
        %v1420 = vpack.c.b16 %v1406, %v1405
        %v1421 = vpack.c.b16 %v1408, %v1407
        %v1422 = vpack.c.b16 %v1410, %v1409
        %v1423 = vpack.c.b16 %v1412, %v1411
        %v1424 = vpack.c.b16 %v1414, %v1413
        %v1425 = vpack.c.b16 %v1416, %v1415
        %v1426 = vpack.c.b16 %v1418, %v1417
        %1435 = vrot.lane.b32.xlu0 %v1007, 64
        %v1436 = vpop.permute.xlu0 %1435
        %1437 = vrot.lane.b32.xlu0 %v1008, 64
        %v1438 = vpop.permute.xlu0 %1437
        %1439 = vrot.lane.b32.xlu0 %v1009, 64
        %v1440 = vpop.permute.xlu0 %1439
        %1441 = vrot.lane.b32.xlu0 %v1010, 64
        %v1442 = vpop.permute.xlu0 %1441
        %1443 = vrot.lane.b32.xlu0 %v1011, 64
        %v1444 = vpop.permute.xlu0 %1443
        %1445 = vrot.lane.b32.xlu0 %v1012, 64
        %v1446 = vpop.permute.xlu0 %1445
        %1447 = vrot.lane.b32.xlu0 %v1013, 64
        %v1448 = vpop.permute.xlu0 %1447
        %1449 = vrot.lane.b32.xlu0 %v1014, 64
        %v1450 = vpop.permute.xlu0 %1449
        %1459 = vmatprep.subr.bf16.mxu0 0
        %1460 = vmatpush1.bf16.msra.mxu0 %v1436
        %1461 = vmatprep.subr.bf16.mxu0 0
        %1462 = vmatpush1.bf16.msra.mxu0 %v1438
        %1463 = vmatprep.subr.bf16.mxu0 0
        %1464 = vmatpush1.bf16.msra.mxu0 %v1440
        %1465 = vmatprep.subr.bf16.mxu0 0
        %1466 = vmatpush1.bf16.msra.mxu0 %v1442
        %1467 = vmatprep.subr.bf16.mxu0 0
        %1468 = vmatpush1.bf16.msra.mxu0 %v1444
        %1469 = vmatprep.subr.bf16.mxu0 0
        %1470 = vmatpush1.bf16.msra.mxu0 %v1446
        %1471 = vmatprep.subr.bf16.mxu0 0
        %1472 = vmatpush1.bf16.msra.mxu0 %v1448
        %1473 = vmatprep.subr.bf16.mxu0 0
        %1474 = vmatpush1.bf16.msra.mxu0 %v1450
        %1475 = vmatprep.subr.bf16.mxu0 0
        %1476 = vmatpush1.bf16.msra.mxu0 0
        %1477 = vmatprep.subr.bf16.mxu0 0
        %1478 = vmatpush1.bf16.msra.mxu0 0
        %1479 = vmatprep.subr.bf16.mxu0 0
        %1480 = vmatpush1.bf16.msra.mxu0 0
        %1481 = vmatprep.subr.bf16.mxu0 0
        %1482 = vmatpush1.bf16.msra.mxu0 0
        %1483 = vmatprep.subr.bf16.mxu0 0
        %1484 = vmatpush1.bf16.msra.mxu0 0
        %1485 = vmatprep.subr.bf16.mxu0 0
        %1486 = vmatpush1.bf16.msra.mxu0 0
        %1487 = vmatprep.subr.bf16.mxu0 0
        %1488 = vmatpush1.bf16.msra.mxu0 0
        %1489 = vmatprep.subr.bf16.mxu0 0
        %1490 = vmatpush1.bf16.msra.mxu0 0
        %1491 = vmatprep.mubr.bf16.mxu0 0
        %1492 = vmatmul.mubr.bf16.gmra.mrb[0].mxu0 %v1419
        %v1493 = vpop.f32.mrb[0].mxu0
        %v1494 = vadd.f32 0.0, %v1493
        %v1495 = vpop.f32.mrb[0].mxu0
        %v1496 = vpop.f32.mrb[0].mxu0
        %v1497 = vadd.f32 0.0, %v1496
        %v1498 = vpop.f32.mrb[0].mxu0
        %1499 = vmatprep.mubr.bf16.mxu0 0
        %1500 = vmatmul.mubr.bf16.gmra.mrb[0].mxu0 %v1420
        %v1501 = vpop.f32.mrb[0].mxu0
        %v1502 = vadd.f32 0.0, %v1501
        %v1503 = vpop.f32.mrb[0].mxu0
        %v1504 = vpop.f32.mrb[0].mxu0
        %v1505 = vadd.f32 0.0, %v1504
        %v1506 = vpop.f32.mrb[0].mxu0
        %1507 = vmatprep.mubr.bf16.mxu0 0
        %1508 = vmatmul.mubr.bf16.gmra.mrb[0].mxu0 %v1421
        %v1509 = vpop.f32.mrb[0].mxu0
        %v1510 = vadd.f32 0.0, %v1509
        %v1511 = vpop.f32.mrb[0].mxu0
        %v1512 = vpop.f32.mrb[0].mxu0
        %v1513 = vadd.f32 0.0, %v1512
        %v1514 = vpop.f32.mrb[0].mxu0
        %1515 = vmatprep.mubr.bf16.mxu0 0
        %1516 = vmatmul.mubr.bf16.gmra.mrb[0].mxu0 %v1422
        %v1517 = vpop.f32.mrb[0].mxu0
        %v1518 = vadd.f32 0.0, %v1517
        %v1519 = vpop.f32.mrb[0].mxu0
        %v1520 = vpop.f32.mrb[0].mxu0
        %v1521 = vadd.f32 0.0, %v1520
        %v1522 = vpop.f32.mrb[0].mxu0
        %1523 = vmatprep.mubr.bf16.mxu0 0
        %1524 = vmatmul.mubr.bf16.gmra.mrb[0].mxu0 %v1423
        %v1525 = vpop.f32.mrb[0].mxu0
        %v1526 = vadd.f32 0.0, %v1525
        %v1527 = vpop.f32.mrb[0].mxu0
        %v1528 = vpop.f32.mrb[0].mxu0
        %v1529 = vadd.f32 0.0, %v1528
        %v1530 = vpop.f32.mrb[0].mxu0
        %1531 = vmatprep.mubr.bf16.mxu0 0
        %1532 = vmatmul.mubr.bf16.gmra.mrb[0].mxu0 %v1424
        %v1533 = vpop.f32.mrb[0].mxu0
        %v1534 = vadd.f32 0.0, %v1533
        %v1535 = vpop.f32.mrb[0].mxu0
        %v1536 = vpop.f32.mrb[0].mxu0
        %v1537 = vadd.f32 0.0, %v1536
        %v1538 = vpop.f32.mrb[0].mxu0
        %1539 = vmatprep.mubr.bf16.mxu0 0
        %1540 = vmatmul.mubr.bf16.gmra.mrb[0].mxu0 %v1425
        %v1541 = vpop.f32.mrb[0].mxu0
        %v1542 = vadd.f32 0.0, %v1541
        %v1543 = vpop.f32.mrb[0].mxu0
        %v1544 = vpop.f32.mrb[0].mxu0
        %v1545 = vadd.f32 0.0, %v1544
        %v1546 = vpop.f32.mrb[0].mxu0
        %1547 = vmatprep.mubr.bf16.mxu0 0
        %1548 = vmatmul.mubr.bf16.gmra.mrb[0].mxu0 %v1426
        %v1549 = vpop.f32.mrb[0].mxu0
        %v1550 = vadd.f32 0.0, %v1549
        %v1551 = vpop.f32.mrb[0].mxu0
        %v1552 = vpop.f32.mrb[0].mxu0
        %v1553 = vadd.f32 0.0, %v1552
        %v1554 = vpop.f32.mrb[0].mxu0
        %1555 = vdwg.mxu0
        %v1556 = vld [vmem:[#allocation2] sm:$0xff]
        %v1557 = vld [vmem:[#allocation2 + $0x8] sm:$0xff]
        %v1558 = vld [vmem:[#allocation2 + $0x10] sm:$0xff]
        %v1559 = vld [vmem:[#allocation2 + $0x18] sm:$0xff]
        %v1560 = vld [vmem:[#allocation2 + $0x20] sm:$0xff]
        %v1561 = vld [vmem:[#allocation2 + $0x28] sm:$0xff]
        %v1562 = vld [vmem:[#allocation2 + $0x30] sm:$0xff]
        %v1563 = vld [vmem:[#allocation2 + $0x38] sm:$0xff]
        %v1564 = vld [vmem:[#allocation2 + $0x40] sm:$0xff]
        %v1565 = vld [vmem:[#allocation2 + $0x48] sm:$0xff]
        %v1566 = vld [vmem:[#allocation2 + $0x50] sm:$0xff]
        %v1567 = vld [vmem:[#allocation2 + $0x58] sm:$0xff]
        %v1568 = vld [vmem:[#allocation2 + $0x60] sm:$0xff]
        %v1569 = vld [vmem:[#allocation2 + $0x68] sm:$0xff]
        %v1570 = vld [vmem:[#allocation2 + $0x70] sm:$0xff]
        %v1571 = vld [vmem:[#allocation2 + $0x78] sm:$0xff]
        %1588 = vrot.lane.b32.xlu0 %v1308, 32
        %v1589 = vpop.permute.xlu0 %1588
        %1590 = vrot.lane.b32.xlu0 %v1311, 32
        %v1591 = vpop.permute.xlu0 %1590
        %1592 = vrot.lane.b32.xlu0 %v1316, 32
        %v1593 = vpop.permute.xlu0 %1592
        %1594 = vrot.lane.b32.xlu0 %v1319, 32
        %v1595 = vpop.permute.xlu0 %1594
        %1596 = vrot.lane.b32.xlu0 %v1324, 32
        %v1597 = vpop.permute.xlu0 %1596
        %1598 = vrot.lane.b32.xlu0 %v1327, 32
        %v1599 = vpop.permute.xlu0 %1598
        %1600 = vrot.lane.b32.xlu0 %v1332, 32
        %v1601 = vpop.permute.xlu0 %1600
        %1602 = vrot.lane.b32.xlu0 %v1335, 32
        %v1603 = vpop.permute.xlu0 %1602
        %1604 = vrot.lane.b32.xlu0 %v1340, 32
        %v1605 = vpop.permute.xlu0 %1604
        %1606 = vrot.lane.b32.xlu0 %v1343, 32
        %v1607 = vpop.permute.xlu0 %1606
        %1608 = vrot.lane.b32.xlu0 %v1348, 32
        %v1609 = vpop.permute.xlu0 %1608
        %1610 = vrot.lane.b32.xlu0 %v1351, 32
        %v1611 = vpop.permute.xlu0 %1610
        %1612 = vrot.lane.b32.xlu0 %v1356, 32
        %v1613 = vpop.permute.xlu0 %1612
        %1614 = vrot.lane.b32.xlu0 %v1359, 32
        %v1615 = vpop.permute.xlu0 %1614
        %1616 = vrot.lane.b32.xlu0 %v1364, 32
        %v1617 = vpop.permute.xlu0 %1616
        %1618 = vrot.lane.b32.xlu0 %v1367, 32
        %v1619 = vpop.permute.xlu0 %1618
        %1652 = vrot.lane.b32.xlu0 %v1494, 64
        %v1653 = vpop.permute.xlu0 %1652
        %1654 = vrot.lane.b32.xlu0 %v1497, 64
        %v1655 = vpop.permute.xlu0 %1654
        %1656 = vrot.lane.b32.xlu0 %v1502, 64
        %v1657 = vpop.permute.xlu0 %1656
        %1658 = vrot.lane.b32.xlu0 %v1505, 64
        %v1659 = vpop.permute.xlu0 %1658
        %1660 = vrot.lane.b32.xlu0 %v1510, 64
        %v1661 = vpop.permute.xlu0 %1660
        %1662 = vrot.lane.b32.xlu0 %v1513, 64
        %v1663 = vpop.permute.xlu0 %1662
        %1664 = vrot.lane.b32.xlu0 %v1518, 64
        %v1665 = vpop.permute.xlu0 %1664
        %1666 = vrot.lane.b32.xlu0 %v1521, 64
        %v1667 = vpop.permute.xlu0 %1666
        %1668 = vrot.lane.b32.xlu0 %v1526, 64
        %v1669 = vpop.permute.xlu0 %1668
        %1670 = vrot.lane.b32.xlu0 %v1529, 64
        %v1671 = vpop.permute.xlu0 %1670
        %1672 = vrot.lane.b32.xlu0 %v1534, 64
        %v1673 = vpop.permute.xlu0 %1672
        %1674 = vrot.lane.b32.xlu0 %v1537, 64
        %v1675 = vpop.permute.xlu0 %1674
        %1676 = vrot.lane.b32.xlu0 %v1542, 64
        %v1677 = vpop.permute.xlu0 %1676
        %1678 = vrot.lane.b32.xlu0 %v1545, 64
        %v1679 = vpop.permute.xlu0 %1678
        %1680 = vrot.lane.b32.xlu0 %v1550, 64
        %v1681 = vpop.permute.xlu0 %1680
        %1682 = vrot.lane.b32.xlu0 %v1553, 64
        %v1683 = vpop.permute.xlu0 %1682
        %vm1700 = vcmask 261120
        %v1701 = vsel %vm1700, %v1114, %v1589
        %v1702 = vsel %vm1700, %v1117, %v1591
        %v1703 = vsel %vm1700, %v1122, %v1593
        %v1704 = vsel %vm1700, %v1125, %v1595
        %v1705 = vsel %vm1700, %v1130, %v1597
        %v1706 = vsel %vm1700, %v1133, %v1599
        %v1707 = vsel %vm1700, %v1138, %v1601
        %v1708 = vsel %vm1700, %v1141, %v1603
        %v1709 = vsel %vm1700, %v1146, %v1605
        %v1710 = vsel %vm1700, %v1149, %v1607
        %v1711 = vsel %vm1700, %v1154, %v1609
        %v1712 = vsel %vm1700, %v1157, %v1611
        %v1713 = vsel %vm1700, %v1162, %v1613
        %v1714 = vsel %vm1700, %v1165, %v1615
        %v1715 = vsel %vm1700, %v1170, %v1617
        %v1716 = vsel %vm1700, %v1173, %v1619
        %vm1717 = vcmask 523264
        %v1718 = vsel %vm1717, %v1701, %v1653
        %v1719 = vsel %vm1717, %v1702, %v1655
        %v1720 = vsel %vm1717, %v1703, %v1657
        %v1721 = vsel %vm1717, %v1704, %v1659
        %v1722 = vsel %vm1717, %v1705, %v1661
        %v1723 = vsel %vm1717, %v1706, %v1663
        %v1724 = vsel %vm1717, %v1707, %v1665
        %v1725 = vsel %vm1717, %v1708, %v1667
        %v1726 = vsel %vm1717, %v1709, %v1669
        %v1727 = vsel %vm1717, %v1710, %v1671
        %v1728 = vsel %vm1717, %v1711, %v1673
        %v1729 = vsel %vm1717, %v1712, %v1675
        %v1730 = vsel %vm1717, %v1713, %v1677
        %v1731 = vsel %vm1717, %v1714, %v1679
        %v1732 = vsel %vm1717, %v1715, %v1681
        %v1733 = vsel %vm1717, %v1716, %v1683
        %v1734 = vadd.f32 %v1556, %v1718
        %v1735 = vadd.f32 %v1557, %v1719
        %v1736 = vadd.f32 %v1558, %v1720
        %v1737 = vadd.f32 %v1559, %v1721
        %v1738 = vadd.f32 %v1560, %v1722
        %v1739 = vadd.f32 %v1561, %v1723
        %v1740 = vadd.f32 %v1562, %v1724
        %v1741 = vadd.f32 %v1563, %v1725
        %v1742 = vadd.f32 %v1564, %v1726
        %v1743 = vadd.f32 %v1565, %v1727
        %v1744 = vadd.f32 %v1566, %v1728
        %v1745 = vadd.f32 %v1567, %v1729
        %v1746 = vadd.f32 %v1568, %v1730
        %v1747 = vadd.f32 %v1569, %v1731
        %v1748 = vadd.f32 %v1570, %v1732
        %v1749 = vadd.f32 %v1571, %v1733
        %1750 = vst.msk [vmem:[#allocation2] sm:$0xff] %vm813, %v1734
        %1751 = vst.msk [vmem:[#allocation2 + $0x8] sm:$0xff] %vm813, %v1735
        %1752 = vst.msk [vmem:[#allocation2 + $0x10] sm:$0xff] %vm813, %v1736
        %1753 = vst.msk [vmem:[#allocation2 + $0x18] sm:$0xff] %vm813, %v1737
        %1754 = vst.msk [vmem:[#allocation2 + $0x20] sm:$0xff] %vm813, %v1738
        %1755 = vst.msk [vmem:[#allocation2 + $0x28] sm:$0xff] %vm813, %v1739
        %1756 = vst.msk [vmem:[#allocation2 + $0x30] sm:$0xff] %vm813, %v1740
        %1757 = vst.msk [vmem:[#allocation2 + $0x38] sm:$0xff] %vm813, %v1741
        %1758 = vst.msk [vmem:[#allocation2 + $0x40] sm:$0xff] %vm813, %v1742
        %1759 = vst.msk [vmem:[#allocation2 + $0x48] sm:$0xff] %vm813, %v1743
        %1760 = vst.msk [vmem:[#allocation2 + $0x50] sm:$0xff] %vm813, %v1744
        %1761 = vst.msk [vmem:[#allocation2 + $0x58] sm:$0xff] %vm813, %v1745
        %1762 = vst.msk [vmem:[#allocation2 + $0x60] sm:$0xff] %vm813, %v1746
        %1763 = vst.msk [vmem:[#allocation2 + $0x68] sm:$0xff] %vm813, %v1747
        %1764 = vst.msk [vmem:[#allocation2 + $0x70] sm:$0xff] %vm813, %v1748
        %1765 = vst.msk [vmem:[#allocation2 + $0x78] sm:$0xff] %vm813, %v1749
        %p1766 = scmp.eq.s32.totalorder %s35, 3
        // Predicated region
        $region89: #{tpu_custom_call.1} parent=55 // pred_check
          %p1767 = pneg %p1766
        $region90: #{tpu_custom_call.1} parent=55 // pred_check_branch
          %1769 = sbr.rel (%p1767) target = $region92
        $region91: #{tpu_custom_call.1} parent=55 // pred_region
          %v1770 = vld [vmem:[%s509] sm:$0xff]
          %v1771 = vld [vmem:[%s509 + $0x8] sm:$0xff]
          %v1772 = vld [vmem:[%s509 + $0x10] sm:$0xff]
          %v1773 = vld [vmem:[%s509 + $0x18] sm:$0xff]
          %v1774 = vld [vmem:[%s509 + $0x20] sm:$0xff]
          %v1775 = vld [vmem:[%s509 + $0x28] sm:$0xff]
          %v1776 = vld [vmem:[%s509 + $0x30] sm:$0xff]
          %v1777 = vld [vmem:[%s509 + $0x38] sm:$0xff]
          %v1778 = vld [vmem:[%s509 + $0x40] sm:$0xff]
          %v1779 = vld [vmem:[%s509 + $0x48] sm:$0xff]
          %v1780 = vld [vmem:[%s509 + $0x50] sm:$0xff]
          %v1781 = vld [vmem:[%s509 + $0x58] sm:$0xff]
          %v1782 = vld [vmem:[%s509 + $0x60] sm:$0xff]
          %v1783 = vld [vmem:[%s509 + $0x68] sm:$0xff]
          %v1784 = vld [vmem:[%s509 + $0x70] sm:$0xff]
          %v1785 = vld [vmem:[%s509 + $0x78] sm:$0xff]
          %v1786 = vld [vmem:[#allocation8] sm:$0xff]
          %v1787 = vld [vmem:[#allocation8 + $0x8] sm:$0xff]
          %v1789 = vsel %vm559, %v1770, 0
          %v1792 = vsel %vm559, %v1771, 0
          %v1795 = vsel %vm559, %v1772, 0
          %v1798 = vsel %vm559, %v1773, 0
          %v1801 = vsel %vm559, %v1774, 0
          %v1804 = vsel %vm559, %v1775, 0
          %v1807 = vsel %vm559, %v1776, 0
          %v1810 = vsel %vm559, %v1777, 0
          %v1813 = vsel %vm559, %v1778, 0
          %v1816 = vsel %vm559, %v1779, 0
          %v1819 = vsel %vm559, %v1780, 0
          %v1822 = vsel %vm559, %v1781, 0
          %v1825 = vsel %vm559, %v1782, 0
          %v1828 = vsel %vm559, %v1783, 0
          %v1831 = vsel %vm559, %v1784, 0
          %v1834 = vsel %vm559, %v1785, 0
          %1836 = vmatprep.subr.mxu0 0.0
          %1837 = vmatpush1.msra.mxu0 %v1786
          %1838 = vmatprep.subr.mxu0 0.0
          %1839 = vmatpush1.msra.mxu0 %v1787
          %1840 = vmatprep.subr.mxu0 0.0
          %1841 = vmatpush1.msra.mxu0 0.0
          %1842 = vmatprep.subr.mxu0 0.0
          %1843 = vmatpush1.msra.mxu0 0.0
          %1844 = vmatprep.subr.mxu0 0.0
          %1845 = vmatpush1.msra.mxu0 0.0
          %1846 = vmatprep.subr.mxu0 0.0
          %1847 = vmatpush1.msra.mxu0 0.0
          %1848 = vmatprep.subr.mxu0 0.0
          %1849 = vmatpush1.msra.mxu0 0.0
          %1850 = vmatprep.subr.mxu0 0.0
          %1851 = vmatpush1.msra.mxu0 0.0
          %1852 = vmatprep.subr.mxu0 0.0
          %1853 = vmatpush1.msra.mxu0 0.0
          %1854 = vmatprep.subr.mxu0 0.0
          %1855 = vmatpush1.msra.mxu0 0.0
          %1856 = vmatprep.subr.mxu0 0.0
          %1857 = vmatpush1.msra.mxu0 0.0
          %1858 = vmatprep.subr.mxu0 0.0
          %1859 = vmatpush1.msra.mxu0 0.0
          %1860 = vmatprep.subr.mxu0 0.0
          %1861 = vmatpush1.msra.mxu0 0.0
          %1862 = vmatprep.subr.mxu0 0.0
          %1863 = vmatpush1.msra.mxu0 0.0
          %1864 = vmatprep.subr.mxu0 0.0
          %1865 = vmatpush1.msra.mxu0 0.0
          %1866 = vmatprep.subr.mxu0 0.0
          %1867 = vmatpush1.msra.mxu0 0.0
          %1868 = vmatprep.subr.mxu0 0.0
          %1869 = vmatpush1.msra.mxu0 0.0
          %1870 = vmatprep.subr.mxu0 0.0
          %1871 = vmatpush1.msra.mxu0 0.0
          %1872 = vmatprep.subr.mxu0 0.0
          %1873 = vmatpush1.msra.mxu0 0.0
          %1874 = vmatprep.subr.mxu0 0.0
          %1875 = vmatpush1.msra.mxu0 0.0
          %1876 = vmatprep.subr.mxu0 0.0
          %1877 = vmatpush1.msra.mxu0 0.0
          %1878 = vmatprep.subr.mxu0 0.0
          %1879 = vmatpush1.msra.mxu0 0.0
          %1880 = vmatprep.subr.mxu0 0.0
          %1881 = vmatpush1.msra.mxu0 0.0
          %1882 = vmatprep.subr.mxu0 0.0
          %1883 = vmatpush1.msra.mxu0 0.0
          %1884 = vmatprep.subr.mxu0 0.0
          %1885 = vmatpush1.msra.mxu0 0.0
          %1886 = vmatprep.subr.mxu0 0.0
          %1887 = vmatpush1.msra.mxu0 0.0
          %1888 = vmatprep.subr.mxu0 0.0
          %1889 = vmatpush1.msra.mxu0 0.0
          %1890 = vmatprep.subr.mxu0 0.0
          %1891 = vmatpush1.msra.mxu0 0.0
          %1892 = vmatprep.subr.mxu0 0.0
          %1893 = vmatpush1.msra.mxu0 0.0
          %1894 = vmatprep.subr.mxu0 0.0
          %1895 = vmatpush1.msra.mxu0 0.0
          %1896 = vmatprep.subr.mxu0 0.0
          %1897 = vmatpush1.msra.mxu0 0.0
          %1898 = vmatprep.subr.mxu0 0.0
          %1899 = vmatpush1.msra.mxu0 0.0
          %1900 = vmatprep.mubr.f32.mxu0 0.0
          %1901 = vmatmul.mubr.f32.gmra.mrb[0].mxu0 %v1789
          %v1902 = vpop.f32.mrb[0].mxu0
          %v1903 = vadd.f32 0.0, %v1902
          %v1904 = vpop.f32.mrb[0].mxu0
          %1905 = vmatprep.mubr.f32.mxu0 0.0
          %1906 = vmatmul.mubr.f32.gmra.mrb[0].mxu0 %v1792
          %v1907 = vpop.f32.mrb[0].mxu0
          %v1908 = vadd.f32 0.0, %v1907
          %v1909 = vpop.f32.mrb[0].mxu0
          %1910 = vmatprep.mubr.f32.mxu0 0.0
          %1911 = vmatmul.mubr.f32.gmra.mrb[0].mxu0 %v1795
          %v1912 = vpop.f32.mrb[0].mxu0
          %v1913 = vadd.f32 0.0, %v1912
          %v1914 = vpop.f32.mrb[0].mxu0
          %1915 = vmatprep.mubr.f32.mxu0 0.0
          %1916 = vmatmul.mubr.f32.gmra.mrb[0].mxu0 %v1798
          %v1917 = vpop.f32.mrb[0].mxu0
          %v1918 = vadd.f32 0.0, %v1917
          %v1919 = vpop.f32.mrb[0].mxu0
          %1920 = vmatprep.mubr.f32.mxu0 0.0
          %1921 = vmatmul.mubr.f32.gmra.mrb[0].mxu0 %v1801
          %v1922 = vpop.f32.mrb[0].mxu0
          %v1923 = vadd.f32 0.0, %v1922
          %v1924 = vpop.f32.mrb[0].mxu0
          %1925 = vmatprep.mubr.f32.mxu0 0.0
          %1926 = vmatmul.mubr.f32.gmra.mrb[0].mxu0 %v1804
          %v1927 = vpop.f32.mrb[0].mxu0
          %v1928 = vadd.f32 0.0, %v1927
          %v1929 = vpop.f32.mrb[0].mxu0
          %1930 = vmatprep.mubr.f32.mxu0 0.0
          %1931 = vmatmul.mubr.f32.gmra.mrb[0].mxu0 %v1807
          %v1932 = vpop.f32.mrb[0].mxu0
          %v1933 = vadd.f32 0.0, %v1932
          %v1934 = vpop.f32.mrb[0].mxu0
          %1935 = vmatprep.mubr.f32.mxu0 0.0
          %1936 = vmatmul.mubr.f32.gmra.mrb[0].mxu0 %v1810
          %v1937 = vpop.f32.mrb[0].mxu0
          %v1938 = vadd.f32 0.0, %v1937
          %v1939 = vpop.f32.mrb[0].mxu0
          %1940 = vmatprep.mubr.f32.mxu0 0.0
          %1941 = vmatmul.mubr.f32.gmra.mrb[0].mxu0 %v1813
          %v1942 = vpop.f32.mrb[0].mxu0
          %v1943 = vadd.f32 0.0, %v1942
          %v1944 = vpop.f32.mrb[0].mxu0
          %1945 = vmatprep.mubr.f32.mxu0 0.0
          %1946 = vmatmul.mubr.f32.gmra.mrb[0].mxu0 %v1816
          %v1947 = vpop.f32.mrb[0].mxu0
          %v1948 = vadd.f32 0.0, %v1947
          %v1949 = vpop.f32.mrb[0].mxu0
          %1950 = vmatprep.mubr.f32.mxu0 0.0
          %1951 = vmatmul.mubr.f32.gmra.mrb[0].mxu0 %v1819
          %v1952 = vpop.f32.mrb[0].mxu0
          %v1953 = vadd.f32 0.0, %v1952
          %v1954 = vpop.f32.mrb[0].mxu0
          %1955 = vmatprep.mubr.f32.mxu0 0.0
          %1956 = vmatmul.mubr.f32.gmra.mrb[0].mxu0 %v1822
          %v1957 = vpop.f32.mrb[0].mxu0
          %v1958 = vadd.f32 0.0, %v1957
          %v1959 = vpop.f32.mrb[0].mxu0
          %1960 = vmatprep.mubr.f32.mxu0 0.0
          %1961 = vmatmul.mubr.f32.gmra.mrb[0].mxu0 %v1825
          %v1962 = vpop.f32.mrb[0].mxu0
          %v1963 = vadd.f32 0.0, %v1962
          %v1964 = vpop.f32.mrb[0].mxu0
          %1965 = vmatprep.mubr.f32.mxu0 0.0
          %1966 = vmatmul.mubr.f32.gmra.mrb[0].mxu0 %v1828
          %v1967 = vpop.f32.mrb[0].mxu0
          %v1968 = vadd.f32 0.0, %v1967
          %v1969 = vpop.f32.mrb[0].mxu0
          %1970 = vmatprep.mubr.f32.mxu0 0.0
          %1971 = vmatmul.mubr.f32.gmra.mrb[0].mxu0 %v1831
          %v1972 = vpop.f32.mrb[0].mxu0
          %v1973 = vadd.f32 0.0, %v1972
          %v1974 = vpop.f32.mrb[0].mxu0
          %1975 = vmatprep.mubr.f32.mxu0 0.0
          %1976 = vmatmul.mubr.f32.gmra.mrb[0].mxu0 %v1834
          %v1977 = vpop.f32.mrb[0].mxu0
          %v1978 = vadd.f32 0.0, %v1977
          %v1979 = vpop.f32.mrb[0].mxu0
          %1980 = vdwg.mxu0
          %vm1981 = vcmp.gt.f32.partialorder %v1903, 0.0
          %vm1982 = vcmp.gt.f32.partialorder %v1908, 0.0
          %vm1983 = vcmp.gt.f32.partialorder %v1913, 0.0
          %vm1984 = vcmp.gt.f32.partialorder %v1918, 0.0
          %vm1985 = vcmp.gt.f32.partialorder %v1923, 0.0
          %vm1986 = vcmp.gt.f32.partialorder %v1928, 0.0
          %vm1987 = vcmp.gt.f32.partialorder %v1933, 0.0
          %vm1988 = vcmp.gt.f32.partialorder %v1938, 0.0
          %vm1989 = vcmp.gt.f32.partialorder %v1943, 0.0
          %vm1990 = vcmp.gt.f32.partialorder %v1948, 0.0
          %vm1991 = vcmp.gt.f32.partialorder %v1953, 0.0
          %vm1992 = vcmp.gt.f32.partialorder %v1958, 0.0
          %vm1993 = vcmp.gt.f32.partialorder %v1963, 0.0
          %vm1994 = vcmp.gt.f32.partialorder %v1968, 0.0
          %vm1995 = vcmp.gt.f32.partialorder %v1973, 0.0
          %vm1996 = vcmp.gt.f32.partialorder %v1978, 0.0
          %v1997 = vmul.f32 %v1903, 0.01
          %v1998 = vmul.f32 %v1908, 0.01
          %v1999 = vmul.f32 %v1913, 0.01
          %v2000 = vmul.f32 %v1918, 0.01
          %v2001 = vmul.f32 %v1923, 0.01
          %v2002 = vmul.f32 %v1928, 0.01
          %v2003 = vmul.f32 %v1933, 0.01
          %v2004 = vmul.f32 %v1938, 0.01
          %v2005 = vmul.f32 %v1943, 0.01
          %v2006 = vmul.f32 %v1948, 0.01
          %v2007 = vmul.f32 %v1953, 0.01
          %v2008 = vmul.f32 %v1958, 0.01
          %v2009 = vmul.f32 %v1963, 0.01
          %v2010 = vmul.f32 %v1968, 0.01
          %v2011 = vmul.f32 %v1973, 0.01
          %v2012 = vmul.f32 %v1978, 0.01
          %v2013 = vsel %vm1981, %v1903, %v1997
          %v2014 = vsel %vm1982, %v1908, %v1998
          %v2015 = vsel %vm1983, %v1913, %v1999
          %v2016 = vsel %vm1984, %v1918, %v2000
          %v2017 = vsel %vm1985, %v1923, %v2001
          %v2018 = vsel %vm1986, %v1928, %v2002
          %v2019 = vsel %vm1987, %v1933, %v2003
          %v2020 = vsel %vm1988, %v1938, %v2004
          %v2021 = vsel %vm1989, %v1943, %v2005
          %v2022 = vsel %vm1990, %v1948, %v2006
          %v2023 = vsel %vm1991, %v1953, %v2007
          %v2024 = vsel %vm1992, %v1958, %v2008
          %v2025 = vsel %vm1993, %v1963, %v2009
          %v2026 = vsel %vm1994, %v1968, %v2010
          %v2027 = vsel %vm1995, %v1973, %v2011
          %v2028 = vsel %vm1996, %v1978, %v2012
          %s2029 = sld [smem:[#allocation3]]
          %v2030 = vstv %s2029
          %v2031 = vmul.f32 %v2030, %v2013
          %v2032 = vmul.f32 %v2030, %v2014
          %v2033 = vmul.f32 %v2030, %v2015
          %v2034 = vmul.f32 %v2030, %v2016
          %v2035 = vmul.f32 %v2030, %v2017
          %v2036 = vmul.f32 %v2030, %v2018
          %v2037 = vmul.f32 %v2030, %v2019
          %v2038 = vmul.f32 %v2030, %v2020
          %v2039 = vmul.f32 %v2030, %v2021
          %v2040 = vmul.f32 %v2030, %v2022
          %v2041 = vmul.f32 %v2030, %v2023
          %v2042 = vmul.f32 %v2030, %v2024
          %v2043 = vmul.f32 %v2030, %v2025
          %v2044 = vmul.f32 %v2030, %v2026
          %v2045 = vmul.f32 %v2030, %v2027
          %v2046 = vmul.f32 %v2030, %v2028
          %s2047 = sld [smem:[#allocation3 + $0x80]]
          %v2048 = vstv %s2047
          %v2049 = vmul.f32 %v2048, %v2013
          %v2050 = vmul.f32 %v2048, %v2014
          %v2051 = vmul.f32 %v2048, %v2015
          %v2052 = vmul.f32 %v2048, %v2016
          %v2053 = vmul.f32 %v2048, %v2017
          %v2054 = vmul.f32 %v2048, %v2018
          %v2055 = vmul.f32 %v2048, %v2019
          %v2056 = vmul.f32 %v2048, %v2020
          %v2057 = vmul.f32 %v2048, %v2021
          %v2058 = vmul.f32 %v2048, %v2022
          %v2059 = vmul.f32 %v2048, %v2023
          %v2060 = vmul.f32 %v2048, %v2024
          %v2061 = vmul.f32 %v2048, %v2025
          %v2062 = vmul.f32 %v2048, %v2026
          %v2063 = vmul.f32 %v2048, %v2027
          %v2064 = vmul.f32 %v2048, %v2028
          %2081 = vrot.lane.b32.xlu0 %v2049, 96
          %v2082 = vpop.permute.xlu0 %2081
          %2083 = vrot.lane.b32.xlu0 %v2050, 96
          %v2084 = vpop.permute.xlu0 %2083
          %2085 = vrot.lane.b32.xlu0 %v2051, 96
          %v2086 = vpop.permute.xlu0 %2085
          %2087 = vrot.lane.b32.xlu0 %v2052, 96
          %v2088 = vpop.permute.xlu0 %2087
          %2089 = vrot.lane.b32.xlu0 %v2053, 96
          %v2090 = vpop.permute.xlu0 %2089
          %2091 = vrot.lane.b32.xlu0 %v2054, 96
          %v2092 = vpop.permute.xlu0 %2091
          %2093 = vrot.lane.b32.xlu0 %v2055, 96
          %v2094 = vpop.permute.xlu0 %2093
          %2095 = vrot.lane.b32.xlu0 %v2056, 96
          %v2096 = vpop.permute.xlu0 %2095
          %2097 = vrot.lane.b32.xlu0 %v2057, 96
          %v2098 = vpop.permute.xlu0 %2097
          %2099 = vrot.lane.b32.xlu0 %v2058, 96
          %v2100 = vpop.permute.xlu0 %2099
          %2101 = vrot.lane.b32.xlu0 %v2059, 96
          %v2102 = vpop.permute.xlu0 %2101
          %2103 = vrot.lane.b32.xlu0 %v2060, 96
          %v2104 = vpop.permute.xlu0 %2103
          %2105 = vrot.lane.b32.xlu0 %v2061, 96
          %v2106 = vpop.permute.xlu0 %2105
          %2107 = vrot.lane.b32.xlu0 %v2062, 96
          %v2108 = vpop.permute.xlu0 %2107
          %2109 = vrot.lane.b32.xlu0 %v2063, 96
          %v2110 = vpop.permute.xlu0 %2109
          %2111 = vrot.lane.b32.xlu0 %v2064, 96
          %v2112 = vpop.permute.xlu0 %2111
          %v2129 = vadd.f32 %v2031, %v2082
          %v2130 = vadd.f32 %v2032, %v2084
          %v2131 = vadd.f32 %v2033, %v2086
          %v2132 = vadd.f32 %v2034, %v2088
          %v2133 = vadd.f32 %v2035, %v2090
          %v2134 = vadd.f32 %v2036, %v2092
          %v2135 = vadd.f32 %v2037, %v2094
          %v2136 = vadd.f32 %v2038, %v2096
          %v2137 = vadd.f32 %v2039, %v2098
          %v2138 = vadd.f32 %v2040, %v2100
          %v2139 = vadd.f32 %v2041, %v2102
          %v2140 = vadd.f32 %v2042, %v2104
          %v2141 = vadd.f32 %v2043, %v2106
          %v2142 = vadd.f32 %v2044, %v2108
          %v2143 = vadd.f32 %v2045, %v2110
          %v2144 = vadd.f32 %v2046, %v2112
          %s2145 = sld [smem:[#allocation3 + $0x100]]
          %v2146 = vstv %s2145
          %v2147 = vmul.f32 %v2146, %v2013
          %v2148 = vmul.f32 %v2146, %v2014
          %v2149 = vmul.f32 %v2146, %v2015
          %v2150 = vmul.f32 %v2146, %v2016
          %v2151 = vmul.f32 %v2146, %v2017
          %v2152 = vmul.f32 %v2146, %v2018
          %v2153 = vmul.f32 %v2146, %v2019
          %v2154 = vmul.f32 %v2146, %v2020
          %v2155 = vmul.f32 %v2146, %v2021
          %v2156 = vmul.f32 %v2146, %v2022
          %v2157 = vmul.f32 %v2146, %v2023
          %v2158 = vmul.f32 %v2146, %v2024
          %v2159 = vmul.f32 %v2146, %v2025
          %v2160 = vmul.f32 %v2146, %v2026
          %v2161 = vmul.f32 %v2146, %v2027
          %v2162 = vmul.f32 %v2146, %v2028
          %2179 = vrot.lane.b32.xlu0 %v2147, 64
          %v2180 = vpop.permute.xlu0 %2179
          %2181 = vrot.lane.b32.xlu0 %v2148, 64
          %v2182 = vpop.permute.xlu0 %2181
          %2183 = vrot.lane.b32.xlu0 %v2149, 64
          %v2184 = vpop.permute.xlu0 %2183
          %2185 = vrot.lane.b32.xlu0 %v2150, 64
          %v2186 = vpop.permute.xlu0 %2185
          %2187 = vrot.lane.b32.xlu0 %v2151, 64
          %v2188 = vpop.permute.xlu0 %2187
          %2189 = vrot.lane.b32.xlu0 %v2152, 64
          %v2190 = vpop.permute.xlu0 %2189
          %2191 = vrot.lane.b32.xlu0 %v2153, 64
          %v2192 = vpop.permute.xlu0 %2191
          %2193 = vrot.lane.b32.xlu0 %v2154, 64
          %v2194 = vpop.permute.xlu0 %2193
          %2195 = vrot.lane.b32.xlu0 %v2155, 64
          %v2196 = vpop.permute.xlu0 %2195
          %2197 = vrot.lane.b32.xlu0 %v2156, 64
          %v2198 = vpop.permute.xlu0 %2197
          %2199 = vrot.lane.b32.xlu0 %v2157, 64
          %v2200 = vpop.permute.xlu0 %2199
          %2201 = vrot.lane.b32.xlu0 %v2158, 64
          %v2202 = vpop.permute.xlu0 %2201
          %2203 = vrot.lane.b32.xlu0 %v2159, 64
          %v2204 = vpop.permute.xlu0 %2203
          %2205 = vrot.lane.b32.xlu0 %v2160, 64
          %v2206 = vpop.permute.xlu0 %2205
          %2207 = vrot.lane.b32.xlu0 %v2161, 64
          %v2208 = vpop.permute.xlu0 %2207
          %2209 = vrot.lane.b32.xlu0 %v2162, 64
          %v2210 = vpop.permute.xlu0 %2209
          %v2227 = vadd.f32 %v2129, %v2180
          %v2228 = vadd.f32 %v2130, %v2182
          %v2229 = vadd.f32 %v2131, %v2184
          %v2230 = vadd.f32 %v2132, %v2186
          %v2231 = vadd.f32 %v2133, %v2188
          %v2232 = vadd.f32 %v2134, %v2190
          %v2233 = vadd.f32 %v2135, %v2192
          %v2234 = vadd.f32 %v2136, %v2194
          %v2235 = vadd.f32 %v2137, %v2196
          %v2236 = vadd.f32 %v2138, %v2198
          %v2237 = vadd.f32 %v2139, %v2200
          %v2238 = vadd.f32 %v2140, %v2202
          %v2239 = vadd.f32 %v2141, %v2204
          %v2240 = vadd.f32 %v2142, %v2206
          %v2241 = vadd.f32 %v2143, %v2208
          %v2242 = vadd.f32 %v2144, %v2210
          %s2243 = sld [smem:[#allocation3 + $0x1]]
          %v2244 = vstv %s2243
          %v2245 = vmul.f32 %v2244, %v2013
          %v2246 = vmul.f32 %v2244, %v2014
          %v2247 = vmul.f32 %v2244, %v2015
          %v2248 = vmul.f32 %v2244, %v2016
          %v2249 = vmul.f32 %v2244, %v2017
          %v2250 = vmul.f32 %v2244, %v2018
          %v2251 = vmul.f32 %v2244, %v2019
          %v2252 = vmul.f32 %v2244, %v2020
          %v2253 = vmul.f32 %v2244, %v2021
          %v2254 = vmul.f32 %v2244, %v2022
          %v2255 = vmul.f32 %v2244, %v2023
          %v2256 = vmul.f32 %v2244, %v2024
          %v2257 = vmul.f32 %v2244, %v2025
          %v2258 = vmul.f32 %v2244, %v2026
          %v2259 = vmul.f32 %v2244, %v2027
          %v2260 = vmul.f32 %v2244, %v2028
          %s2261 = sld [smem:[#allocation3 + $0x81]]
          %v2262 = vstv %s2261
          %v2263 = vmul.f32 %v2262, %v2013
          %v2264 = vmul.f32 %v2262, %v2014
          %v2265 = vmul.f32 %v2262, %v2015
          %v2266 = vmul.f32 %v2262, %v2016
          %v2267 = vmul.f32 %v2262, %v2017
          %v2268 = vmul.f32 %v2262, %v2018
          %v2269 = vmul.f32 %v2262, %v2019
          %v2270 = vmul.f32 %v2262, %v2020
          %v2271 = vmul.f32 %v2262, %v2021
          %v2272 = vmul.f32 %v2262, %v2022
          %v2273 = vmul.f32 %v2262, %v2023
          %v2274 = vmul.f32 %v2262, %v2024
          %v2275 = vmul.f32 %v2262, %v2025
          %v2276 = vmul.f32 %v2262, %v2026
          %v2277 = vmul.f32 %v2262, %v2027
          %v2278 = vmul.f32 %v2262, %v2028
          %2295 = vrot.lane.b32.xlu0 %v2263, 96
          %v2296 = vpop.permute.xlu0 %2295
          %2297 = vrot.lane.b32.xlu0 %v2264, 96
          %v2298 = vpop.permute.xlu0 %2297
          %2299 = vrot.lane.b32.xlu0 %v2265, 96
          %v2300 = vpop.permute.xlu0 %2299
          %2301 = vrot.lane.b32.xlu0 %v2266, 96
          %v2302 = vpop.permute.xlu0 %2301
          %2303 = vrot.lane.b32.xlu0 %v2267, 96
          %v2304 = vpop.permute.xlu0 %2303
          %2305 = vrot.lane.b32.xlu0 %v2268, 96
          %v2306 = vpop.permute.xlu0 %2305
          %2307 = vrot.lane.b32.xlu0 %v2269, 96
          %v2308 = vpop.permute.xlu0 %2307
          %2309 = vrot.lane.b32.xlu0 %v2270, 96
          %v2310 = vpop.permute.xlu0 %2309
          %2311 = vrot.lane.b32.xlu0 %v2271, 96
          %v2312 = vpop.permute.xlu0 %2311
          %2313 = vrot.lane.b32.xlu0 %v2272, 96
          %v2314 = vpop.permute.xlu0 %2313
          %2315 = vrot.lane.b32.xlu0 %v2273, 96
          %v2316 = vpop.permute.xlu0 %2315
          %2317 = vrot.lane.b32.xlu0 %v2274, 96
          %v2318 = vpop.permute.xlu0 %2317
          %2319 = vrot.lane.b32.xlu0 %v2275, 96
          %v2320 = vpop.permute.xlu0 %2319
          %2321 = vrot.lane.b32.xlu0 %v2276, 96
          %v2322 = vpop.permute.xlu0 %2321
          %2323 = vrot.lane.b32.xlu0 %v2277, 96
          %v2324 = vpop.permute.xlu0 %2323
          %2325 = vrot.lane.b32.xlu0 %v2278, 96
          %v2326 = vpop.permute.xlu0 %2325
          %v2343 = vadd.f32 %v2245, %v2296
          %v2344 = vadd.f32 %v2246, %v2298
          %v2345 = vadd.f32 %v2247, %v2300
          %v2346 = vadd.f32 %v2248, %v2302
          %v2347 = vadd.f32 %v2249, %v2304
          %v2348 = vadd.f32 %v2250, %v2306
          %v2349 = vadd.f32 %v2251, %v2308
          %v2350 = vadd.f32 %v2252, %v2310
          %v2351 = vadd.f32 %v2253, %v2312
          %v2352 = vadd.f32 %v2254, %v2314
          %v2353 = vadd.f32 %v2255, %v2316
          %v2354 = vadd.f32 %v2256, %v2318
          %v2355 = vadd.f32 %v2257, %v2320
          %v2356 = vadd.f32 %v2258, %v2322
          %v2357 = vadd.f32 %v2259, %v2324
          %v2358 = vadd.f32 %v2260, %v2326
          %s2359 = sld [smem:[#allocation3 + $0x101]]
          %v2360 = vstv %s2359
          %v2361 = vmul.f32 %v2360, %v2013
          %v2362 = vmul.f32 %v2360, %v2014
          %v2363 = vmul.f32 %v2360, %v2015
          %v2364 = vmul.f32 %v2360, %v2016
          %v2365 = vmul.f32 %v2360, %v2017
          %v2366 = vmul.f32 %v2360, %v2018
          %v2367 = vmul.f32 %v2360, %v2019
          %v2368 = vmul.f32 %v2360, %v2020
          %v2369 = vmul.f32 %v2360, %v2021
          %v2370 = vmul.f32 %v2360, %v2022
          %v2371 = vmul.f32 %v2360, %v2023
          %v2372 = vmul.f32 %v2360, %v2024
          %v2373 = vmul.f32 %v2360, %v2025
          %v2374 = vmul.f32 %v2360, %v2026
          %v2375 = vmul.f32 %v2360, %v2027
          %v2376 = vmul.f32 %v2360, %v2028
          %2393 = vrot.lane.b32.xlu0 %v2361, 64
          %v2394 = vpop.permute.xlu0 %2393
          %2395 = vrot.lane.b32.xlu0 %v2362, 64
          %v2396 = vpop.permute.xlu0 %2395
          %2397 = vrot.lane.b32.xlu0 %v2363, 64
          %v2398 = vpop.permute.xlu0 %2397
          %2399 = vrot.lane.b32.xlu0 %v2364, 64
          %v2400 = vpop.permute.xlu0 %2399
          %2401 = vrot.lane.b32.xlu0 %v2365, 64
          %v2402 = vpop.permute.xlu0 %2401
          %2403 = vrot.lane.b32.xlu0 %v2366, 64
          %v2404 = vpop.permute.xlu0 %2403
          %2405 = vrot.lane.b32.xlu0 %v2367, 64
          %v2406 = vpop.permute.xlu0 %2405
          %2407 = vrot.lane.b32.xlu0 %v2368, 64
          %v2408 = vpop.permute.xlu0 %2407
          %2409 = vrot.lane.b32.xlu0 %v2369, 64
          %v2410 = vpop.permute.xlu0 %2409
          %2411 = vrot.lane.b32.xlu0 %v2370, 64
          %v2412 = vpop.permute.xlu0 %2411
          %2413 = vrot.lane.b32.xlu0 %v2371, 64
          %v2414 = vpop.permute.xlu0 %2413
          %2415 = vrot.lane.b32.xlu0 %v2372, 64
          %v2416 = vpop.permute.xlu0 %2415
          %2417 = vrot.lane.b32.xlu0 %v2373, 64
          %v2418 = vpop.permute.xlu0 %2417
          %2419 = vrot.lane.b32.xlu0 %v2374, 64
          %v2420 = vpop.permute.xlu0 %2419
          %2421 = vrot.lane.b32.xlu0 %v2375, 64
          %v2422 = vpop.permute.xlu0 %2421
          %2423 = vrot.lane.b32.xlu0 %v2376, 64
          %v2424 = vpop.permute.xlu0 %2423
          %v2441 = vadd.f32 %v2343, %v2394
          %v2442 = vadd.f32 %v2344, %v2396
          %v2443 = vadd.f32 %v2345, %v2398
          %v2444 = vadd.f32 %v2346, %v2400
          %v2445 = vadd.f32 %v2347, %v2402
          %v2446 = vadd.f32 %v2348, %v2404
          %v2447 = vadd.f32 %v2349, %v2406
          %v2448 = vadd.f32 %v2350, %v2408
          %v2449 = vadd.f32 %v2351, %v2410
          %v2450 = vadd.f32 %v2352, %v2412
          %v2451 = vadd.f32 %v2353, %v2414
          %v2452 = vadd.f32 %v2354, %v2416
          %v2453 = vadd.f32 %v2355, %v2418
          %v2454 = vadd.f32 %v2356, %v2420
          %v2455 = vadd.f32 %v2357, %v2422
          %v2456 = vadd.f32 %v2358, %v2424
          %s2457 = sld [smem:[#allocation3 + $0x2]]
          %v2458 = vstv %s2457
          %v2459 = vmul.f32 %v2458, %v2013
          %v2460 = vmul.f32 %v2458, %v2014
          %v2461 = vmul.f32 %v2458, %v2015
          %v2462 = vmul.f32 %v2458, %v2016
          %v2463 = vmul.f32 %v2458, %v2017
          %v2464 = vmul.f32 %v2458, %v2018
          %v2465 = vmul.f32 %v2458, %v2019
          %v2466 = vmul.f32 %v2458, %v2020
          %v2467 = vmul.f32 %v2458, %v2021
          %v2468 = vmul.f32 %v2458, %v2022
          %v2469 = vmul.f32 %v2458, %v2023
          %v2470 = vmul.f32 %v2458, %v2024
          %v2471 = vmul.f32 %v2458, %v2025
          %v2472 = vmul.f32 %v2458, %v2026
          %v2473 = vmul.f32 %v2458, %v2027
          %v2474 = vmul.f32 %v2458, %v2028
          %s2475 = sld [smem:[#allocation3 + $0x82]]
          %v2476 = vstv %s2475
          %v2477 = vmul.f32 %v2476, %v2013
          %v2478 = vmul.f32 %v2476, %v2014
          %v2479 = vmul.f32 %v2476, %v2015
          %v2480 = vmul.f32 %v2476, %v2016
          %v2481 = vmul.f32 %v2476, %v2017
          %v2482 = vmul.f32 %v2476, %v2018
          %v2483 = vmul.f32 %v2476, %v2019
          %v2484 = vmul.f32 %v2476, %v2020
          %v2485 = vmul.f32 %v2476, %v2021
          %v2486 = vmul.f32 %v2476, %v2022
          %v2487 = vmul.f32 %v2476, %v2023
          %v2488 = vmul.f32 %v2476, %v2024
          %v2489 = vmul.f32 %v2476, %v2025
          %v2490 = vmul.f32 %v2476, %v2026
          %v2491 = vmul.f32 %v2476, %v2027
          %v2492 = vmul.f32 %v2476, %v2028
          %2509 = vrot.lane.b32.xlu0 %v2477, 96
          %v2510 = vpop.permute.xlu0 %2509
          %2511 = vrot.lane.b32.xlu0 %v2478, 96
          %v2512 = vpop.permute.xlu0 %2511
          %2513 = vrot.lane.b32.xlu0 %v2479, 96
          %v2514 = vpop.permute.xlu0 %2513
          %2515 = vrot.lane.b32.xlu0 %v2480, 96
          %v2516 = vpop.permute.xlu0 %2515
          %2517 = vrot.lane.b32.xlu0 %v2481, 96
          %v2518 = vpop.permute.xlu0 %2517
          %2519 = vrot.lane.b32.xlu0 %v2482, 96
          %v2520 = vpop.permute.xlu0 %2519
          %2521 = vrot.lane.b32.xlu0 %v2483, 96
          %v2522 = vpop.permute.xlu0 %2521
          %2523 = vrot.lane.b32.xlu0 %v2484, 96
          %v2524 = vpop.permute.xlu0 %2523
          %2525 = vrot.lane.b32.xlu0 %v2485, 96
          %v2526 = vpop.permute.xlu0 %2525
          %2527 = vrot.lane.b32.xlu0 %v2486, 96
          %v2528 = vpop.permute.xlu0 %2527
          %2529 = vrot.lane.b32.xlu0 %v2487, 96
          %v2530 = vpop.permute.xlu0 %2529
          %2531 = vrot.lane.b32.xlu0 %v2488, 96
          %v2532 = vpop.permute.xlu0 %2531
          %2533 = vrot.lane.b32.xlu0 %v2489, 96
          %v2534 = vpop.permute.xlu0 %2533
          %2535 = vrot.lane.b32.xlu0 %v2490, 96
          %v2536 = vpop.permute.xlu0 %2535
          %2537 = vrot.lane.b32.xlu0 %v2491, 96
          %v2538 = vpop.permute.xlu0 %2537
          %2539 = vrot.lane.b32.xlu0 %v2492, 96
          %v2540 = vpop.permute.xlu0 %2539
          %v2557 = vadd.f32 %v2459, %v2510
          %v2558 = vadd.f32 %v2460, %v2512
          %v2559 = vadd.f32 %v2461, %v2514
          %v2560 = vadd.f32 %v2462, %v2516
          %v2561 = vadd.f32 %v2463, %v2518
          %v2562 = vadd.f32 %v2464, %v2520
          %v2563 = vadd.f32 %v2465, %v2522
          %v2564 = vadd.f32 %v2466, %v2524
          %v2565 = vadd.f32 %v2467, %v2526
          %v2566 = vadd.f32 %v2468, %v2528
          %v2567 = vadd.f32 %v2469, %v2530
          %v2568 = vadd.f32 %v2470, %v2532
          %v2569 = vadd.f32 %v2471, %v2534
          %v2570 = vadd.f32 %v2472, %v2536
          %v2571 = vadd.f32 %v2473, %v2538
          %v2572 = vadd.f32 %v2474, %v2540
          %s2573 = sld [smem:[#allocation3 + $0x102]]
          %v2574 = vstv %s2573
          %v2575 = vmul.f32 %v2574, %v2013
          %v2576 = vmul.f32 %v2574, %v2014
          %v2577 = vmul.f32 %v2574, %v2015
          %v2578 = vmul.f32 %v2574, %v2016
          %v2579 = vmul.f32 %v2574, %v2017
          %v2580 = vmul.f32 %v2574, %v2018
          %v2581 = vmul.f32 %v2574, %v2019
          %v2582 = vmul.f32 %v2574, %v2020
          %v2583 = vmul.f32 %v2574, %v2021
          %v2584 = vmul.f32 %v2574, %v2022
          %v2585 = vmul.f32 %v2574, %v2023
          %v2586 = vmul.f32 %v2574, %v2024
          %v2587 = vmul.f32 %v2574, %v2025
          %v2588 = vmul.f32 %v2574, %v2026
          %v2589 = vmul.f32 %v2574, %v2027
          %v2590 = vmul.f32 %v2574, %v2028
          %2607 = vrot.lane.b32.xlu0 %v2575, 64
          %v2608 = vpop.permute.xlu0 %2607
          %2609 = vrot.lane.b32.xlu0 %v2576, 64
          %v2610 = vpop.permute.xlu0 %2609
          %2611 = vrot.lane.b32.xlu0 %v2577, 64
          %v2612 = vpop.permute.xlu0 %2611
          %2613 = vrot.lane.b32.xlu0 %v2578, 64
          %v2614 = vpop.permute.xlu0 %2613
          %2615 = vrot.lane.b32.xlu0 %v2579, 64
          %v2616 = vpop.permute.xlu0 %2615
          %2617 = vrot.lane.b32.xlu0 %v2580, 64
          %v2618 = vpop.permute.xlu0 %2617
          %2619 = vrot.lane.b32.xlu0 %v2581, 64
          %v2620 = vpop.permute.xlu0 %2619
          %2621 = vrot.lane.b32.xlu0 %v2582, 64
          %v2622 = vpop.permute.xlu0 %2621
          %2623 = vrot.lane.b32.xlu0 %v2583, 64
          %v2624 = vpop.permute.xlu0 %2623
          %2625 = vrot.lane.b32.xlu0 %v2584, 64
          %v2626 = vpop.permute.xlu0 %2625
          %2627 = vrot.lane.b32.xlu0 %v2585, 64
          %v2628 = vpop.permute.xlu0 %2627
          %2629 = vrot.lane.b32.xlu0 %v2586, 64
          %v2630 = vpop.permute.xlu0 %2629
          %2631 = vrot.lane.b32.xlu0 %v2587, 64
          %v2632 = vpop.permute.xlu0 %2631
          %2633 = vrot.lane.b32.xlu0 %v2588, 64
          %v2634 = vpop.permute.xlu0 %2633
          %2635 = vrot.lane.b32.xlu0 %v2589, 64
          %v2636 = vpop.permute.xlu0 %2635
          %2637 = vrot.lane.b32.xlu0 %v2590, 64
          %v2638 = vpop.permute.xlu0 %2637
          %v2655 = vadd.f32 %v2557, %v2608
          %v2656 = vadd.f32 %v2558, %v2610
          %v2657 = vadd.f32 %v2559, %v2612
          %v2658 = vadd.f32 %v2560, %v2614
          %v2659 = vadd.f32 %v2561, %v2616
          %v2660 = vadd.f32 %v2562, %v2618
          %v2661 = vadd.f32 %v2563, %v2620
          %v2662 = vadd.f32 %v2564, %v2622
          %v2663 = vadd.f32 %v2565, %v2624
          %v2664 = vadd.f32 %v2566, %v2626
          %v2665 = vadd.f32 %v2567, %v2628
          %v2666 = vadd.f32 %v2568, %v2630
          %v2667 = vadd.f32 %v2569, %v2632
          %v2668 = vadd.f32 %v2570, %v2634
          %v2669 = vadd.f32 %v2571, %v2636
          %v2670 = vadd.f32 %v2572, %v2638
          %2687 = vrot.lane.b32.xlu0 %v2441, 32
          %v2688 = vpop.permute.xlu0 %2687
          %2689 = vrot.lane.b32.xlu0 %v2442, 32
          %v2690 = vpop.permute.xlu0 %2689
          %2691 = vrot.lane.b32.xlu0 %v2443, 32
          %v2692 = vpop.permute.xlu0 %2691
          %2693 = vrot.lane.b32.xlu0 %v2444, 32
          %v2694 = vpop.permute.xlu0 %2693
          %2695 = vrot.lane.b32.xlu0 %v2445, 32
          %v2696 = vpop.permute.xlu0 %2695
          %2697 = vrot.lane.b32.xlu0 %v2446, 32
          %v2698 = vpop.permute.xlu0 %2697
          %2699 = vrot.lane.b32.xlu0 %v2447, 32
          %v2700 = vpop.permute.xlu0 %2699
          %2701 = vrot.lane.b32.xlu0 %v2448, 32
          %v2702 = vpop.permute.xlu0 %2701
          %2703 = vrot.lane.b32.xlu0 %v2449, 32
          %v2704 = vpop.permute.xlu0 %2703
          %2705 = vrot.lane.b32.xlu0 %v2450, 32
          %v2706 = vpop.permute.xlu0 %2705
          %2707 = vrot.lane.b32.xlu0 %v2451, 32
          %v2708 = vpop.permute.xlu0 %2707
          %2709 = vrot.lane.b32.xlu0 %v2452, 32
          %v2710 = vpop.permute.xlu0 %2709
          %2711 = vrot.lane.b32.xlu0 %v2453, 32
          %v2712 = vpop.permute.xlu0 %2711
          %2713 = vrot.lane.b32.xlu0 %v2454, 32
          %v2714 = vpop.permute.xlu0 %2713
          %2715 = vrot.lane.b32.xlu0 %v2455, 32
          %v2716 = vpop.permute.xlu0 %2715
          %2717 = vrot.lane.b32.xlu0 %v2456, 32
          %v2718 = vpop.permute.xlu0 %2717
          %2751 = vrot.lane.b32.xlu0 %v2655, 64
          %v2752 = vpop.permute.xlu0 %2751
          %2753 = vrot.lane.b32.xlu0 %v2656, 64
          %v2754 = vpop.permute.xlu0 %2753
          %2755 = vrot.lane.b32.xlu0 %v2657, 64
          %v2756 = vpop.permute.xlu0 %2755
          %2757 = vrot.lane.b32.xlu0 %v2658, 64
          %v2758 = vpop.permute.xlu0 %2757
          %2759 = vrot.lane.b32.xlu0 %v2659, 64
          %v2760 = vpop.permute.xlu0 %2759
          %2761 = vrot.lane.b32.xlu0 %v2660, 64
          %v2762 = vpop.permute.xlu0 %2761
          %2763 = vrot.lane.b32.xlu0 %v2661, 64
          %v2764 = vpop.permute.xlu0 %2763
          %2765 = vrot.lane.b32.xlu0 %v2662, 64
          %v2766 = vpop.permute.xlu0 %2765
          %2767 = vrot.lane.b32.xlu0 %v2663, 64
          %v2768 = vpop.permute.xlu0 %2767
          %2769 = vrot.lane.b32.xlu0 %v2664, 64
          %v2770 = vpop.permute.xlu0 %2769
          %2771 = vrot.lane.b32.xlu0 %v2665, 64
          %v2772 = vpop.permute.xlu0 %2771
          %2773 = vrot.lane.b32.xlu0 %v2666, 64
          %v2774 = vpop.permute.xlu0 %2773
          %2775 = vrot.lane.b32.xlu0 %v2667, 64
          %v2776 = vpop.permute.xlu0 %2775
          %2777 = vrot.lane.b32.xlu0 %v2668, 64
          %v2778 = vpop.permute.xlu0 %2777
          %2779 = vrot.lane.b32.xlu0 %v2669, 64
          %v2780 = vpop.permute.xlu0 %2779
          %2781 = vrot.lane.b32.xlu0 %v2670, 64
          %v2782 = vpop.permute.xlu0 %2781
          %v2799 = vsel %vm1700, %v2227, %v2688
          %v2800 = vsel %vm1700, %v2228, %v2690
          %v2801 = vsel %vm1700, %v2229, %v2692
          %v2802 = vsel %vm1700, %v2230, %v2694
          %v2803 = vsel %vm1700, %v2231, %v2696
          %v2804 = vsel %vm1700, %v2232, %v2698
          %v2805 = vsel %vm1700, %v2233, %v2700
          %v2806 = vsel %vm1700, %v2234, %v2702
          %v2807 = vsel %vm1700, %v2235, %v2704
          %v2808 = vsel %vm1700, %v2236, %v2706
          %v2809 = vsel %vm1700, %v2237, %v2708
          %v2810 = vsel %vm1700, %v2238, %v2710
          %v2811 = vsel %vm1700, %v2239, %v2712
          %v2812 = vsel %vm1700, %v2240, %v2714
          %v2813 = vsel %vm1700, %v2241, %v2716
          %v2814 = vsel %vm1700, %v2242, %v2718
          %v2815 = vsel %vm1717, %v2799, %v2752
          %v2816 = vsel %vm1717, %v2800, %v2754
          %v2817 = vsel %vm1717, %v2801, %v2756
          %v2818 = vsel %vm1717, %v2802, %v2758
          %v2819 = vsel %vm1717, %v2803, %v2760
          %v2820 = vsel %vm1717, %v2804, %v2762
          %v2821 = vsel %vm1717, %v2805, %v2764
          %v2822 = vsel %vm1717, %v2806, %v2766
          %v2823 = vsel %vm1717, %v2807, %v2768
          %v2824 = vsel %vm1717, %v2808, %v2770
          %v2825 = vsel %vm1717, %v2809, %v2772
          %v2826 = vsel %vm1717, %v2810, %v2774
          %v2827 = vsel %vm1717, %v2811, %v2776
          %v2828 = vsel %vm1717, %v2812, %v2778
          %v2829 = vsel %vm1717, %v2813, %v2780
          %v2830 = vsel %vm1717, %v2814, %v2782
          %v2831 = vld [vmem:[#allocation2] sm:$0xff]
          %v2832 = vld [vmem:[#allocation2 + $0x8] sm:$0xff]
          %v2833 = vld [vmem:[#allocation2 + $0x10] sm:$0xff]
          %v2834 = vld [vmem:[#allocation2 + $0x18] sm:$0xff]
          %v2835 = vld [vmem:[#allocation2 + $0x20] sm:$0xff]
          %v2836 = vld [vmem:[#allocation2 + $0x28] sm:$0xff]
          %v2837 = vld [vmem:[#allocation2 + $0x30] sm:$0xff]
          %v2838 = vld [vmem:[#allocation2 + $0x38] sm:$0xff]
          %v2839 = vld [vmem:[#allocation2 + $0x40] sm:$0xff]
          %v2840 = vld [vmem:[#allocation2 + $0x48] sm:$0xff]
          %v2841 = vld [vmem:[#allocation2 + $0x50] sm:$0xff]
          %v2842 = vld [vmem:[#allocation2 + $0x58] sm:$0xff]
          %v2843 = vld [vmem:[#allocation2 + $0x60] sm:$0xff]
          %v2844 = vld [vmem:[#allocation2 + $0x68] sm:$0xff]
          %v2845 = vld [vmem:[#allocation2 + $0x70] sm:$0xff]
          %v2846 = vld [vmem:[#allocation2 + $0x78] sm:$0xff]
          %v2847 = vld [vmem:[#allocation11] sm:$0x1]
          %v2849 = vlaneseq
          %v2850 = vshrl.u32 %v2849, 7
          %v2851 = vsub.s32 0, %v2850
          %v2852 = vrot.slane %v2847, %v2851
          %v2854 = vadd.f32 %v2831, %v2852
          %v2855 = vadd.f32 %v2832, %v2852
          %v2856 = vadd.f32 %v2833, %v2852
          %v2857 = vadd.f32 %v2834, %v2852
          %v2858 = vadd.f32 %v2835, %v2852
          %v2859 = vadd.f32 %v2836, %v2852
          %v2860 = vadd.f32 %v2837, %v2852
          %v2861 = vadd.f32 %v2838, %v2852
          %v2862 = vadd.f32 %v2839, %v2852
          %v2863 = vadd.f32 %v2840, %v2852
          %v2864 = vadd.f32 %v2841, %v2852
          %v2865 = vadd.f32 %v2842, %v2852
          %v2866 = vadd.f32 %v2843, %v2852
          %v2867 = vadd.f32 %v2844, %v2852
          %v2868 = vadd.f32 %v2845, %v2852
          %v2869 = vadd.f32 %v2846, %v2852
          %v2870 = vmul.f32 %v2854, 0.5
          %v2871 = vmul.f32 %v2855, 0.5
          %v2872 = vmul.f32 %v2856, 0.5
          %v2873 = vmul.f32 %v2857, 0.5
          %v2874 = vmul.f32 %v2858, 0.5
          %v2875 = vmul.f32 %v2859, 0.5
          %v2876 = vmul.f32 %v2860, 0.5
          %v2877 = vmul.f32 %v2861, 0.5
          %v2878 = vmul.f32 %v2862, 0.5
          %v2879 = vmul.f32 %v2863, 0.5
          %v2880 = vmul.f32 %v2864, 0.5
          %v2881 = vmul.f32 %v2865, 0.5
          %v2882 = vmul.f32 %v2866, 0.5
          %v2883 = vmul.f32 %v2867, 0.5
          %v2884 = vmul.f32 %v2868, 0.5
          %v2885 = vmul.f32 %v2869, 0.5
          %v2886 = vmul.f32 %v2815, 0.5
          %v2887 = vmul.f32 %v2816, 0.5
          %v2888 = vmul.f32 %v2817, 0.5
          %v2889 = vmul.f32 %v2818, 0.5
          %v2890 = vmul.f32 %v2819, 0.5
          %v2891 = vmul.f32 %v2820, 0.5
          %v2892 = vmul.f32 %v2821, 0.5
          %v2893 = vmul.f32 %v2822, 0.5
          %v2894 = vmul.f32 %v2823, 0.5
          %v2895 = vmul.f32 %v2824, 0.5
          %v2896 = vmul.f32 %v2825, 0.5
          %v2897 = vmul.f32 %v2826, 0.5
          %v2898 = vmul.f32 %v2827, 0.5
          %v2899 = vmul.f32 %v2828, 0.5
          %v2900 = vmul.f32 %v2829, 0.5
          %v2901 = vmul.f32 %v2830, 0.5
          %v2902 = vadd.f32 %v2870, %v2886
          %v2903 = vadd.f32 %v2871, %v2887
          %v2904 = vadd.f32 %v2872, %v2888
          %v2905 = vadd.f32 %v2873, %v2889
          %v2906 = vadd.f32 %v2874, %v2890
          %v2907 = vadd.f32 %v2875, %v2891
          %v2908 = vadd.f32 %v2876, %v2892
          %v2909 = vadd.f32 %v2877, %v2893
          %v2910 = vadd.f32 %v2878, %v2894
          %v2911 = vadd.f32 %v2879, %v2895
          %v2912 = vadd.f32 %v2880, %v2896
          %v2913 = vadd.f32 %v2881, %v2897
          %v2914 = vadd.f32 %v2882, %v2898
          %v2915 = vadd.f32 %v2883, %v2899
          %v2916 = vadd.f32 %v2884, %v2900
          %v2917 = vadd.f32 %v2885, %v2901
          %v2918 = vld [vmem:[#allocation13] sm:$0xff]
          %v2919 = vld [vmem:[#allocation13 + $0x8] sm:$0xff]
          %v2920 = vld [vmem:[#allocation13 + $0x10] sm:$0xff]
          %v2921 = vld [vmem:[#allocation13 + $0x18] sm:$0xff]
          %v2922 = vld [vmem:[#allocation13 + $0x20] sm:$0xff]
          %v2923 = vld [vmem:[#allocation13 + $0x28] sm:$0xff]
          %v2924 = vld [vmem:[#allocation13 + $0x30] sm:$0xff]
          %v2925 = vld [vmem:[#allocation13 + $0x38] sm:$0xff]
          %v2926 = vld [vmem:[#allocation13 + $0x40] sm:$0xff]
          %v2927 = vld [vmem:[#allocation13 + $0x48] sm:$0xff]
          %v2928 = vld [vmem:[#allocation13 + $0x50] sm:$0xff]
          %v2929 = vld [vmem:[#allocation13 + $0x58] sm:$0xff]
          %v2930 = vld [vmem:[#allocation14] sm:$0x1]
          %v2932 = vlaneseq
          %v2933 = vshrl.u32 %v2932, 7
          %v2934 = vsub.s32 0, %v2933
          %v2935 = vrot.slane %v2930, %v2934
          %v2938 = vsel %vm813, %v2902, 0
          %v2941 = vsel %vm813, %v2903, 0
          %v2944 = vsel %vm813, %v2904, 0
          %v2947 = vsel %vm813, %v2905, 0
          %v2950 = vsel %vm813, %v2906, 0
          %v2953 = vsel %vm813, %v2907, 0
          %v2956 = vsel %vm813, %v2908, 0
          %v2959 = vsel %vm813, %v2909, 0
          %v2962 = vsel %vm813, %v2910, 0
          %v2965 = vsel %vm813, %v2911, 0
          %v2968 = vsel %vm813, %v2912, 0
          %v2971 = vsel %vm813, %v2913, 0
          %v2974 = vsel %vm813, %v2914, 0
          %v2977 = vsel %vm813, %v2915, 0
          %v2980 = vsel %vm813, %v2916, 0
          %v2983 = vsel %vm813, %v2917, 0
          %2985 = vmatprep.subr.mxu0 0.0
          %2986 = vmatpush1.msra.mxu0 %v2918
          %2987 = vmatprep.subr.mxu0 0.0
          %2988 = vmatpush1.msra.mxu0 %v2919
          %2989 = vmatprep.subr.mxu0 0.0
          %2990 = vmatpush1.msra.mxu0 %v2920
          %2991 = vmatprep.subr.mxu0 0.0
          %2992 = vmatpush1.msra.mxu0 %v2921
          %2993 = vmatprep.subr.mxu0 0.0
          %2994 = vmatpush1.msra.mxu0 %v2922
          %2995 = vmatprep.subr.mxu0 0.0
          %2996 = vmatpush1.msra.mxu0 %v2923
          %2997 = vmatprep.subr.mxu0 0.0
          %2998 = vmatpush1.msra.mxu0 %v2924
          %2999 = vmatprep.subr.mxu0 0.0
          %3000 = vmatpush1.msra.mxu0 %v2925
          %3001 = vmatprep.subr.mxu0 0.0
          %3002 = vmatpush1.msra.mxu0 %v2926
          %3003 = vmatprep.subr.mxu0 0.0
          %3004 = vmatpush1.msra.mxu0 %v2927
          %3005 = vmatprep.subr.mxu0 0.0
          %3006 = vmatpush1.msra.mxu0 %v2928
          %3007 = vmatprep.subr.mxu0 0.0
          %3008 = vmatpush1.msra.mxu0 %v2929
          %3009 = vmatprep.subr.mxu0 0.0
          %3010 = vmatpush1.msra.mxu0 0.0
          %3011 = vmatprep.subr.mxu0 0.0
          %3012 = vmatpush1.msra.mxu0 0.0
          %3013 = vmatprep.subr.mxu0 0.0
          %3014 = vmatpush1.msra.mxu0 0.0
          %3015 = vmatprep.subr.mxu0 0.0
          %3016 = vmatpush1.msra.mxu0 0.0
          %3017 = vmatprep.subr.mxu0 0.0
          %3018 = vmatpush1.msra.mxu0 0.0
          %3019 = vmatprep.subr.mxu0 0.0
          %3020 = vmatpush1.msra.mxu0 0.0
          %3021 = vmatprep.subr.mxu0 0.0
          %3022 = vmatpush1.msra.mxu0 0.0
          %3023 = vmatprep.subr.mxu0 0.0
          %3024 = vmatpush1.msra.mxu0 0.0
          %3025 = vmatprep.subr.mxu0 0.0
          %3026 = vmatpush1.msra.mxu0 0.0
          %3027 = vmatprep.subr.mxu0 0.0
          %3028 = vmatpush1.msra.mxu0 0.0
          %3029 = vmatprep.subr.mxu0 0.0
          %3030 = vmatpush1.msra.mxu0 0.0
          %3031 = vmatprep.subr.mxu0 0.0
          %3032 = vmatpush1.msra.mxu0 0.0
          %3033 = vmatprep.subr.mxu0 0.0
          %3034 = vmatpush1.msra.mxu0 0.0
          %3035 = vmatprep.subr.mxu0 0.0
          %3036 = vmatpush1.msra.mxu0 0.0
          %3037 = vmatprep.subr.mxu0 0.0
          %3038 = vmatpush1.msra.mxu0 0.0
          %3039 = vmatprep.subr.mxu0 0.0
          %3040 = vmatpush1.msra.mxu0 0.0
          %3041 = vmatprep.subr.mxu0 0.0
          %3042 = vmatpush1.msra.mxu0 0.0
          %3043 = vmatprep.subr.mxu0 0.0
          %3044 = vmatpush1.msra.mxu0 0.0
          %3045 = vmatprep.subr.mxu0 0.0
          %3046 = vmatpush1.msra.mxu0 0.0
          %3047 = vmatprep.subr.mxu0 0.0
          %3048 = vmatpush1.msra.mxu0 0.0
          %3049 = vmatprep.mubr.f32.mxu0 0.0
          %3050 = vmatmul.mubr.f32.gmra.mrb[0].mxu0 %v2938
          %v3051 = vpop.f32.mrb[0].mxu0
          %v3052 = vadd.f32 %v2935, %v3051
          %v3053 = vpop.f32.mrb[0].mxu0
          %3054 = vmatprep.mubr.f32.mxu0 0.0
          %3055 = vmatmul.mubr.f32.gmra.mrb[0].mxu0 %v2941
          %v3056 = vpop.f32.mrb[0].mxu0
          %v3057 = vadd.f32 %v2935, %v3056
          %v3058 = vpop.f32.mrb[0].mxu0
          %3059 = vmatprep.mubr.f32.mxu0 0.0
          %3060 = vmatmul.mubr.f32.gmra.mrb[0].mxu0 %v2944
          %v3061 = vpop.f32.mrb[0].mxu0
          %v3062 = vadd.f32 %v2935, %v3061
          %v3063 = vpop.f32.mrb[0].mxu0
          %3064 = vmatprep.mubr.f32.mxu0 0.0
          %3065 = vmatmul.mubr.f32.gmra.mrb[0].mxu0 %v2947
          %v3066 = vpop.f32.mrb[0].mxu0
          %v3067 = vadd.f32 %v2935, %v3066
          %v3068 = vpop.f32.mrb[0].mxu0
          %3069 = vmatprep.mubr.f32.mxu0 0.0
          %3070 = vmatmul.mubr.f32.gmra.mrb[0].mxu0 %v2950
          %v3071 = vpop.f32.mrb[0].mxu0
          %v3072 = vadd.f32 %v2935, %v3071
          %v3073 = vpop.f32.mrb[0].mxu0
          %3074 = vmatprep.mubr.f32.mxu0 0.0
          %3075 = vmatmul.mubr.f32.gmra.mrb[0].mxu0 %v2953
          %v3076 = vpop.f32.mrb[0].mxu0
          %v3077 = vadd.f32 %v2935, %v3076
          %v3078 = vpop.f32.mrb[0].mxu0
          %3079 = vmatprep.mubr.f32.mxu0 0.0
          %3080 = vmatmul.mubr.f32.gmra.mrb[0].mxu0 %v2956
          %v3081 = vpop.f32.mrb[0].mxu0
          %v3082 = vadd.f32 %v2935, %v3081
          %v3083 = vpop.f32.mrb[0].mxu0
          %3084 = vmatprep.mubr.f32.mxu0 0.0
          %3085 = vmatmul.mubr.f32.gmra.mrb[0].mxu0 %v2959
          %v3086 = vpop.f32.mrb[0].mxu0
          %v3087 = vadd.f32 %v2935, %v3086
          %v3088 = vpop.f32.mrb[0].mxu0
          %3089 = vmatprep.mubr.f32.mxu0 0.0
          %3090 = vmatmul.mubr.f32.gmra.mrb[0].mxu0 %v2962
          %v3091 = vpop.f32.mrb[0].mxu0
          %v3092 = vadd.f32 %v2935, %v3091
          %v3093 = vpop.f32.mrb[0].mxu0
          %3094 = vmatprep.mubr.f32.mxu0 0.0
          %3095 = vmatmul.mubr.f32.gmra.mrb[0].mxu0 %v2965
          %v3096 = vpop.f32.mrb[0].mxu0
          %v3097 = vadd.f32 %v2935, %v3096
          %v3098 = vpop.f32.mrb[0].mxu0
          %3099 = vmatprep.mubr.f32.mxu0 0.0
          %3100 = vmatmul.mubr.f32.gmra.mrb[0].mxu0 %v2968
          %v3101 = vpop.f32.mrb[0].mxu0
          %v3102 = vadd.f32 %v2935, %v3101
          %v3103 = vpop.f32.mrb[0].mxu0
          %3104 = vmatprep.mubr.f32.mxu0 0.0
          %3105 = vmatmul.mubr.f32.gmra.mrb[0].mxu0 %v2971
          %v3106 = vpop.f32.mrb[0].mxu0
          %v3107 = vadd.f32 %v2935, %v3106
          %v3108 = vpop.f32.mrb[0].mxu0
          %3109 = vmatprep.mubr.f32.mxu0 0.0
          %3110 = vmatmul.mubr.f32.gmra.mrb[0].mxu0 %v2974
          %v3111 = vpop.f32.mrb[0].mxu0
          %v3112 = vadd.f32 %v2935, %v3111
          %v3113 = vpop.f32.mrb[0].mxu0
          %3114 = vmatprep.mubr.f32.mxu0 0.0
          %3115 = vmatmul.mubr.f32.gmra.mrb[0].mxu0 %v2977
          %v3116 = vpop.f32.mrb[0].mxu0
          %v3117 = vadd.f32 %v2935, %v3116
          %v3118 = vpop.f32.mrb[0].mxu0
          %3119 = vmatprep.mubr.f32.mxu0 0.0
          %3120 = vmatmul.mubr.f32.gmra.mrb[0].mxu0 %v2980
          %v3121 = vpop.f32.mrb[0].mxu0
          %v3122 = vadd.f32 %v2935, %v3121
          %v3123 = vpop.f32.mrb[0].mxu0
          %3124 = vmatprep.mubr.f32.mxu0 0.0
          %3125 = vmatmul.mubr.f32.gmra.mrb[0].mxu0 %v2983
          %v3126 = vpop.f32.mrb[0].mxu0
          %v3127 = vadd.f32 %v2935, %v3126
          %v3128 = vpop.f32.mrb[0].mxu0
          %3129 = vdwg.mxu0
          %vm3130 = vcmp.gt.f32.partialorder %v3052, 0.0
          %vm3131 = vcmp.gt.f32.partialorder %v3057, 0.0
          %vm3132 = vcmp.gt.f32.partialorder %v3062, 0.0
          %vm3133 = vcmp.gt.f32.partialorder %v3067, 0.0
          %vm3134 = vcmp.gt.f32.partialorder %v3072, 0.0
          %vm3135 = vcmp.gt.f32.partialorder %v3077, 0.0
          %vm3136 = vcmp.gt.f32.partialorder %v3082, 0.0
          %vm3137 = vcmp.gt.f32.partialorder %v3087, 0.0
          %vm3138 = vcmp.gt.f32.partialorder %v3092, 0.0
          %vm3139 = vcmp.gt.f32.partialorder %v3097, 0.0
          %vm3140 = vcmp.gt.f32.partialorder %v3102, 0.0
          %vm3141 = vcmp.gt.f32.partialorder %v3107, 0.0
          %vm3142 = vcmp.gt.f32.partialorder %v3112, 0.0
          %vm3143 = vcmp.gt.f32.partialorder %v3117, 0.0
          %vm3144 = vcmp.gt.f32.partialorder %v3122, 0.0
          %vm3145 = vcmp.gt.f32.partialorder %v3127, 0.0
          %v3146 = vmul.f32 %v3052, 0.01
          %v3147 = vmul.f32 %v3057, 0.01
          %v3148 = vmul.f32 %v3062, 0.01
          %v3149 = vmul.f32 %v3067, 0.01
          %v3150 = vmul.f32 %v3072, 0.01
          %v3151 = vmul.f32 %v3077, 0.01
          %v3152 = vmul.f32 %v3082, 0.01
          %v3153 = vmul.f32 %v3087, 0.01
          %v3154 = vmul.f32 %v3092, 0.01
          %v3155 = vmul.f32 %v3097, 0.01
          %v3156 = vmul.f32 %v3102, 0.01
          %v3157 = vmul.f32 %v3107, 0.01
          %v3158 = vmul.f32 %v3112, 0.01
          %v3159 = vmul.f32 %v3117, 0.01
          %v3160 = vmul.f32 %v3122, 0.01
          %v3161 = vmul.f32 %v3127, 0.01
          %v3162 = vsel %vm3130, %v3052, %v3146
          %v3163 = vsel %vm3131, %v3057, %v3147
          %v3164 = vsel %vm3132, %v3062, %v3148
          %v3165 = vsel %vm3133, %v3067, %v3149
          %v3166 = vsel %vm3134, %v3072, %v3150
          %v3167 = vsel %vm3135, %v3077, %v3151
          %v3168 = vsel %vm3136, %v3082, %v3152
          %v3169 = vsel %vm3137, %v3087, %v3153
          %v3170 = vsel %vm3138, %v3092, %v3154
          %v3171 = vsel %vm3139, %v3097, %v3155
          %v3172 = vsel %vm3140, %v3102, %v3156
          %v3173 = vsel %vm3141, %v3107, %v3157
          %v3174 = vsel %vm3142, %v3112, %v3158
          %v3175 = vsel %vm3143, %v3117, %v3159
          %v3176 = vsel %vm3144, %v3122, %v3160
          %v3177 = vsel %vm3145, %v3127, %v3161
          %3178 = vst [vmem:[%s504] sm:$0xff] %v3162
          %3179 = vst [vmem:[%s504 + $0x8] sm:$0xff] %v3163
          %3180 = vst [vmem:[%s504 + $0x10] sm:$0xff] %v3164
          %3181 = vst [vmem:[%s504 + $0x18] sm:$0xff] %v3165
          %3182 = vst [vmem:[%s504 + $0x20] sm:$0xff] %v3166
          %3183 = vst [vmem:[%s504 + $0x28] sm:$0xff] %v3167
          %3184 = vst [vmem:[%s504 + $0x30] sm:$0xff] %v3168
          %3185 = vst [vmem:[%s504 + $0x38] sm:$0xff] %v3169
          %3186 = vst [vmem:[%s504 + $0x40] sm:$0xff] %v3170
          %3187 = vst [vmem:[%s504 + $0x48] sm:$0xff] %v3171
          %3188 = vst [vmem:[%s504 + $0x50] sm:$0xff] %v3172
          %3189 = vst [vmem:[%s504 + $0x58] sm:$0xff] %v3173
          %3190 = vst [vmem:[%s504 + $0x60] sm:$0xff] %v3174
          %3191 = vst [vmem:[%s504 + $0x68] sm:$0xff] %v3175
          %3192 = vst [vmem:[%s504 + $0x70] sm:$0xff] %v3176
          %3193 = vst [vmem:[%s504 + $0x78] sm:$0xff] %v3177
        $region92: #{tpu_custom_call.1} parent=55 // pred_fallthru
          _
        %s3194 = sand.u32 %s256, 1
        %s3195 = scalar_lea.sflag [#allocation5], %s3194
        %s3196 = sand.u32 %s256, 1
        %s3197 = smul.addr %s3196, 128
        %s3198 = scalar_lea.vmem [#allocation16], %s3197
        // Predicated region
        $region93: #{tpu_custom_call.1} parent=55 // pred_check
          %p3199 = pneg %p266
        $region94: #{tpu_custom_call.1} parent=55 // pred_check_branch
          %3201 = sbr.rel (%p3199) target = $region96
        $region95: #{tpu_custom_call.1} parent=55 // pred_region
          %s3202 = smul.u32 16, %s34
          %s3204 = ssub.s32 2048, 2048
          %3205 = vsyncadd %s3195, %s3204
          %s3206 = smul.addr %s3202, 128
          %s3207 = scalar_lea.hbm %s9, %s3206
          %s3208 = sshll.u32 %s3198, 4
          %s3209 = int_to_ptr.vmem [resolvable:$true] %s3208
          %3214 = dma.vmem_to_hbm [thread:$0]  %s3209, 2048, %s3207, %s3195, 128, 128, 8
        $region96: #{tpu_custom_call.1} parent=55 // pred_fallthru
          _
      $region56: #{tpu_custom_call.1} parent=5 // pred_fallthru
        _
      %p3215 = scmp.le.s32.totalorder 2, %s25
      // Predicated region
      $region97: #{tpu_custom_call.1} parent=5 // pred_check
        %p3216 = pneg %p3215
      $region98: #{tpu_custom_call.1} parent=5 // pred_check_branch
        %3218 = sbr.rel (%p3216) target = $region100
      $region99: #{tpu_custom_call.1} parent=5 // pred_region
        %s3219 = ssub.s32 %s25, 2
        // Predicated region
        $region101: #{tpu_custom_call.1} parent=99 // pred_check
          %p3220 = pneg %p272
        $region102: #{tpu_custom_call.1} parent=99 // pred_check_branch
          %3222 = sbr.rel (%p3220) target = $region104
        $region103: #{tpu_custom_call.1} parent=99 // pred_region
          %s3223 = sand.u32 %s257, 1
          %s3224 = scalar_lea.sflag [#allocation5], %s3223
          %s3225 = sand.u32 %s257, 1
          %s3226 = smul.addr %s3225, 128
          %s3227 = scalar_lea.vmem [#allocation16], %s3226
          %3228 = dma.done %s3224, 2048
        $region104: #{tpu_custom_call.1} parent=99 // pred_fallthru
          _
      $region100: #{tpu_custom_call.1} parent=5 // pred_fallthru
        _
    $region6: #{tpu_custom_call.1} parent=1 // loop_footer
      %s29 = sadd.s32 1, %s25
    $region7: #{tpu_custom_call.1} parent=1 // loop_footer_branch
      %24 = sbr.rel target = $region3
    $region8: #{tpu_custom_call.1} parent=1 // loop_exit
      _
    %3229 = vsyncpa [#allocation4], 1
    %s3230 = scalar_lea.sflag [#allocation4], 1
    %3231 = vsyncpa %s3230, 1
    %3232 = vsyncpa [#allocation9], 1
    %3233 = vsyncpa [#allocation12], 1
    %3234 = vsyncpa [#allocation15], 1
    %3235 = vsyncpa [#allocation5], 1
    %s3236 = scalar_lea.sflag [#allocation5], 1
    %3237 = vsyncpa %s3236, 1
    %3238 = vsyncpa [#allocation6], 1
    %s3239 = scalar_lea.sflag [#allocation6], 1
    %3240 = vsyncpa %s3239, 1

</llo_original>
